<compile_context>
chip_gen: v7x
topology: tpu7x:2x2x1
jax: 0.10.0
libtpu: 0.0.40
codegen_flags: <defaults>
</compile_context>

<pallas_src>
import numpy as np
import jax
import jax.numpy as jnp
from jax import lax
from jax.experimental import pallas as pl
from jax.experimental.pallas import tpu as pltpu

EPS = 1e-5            # PyTorch BatchNorm2d default eps

C1, C2, C3 = 32, 16, 32      # channel counts of conv1 / conv2 / conv3
H2, W2 = 17, 17              # conv2 output spatial (32x32 gram, k3 s2 p2)
H3, W3 = 10, 10              # conv3 output spatial (17x17 input, k3 s2 p2)


# --------------------------------------------------------------------------
# plain-JAX glue: im2col for conv1 (memory movement only, tiny at 16x16)
# --------------------------------------------------------------------------
def _im2col(x_nhwc, ksize, stride, pad):
    B, H, W, C = x_nhwc.shape
    xp = jnp.pad(x_nhwc, ((0, 0), (pad, pad), (pad, pad), (0, 0)))
    Ho = (H + 2 * pad - ksize) // stride + 1
    Wo = (W + 2 * pad - ksize) // stride + 1
    cols = []
    for kh in range(ksize):
        for kw in range(ksize):
            cols.append(xp[:, kh:kh + stride * Ho:stride,
                           kw:kw + stride * Wo:stride, :])
    patches = jnp.stack(cols, axis=3)                       # (B, Ho, Wo, 9, C)
    return patches.reshape(B, Ho * Wo, ksize * ksize * C), Ho, Wo


# --------------------------------------------------------------------------
# weight-independent structural constants (built once with numpy)
# --------------------------------------------------------------------------
def _row_select(kh, n_out, n_in):
    # s[i, r] = 1  iff  r == 2*i + kh - 2   (stride-2 rows with padding=2)
    s = np.zeros((n_out, n_in), np.float32)
    for i in range(n_out):
        r = 2 * i + kh - 2
        if 0 <= r < n_in:
            s[i, r] = 1.0
    return s


_S2 = np.stack([_row_select(kh, H2, 32) for kh in range(3)])     # (3,17,32)
_S3 = np.stack([_row_select(kh, H3, H2) for kh in range(3)])     # (3,10,17)
_SUM = np.tile(np.eye(C3, dtype=np.float32), (W3, 1))            # (320,32)

# mask2[c, j, kw] = [c == 2*j + kw - 2]    (gram column -> conv2 output col j)
_MASK2 = (np.arange(32)[:, None, None]
          == 2 * np.arange(W2)[None, :, None]
          + np.arange(3)[None, None, :] - 2).astype(np.float32)   # (32,17,3)
# mask3[j, q, kw] = [j == 2*q + kw - 2]    (y2 column j -> conv3 output col q)
_MASK3 = (np.arange(W2)[:, None, None]
          == 2 * np.arange(W3)[None, :, None]
          + np.arange(3)[None, None, :] - 2).astype(np.float32)   # (17,10,3)


# --------------------------------------------------------------------------
# the single fused Pallas kernel (one batch element per grid step)
# --------------------------------------------------------------------------
def _gram_block_kernel(pT_ref, w1t_ref, b1_ref, s2_ref, m2_ref, sh2_ref,
                       s3_ref, m3_ref, sh3_ref, summ_ref, out_ref):
    f32 = jnp.float32

    # conv1 + bias : y1^T  (32, P1)
    y1t = (jnp.dot(w1t_ref[...], pT_ref[0], preferred_element_type=f32)
           + b1_ref[...])

    # Gram matrix (32, 32) = y1 @ y1^T  (contract over the P1 spatial rows)
    g = lax.dot_general(y1t, y1t, (((1,), (1,)), ((), ())),
                        preferred_element_type=f32)

    # conv2 + BN + ReLU, wide lane-dense layout (17, 17*16)
    acc2 = None
    for kh in range(3):
        rows = jnp.dot(s2_ref[kh], g, preferred_element_type=f32)      # (17,32)
        term = jnp.dot(rows, m2_ref[kh], preferred_element_type=f32)   # (17,272)
        acc2 = term if acc2 is None else acc2 + term
    y2 = jnp.maximum(acc2 + sh2_ref[...], 0.0)                         # (17,272)

    # conv3 + BN + ReLU, wide lane-dense layout (10, 10*32)
    acc3 = None
    for kh in range(3):
        rows = jnp.dot(s3_ref[kh], y2, preferred_element_type=f32)     # (10,272)
        term = jnp.dot(rows, m3_ref[kh], preferred_element_type=f32)   # (10,320)
        acc3 = term if acc3 is None else acc3 + term
    y3 = jnp.maximum(acc3 + sh3_ref[...], 0.0)                         # (10,320)

    # global average pool: sum the W3 column blocks, then the H3 rows
    y3c = jnp.dot(y3, summ_ref[...], preferred_element_type=f32)       # (10,32)
    out_ref[0] = (jnp.sum(y3c, axis=0, keepdims=True)
                  * (1.0 / (H3 * W3))).astype(out_ref.dtype)


# --------------------------------------------------------------------------
# GramBlock forward (host glue + one pallas_call)
# --------------------------------------------------------------------------
def gram_block_forward(x_nchw, p):
    x = jnp.transpose(x_nchw, (0, 2, 3, 1)).astype(jnp.float32)        # NHWC
    B, _, _, Cin = x.shape

    # conv1 patches (host glue), pre-transposed so the in-kernel gram is a
    # plain trans_b matmul on (32, P1).
    patches1, Ho1, Wo1 = _im2col(x, 3, 1, 2)                           # (B,P1,K1)
    P1, K1 = Ho1 * Wo1, 9 * Cin
    pT = jnp.transpose(patches1, (0, 2, 1))                            # (B,K1,P1)
    w1t = jnp.transpose(p["w1"].reshape(K1, C1))                       # (32,K1)
    b1c = p["b1"].reshape(C1, 1)

    # conv2 constants: fold BN scale into the weights, bias+BN into a shift.
    scale2 = p["gamma2"] / jnp.sqrt(p["var2"] + EPS)
    shift2 = (p["b2"] - p["mean2"]) * scale2 + p["beta2"]
    w2eff = p["w2"][:, :, 0, :] * scale2                               # (3,3,16)
    m2 = jnp.einsum("cjk,hko->hcjo", jnp.asarray(_MASK2), w2eff)
    m2 = m2.reshape(3, 32, W2 * C2)                                    # (3,32,272)
    sh2 = jnp.tile(shift2, W2).reshape(1, W2 * C2)                     # (1,272)

    # conv3 constants
    scale3 = p["gamma3"] / jnp.sqrt(p["var3"] + EPS)
    shift3 = (p["b3"] - p["mean3"]) * scale3 + p["beta3"]
    w3eff = p["w3"] * scale3                                           # (3,3,16,32)
    m3 = jnp.einsum("jqk,hkcd->hjcqd", jnp.asarray(_MASK3), w3eff)
    m3 = m3.reshape(3, W2 * C2, W3 * C3)                               # (3,272,320)
    sh3 = jnp.tile(shift3, W3).reshape(1, W3 * C3)                     # (1,320)

    s2 = jnp.asarray(_S2)
    s3 = jnp.asarray(_S3)
    summ = jnp.asarray(_SUM)

    out = pl.pallas_call(
        _gram_block_kernel,
        out_shape=jax.ShapeDtypeStruct((B, 1, C3), jnp.float32),
        grid=(B,),
        in_specs=[
            pl.BlockSpec((1, K1, P1), lambda b: (b, 0, 0)),            # patches^T
            pl.BlockSpec((C1, K1), lambda b: (0, 0)),                  # w1^T
            pl.BlockSpec((C1, 1), lambda b: (0, 0)),                   # bias1
            pl.BlockSpec((3, H2, 32), lambda b: (0, 0, 0)),            # S2
            pl.BlockSpec((3, 32, W2 * C2), lambda b: (0, 0, 0)),       # M2
            pl.BlockSpec((1, W2 * C2), lambda b: (0, 0)),              # shift2
            pl.BlockSpec((3, H3, H2), lambda b: (0, 0, 0)),            # S3
            pl.BlockSpec((3, W2 * C2, W3 * C3), lambda b: (0, 0, 0)),  # M3
            pl.BlockSpec((1, W3 * C3), lambda b: (0, 0)),              # shift3
            pl.BlockSpec((W3 * C3, C3), lambda b: (0, 0)),             # block-sum
        ],
        out_specs=pl.BlockSpec((1, 1, C3), lambda b: (b, 0, 0)),
        compiler_params=pltpu.CompilerParams(
            dimension_semantics=("arbitrary",)),
    )(pT, w1t, b1c, s2, m2, sh2, s3, m3, sh3, summ)

    return out.reshape(B, C3, 1, 1)


# --------------------------------------------------------------------------
# deterministic parameter init (synthetic, matches module shapes)
# --------------------------------------------------------------------------
def init_params(key, in_channels):
    ks = jax.random.split(key, 14)
    p = {}
    p["w1"] = 0.1 * jax.random.normal(ks[0], (3, 3, in_channels, 32), jnp.float32)
    p["b1"] = 0.1 * jax.random.normal(ks[1], (32,), jnp.float32)
    p["w2"] = 0.1 * jax.random.normal(ks[2], (3, 3, 1, 16), jnp.float32)
    p["b2"] = 0.1 * jax.random.normal(ks[3], (16,), jnp.float32)
    p["gamma2"] = jax.random.uniform(ks[4], (16,), jnp.float32, 0.5, 1.5)
    p["beta2"] = 0.1 * jax.random.normal(ks[5], (16,), jnp.float32)
    p["mean2"] = 0.1 * jax.random.normal(ks[6], (16,), jnp.float32)
    p["var2"] = jax.random.uniform(ks[7], (16,), jnp.float32, 0.5, 1.5)
    p["w3"] = 0.1 * jax.random.normal(ks[8], (3, 3, 16, 32), jnp.float32)
    p["b3"] = 0.1 * jax.random.normal(ks[9], (32,), jnp.float32)
    p["gamma3"] = jax.random.uniform(ks[10], (32,), jnp.float32, 0.5, 1.5)
    p["beta3"] = 0.1 * jax.random.normal(ks[11], (32,), jnp.float32)
    p["mean3"] = 0.1 * jax.random.normal(ks[12], (32,), jnp.float32)
    p["var3"] = jax.random.uniform(ks[13], (32,), jnp.float32, 0.5, 1.5)
    return p


# --------------------------------------------------------------------------
# pure-JAX reference (lax.conv) for a correctness check
# --------------------------------------------------------------------------
def ref_forward(x_nchw, p):
    x = jnp.transpose(x_nchw, (0, 2, 3, 1)).astype(jnp.float32)
    dn = ("NHWC", "HWIO", "NHWC")
    y1 = lax.conv_general_dilated(x, p["w1"], (1, 1), [(2, 2), (2, 2)],
                                  dimension_numbers=dn) + p["b1"]
    B, Ho, Wo, C = y1.shape
    f = jnp.transpose(y1, (0, 3, 1, 2)).reshape(B, C, Ho * Wo)
    g = jnp.einsum("bcp,bdp->bcd", f, f).reshape(B, C, C, 1)
    y2 = lax.conv_general_dilated(g, p["w2"], (2, 2), [(2, 2), (2, 2)],
                                  dimension_numbers=dn) + p["b2"]
    y2 = jnp.maximum((y2 - p["mean2"]) / jnp.sqrt(p["var2"] + EPS)
                     * p["gamma2"] + p["beta2"], 0.0)
    y3 = lax.conv_general_dilated(y2, p["w3"], (2, 2), [(2, 2), (2, 2)],
                                  dimension_numbers=dn) + p["b3"]
    y3 = jnp.maximum((y3 - p["mean3"]) / jnp.sqrt(p["var3"] + EPS)
                     * p["gamma3"] + p["beta3"], 0.0)
    return jnp.mean(y3, axis=(1, 2)).reshape(B, -1, 1, 1)


if __name__ == "__main__":
    key = jax.random.PRNGKey(0)
    kx, kp = jax.random.split(key)
    x = jax.random.normal(kx, (2, 4, 16, 16), jnp.float32)   # NCHW like PyTorch
    params = init_params(kp, in_channels=4)

    fwd = jax.jit(gram_block_forward)
    out = jax.block_until_ready(fwd(x, params))
    assert out.shape == (2, 32, 1, 1), out.shape

    ref = ref_forward(x, params)
    np.testing.assert_allclose(np.asarray(out), np.asarray(ref),
                               rtol=2e-4, atol=2e-3)

    print("KERNEL_OK")
</pallas_src>

<mosaic_0001>
module attributes {stable_mosaic.version = 11 : i64} {
  func.func @_gram_block_kernel(%arg0: i32, %arg1: memref<1x36x324xf32, #tpu.memory_space<vmem>>, %arg2: memref<32x36xf32, #tpu.memory_space<vmem>>, %arg3: memref<32x1xf32, #tpu.memory_space<vmem>>, %arg4: memref<3x17x32xf32, #tpu.memory_space<vmem>>, %arg5: memref<3x32x272xf32, #tpu.memory_space<vmem>>, %arg6: memref<1x272xf32, #tpu.memory_space<vmem>>, %arg7: memref<3x10x17xf32, #tpu.memory_space<vmem>>, %arg8: memref<3x272x320xf32, #tpu.memory_space<vmem>>, %arg9: memref<1x320xf32, #tpu.memory_space<vmem>>, %arg10: memref<320x32xf32, #tpu.memory_space<vmem>>, %arg11: memref<1x1x32xf32, #tpu.memory_space<vmem>>) attributes {dimension_semantics = [#tpu.dimension_semantics<arbitrary>], iteration_bounds = array<i64: 2>, scalar_prefetch = 0 : i64, scratch_operands = 0 : i64, tpu.core_type = #tpu.core_type<tc>, window_params = [{transform_indices = @transform_0, window_bounds = array<i64: 1, 36, 324>}, {pipeline_mode = #tpu.pipeline_mode<synchronous>, transform_indices = @transform_1, window_bounds = array<i64: 32, 36>}, {pipeline_mode = #tpu.pipeline_mode<synchronous>, transform_indices = @transform_2, window_bounds = array<i64: 32, 1>}, {pipeline_mode = #tpu.pipeline_mode<synchronous>, transform_indices = @transform_3, window_bounds = array<i64: 3, 17, 32>}, {pipeline_mode = #tpu.pipeline_mode<synchronous>, transform_indices = @transform_4, window_bounds = array<i64: 3, 32, 272>}, {pipeline_mode = #tpu.pipeline_mode<synchronous>, transform_indices = @transform_5, window_bounds = array<i64: 1, 272>}, {pipeline_mode = #tpu.pipeline_mode<synchronous>, transform_indices = @transform_6, window_bounds = array<i64: 3, 10, 17>}, {pipeline_mode = #tpu.pipeline_mode<synchronous>, transform_indices = @transform_7, window_bounds = array<i64: 3, 272, 320>}, {pipeline_mode = #tpu.pipeline_mode<synchronous>, transform_indices = @transform_8, window_bounds = array<i64: 1, 320>}, {pipeline_mode = #tpu.pipeline_mode<synchronous>, transform_indices = @transform_9, window_bounds = array<i64: 320, 32>}, {transform_indices = @transform_10, window_bounds = array<i64: 1, 1, 32>}]} {
    %c0 = arith.constant 0 : index
    %c0_0 = arith.constant 0 : index
    %0 = vector.load %arg2[%c0, %c0_0] : memref<32x36xf32, #tpu.memory_space<vmem>>, vector<32x36xf32>
    %c0_1 = arith.constant 0 : index
    %c0_2 = arith.constant 0 : index
    %c0_3 = arith.constant 0 : index
    %1 = vector.load %arg1[%c0_1, %c0_2, %c0_3] : memref<1x36x324xf32, #tpu.memory_space<vmem>>, vector<1x36x324xf32>
    %2 = vector.shape_cast %1 : vector<1x36x324xf32> to vector<36x324xf32>
    %cst = arith.constant dense<0.000000e+00> : vector<32x324xf32>
    %3 = tpu.matmul %0, %2, %cst {dimension_numbers = #tpu.dot_dimension_numbers<[1], [0], [0], [1], [0, 0, 1, 1], [], []>} : vector<32x36xf32>, vector<36x324xf32>, vector<32x324xf32> -> vector<32x324xf32>
    %c0_4 = arith.constant 0 : index
    %c0_5 = arith.constant 0 : index
    %4 = vector.load %arg3[%c0_4, %c0_5] : memref<32x1xf32, #tpu.memory_space<vmem>>, vector<32x1xf32>
    %5 = vector.broadcast %4 : vector<32x1xf32> to vector<32x324xf32>
    %6 = arith.addf %3, %5 : vector<32x324xf32>
    %cst_6 = arith.constant dense<0.000000e+00> : vector<32x32xf32>
    %7 = tpu.matmul %6, %6, %cst_6 {dimension_numbers = #tpu.dot_dimension_numbers<[1], [1], [0], [0], [0, 0, 1, 0], [], []>} : vector<32x324xf32>, vector<32x324xf32>, vector<32x32xf32> -> vector<32x32xf32>
    %c0_7 = arith.constant 0 : index
    %c0_8 = arith.constant 0 : index
    %c0_9 = arith.constant 0 : index
    %8 = vector.load %arg4[%c0_7, %c0_8, %c0_9] : memref<3x17x32xf32, #tpu.memory_space<vmem>>, vector<1x17x32xf32>
    %9 = vector.shape_cast %8 : vector<1x17x32xf32> to vector<17x32xf32>
    %cst_10 = arith.constant dense<0.000000e+00> : vector<17x32xf32>
    %10 = tpu.matmul %9, %7, %cst_10 {dimension_numbers = #tpu.dot_dimension_numbers<[1], [0], [0], [1], [0, 0, 1, 1], [], []>} : vector<17x32xf32>, vector<32x32xf32>, vector<17x32xf32> -> vector<17x32xf32>
    %c0_11 = arith.constant 0 : index
    %c0_12 = arith.constant 0 : index
    %c0_13 = arith.constant 0 : index
    %11 = vector.load %arg5[%c0_11, %c0_12, %c0_13] : memref<3x32x272xf32, #tpu.memory_space<vmem>>, vector<1x32x272xf32>
    %12 = vector.shape_cast %11 : vector<1x32x272xf32> to vector<32x272xf32>
    %cst_14 = arith.constant dense<0.000000e+00> : vector<17x272xf32>
    %13 = tpu.matmul %10, %12, %cst_14 {dimension_numbers = #tpu.dot_dimension_numbers<[1], [0], [0], [1], [0, 0, 1, 1], [], []>} : vector<17x32xf32>, vector<32x272xf32>, vector<17x272xf32> -> vector<17x272xf32>
    %c1 = arith.constant 1 : index
    %c0_15 = arith.constant 0 : index
    %c0_16 = arith.constant 0 : index
    %14 = vector.load %arg4[%c1, %c0_15, %c0_16] : memref<3x17x32xf32, #tpu.memory_space<vmem>>, vector<1x17x32xf32>
    %15 = vector.shape_cast %14 : vector<1x17x32xf32> to vector<17x32xf32>
    %cst_17 = arith.constant dense<0.000000e+00> : vector<17x32xf32>
    %16 = tpu.matmul %15, %7, %cst_17 {dimension_numbers = #tpu.dot_dimension_numbers<[1], [0], [0], [1], [0, 0, 1, 1], [], []>} : vector<17x32xf32>, vector<32x32xf32>, vector<17x32xf32> -> vector<17x32xf32>
    %c1_18 = arith.constant 1 : index
    %c0_19 = arith.constant 0 : index
    %c0_20 = arith.constant 0 : index
    %17 = vector.load %arg5[%c1_18, %c0_19, %c0_20] : memref<3x32x272xf32, #tpu.memory_space<vmem>>, vector<1x32x272xf32>
    %18 = vector.shape_cast %17 : vector<1x32x272xf32> to vector<32x272xf32>
    %cst_21 = arith.constant dense<0.000000e+00> : vector<17x272xf32>
    %19 = tpu.matmul %16, %18, %cst_21 {dimension_numbers = #tpu.dot_dimension_numbers<[1], [0], [0], [1], [0, 0, 1, 1], [], []>} : vector<17x32xf32>, vector<32x272xf32>, vector<17x272xf32> -> vector<17x272xf32>
    %20 = arith.addf %13, %19 : vector<17x272xf32>
    %c2 = arith.constant 2 : index
    %c0_22 = arith.constant 0 : index
    %c0_23 = arith.constant 0 : index
    %21 = vector.load %arg4[%c2, %c0_22, %c0_23] : memref<3x17x32xf32, #tpu.memory_space<vmem>>, vector<1x17x32xf32>
    %22 = vector.shape_cast %21 : vector<1x17x32xf32> to vector<17x32xf32>
    %cst_24 = arith.constant dense<0.000000e+00> : vector<17x32xf32>
    %23 = tpu.matmul %22, %7, %cst_24 {dimension_numbers = #tpu.dot_dimension_numbers<[1], [0], [0], [1], [0, 0, 1, 1], [], []>} : vector<17x32xf32>, vector<32x32xf32>, vector<17x32xf32> -> vector<17x32xf32>
    %c2_25 = arith.constant 2 : index
    %c0_26 = arith.constant 0 : index
    %c0_27 = arith.constant 0 : index
    %24 = vector.load %arg5[%c2_25, %c0_26, %c0_27] : memref<3x32x272xf32, #tpu.memory_space<vmem>>, vector<1x32x272xf32>
    %25 = vector.shape_cast %24 : vector<1x32x272xf32> to vector<32x272xf32>
    %cst_28 = arith.constant dense<0.000000e+00> : vector<17x272xf32>
    %26 = tpu.matmul %23, %25, %cst_28 {dimension_numbers = #tpu.dot_dimension_numbers<[1], [0], [0], [1], [0, 0, 1, 1], [], []>} : vector<17x32xf32>, vector<32x272xf32>, vector<17x272xf32> -> vector<17x272xf32>
    %27 = arith.addf %20, %26 : vector<17x272xf32>
    %c0_29 = arith.constant 0 : index
    %c0_30 = arith.constant 0 : index
    %28 = vector.load %arg6[%c0_29, %c0_30] : memref<1x272xf32, #tpu.memory_space<vmem>>, vector<1x272xf32>
    %29 = vector.broadcast %28 : vector<1x272xf32> to vector<17x272xf32>
    %30 = arith.addf %27, %29 : vector<17x272xf32>
    %cst_31 = arith.constant 0.000000e+00 : f32
    %31 = vector.broadcast %cst_31 : f32 to vector<17x272xf32>
    %32 = arith.maximumf %30, %31 : vector<17x272xf32>
    %c0_32 = arith.constant 0 : index
    %c0_33 = arith.constant 0 : index
    %c0_34 = arith.constant 0 : index
    %33 = vector.load %arg7[%c0_32, %c0_33, %c0_34] : memref<3x10x17xf32, #tpu.memory_space<vmem>>, vector<1x10x17xf32>
    %34 = vector.shape_cast %33 : vector<1x10x17xf32> to vector<10x17xf32>
    %cst_35 = arith.constant dense<0.000000e+00> : vector<10x272xf32>
    %35 = tpu.matmul %34, %32, %cst_35 {dimension_numbers = #tpu.dot_dimension_numbers<[1], [0], [0], [1], [0, 0, 1, 1], [], []>} : vector<10x17xf32>, vector<17x272xf32>, vector<10x272xf32> -> vector<10x272xf32>
    %c0_36 = arith.constant 0 : index
    %c0_37 = arith.constant 0 : index
    %c0_38 = arith.constant 0 : index
    %36 = vector.load %arg8[%c0_36, %c0_37, %c0_38] : memref<3x272x320xf32, #tpu.memory_space<vmem>>, vector<1x272x320xf32>
    %37 = vector.shape_cast %36 : vector<1x272x320xf32> to vector<272x320xf32>
    %cst_39 = arith.constant dense<0.000000e+00> : vector<10x320xf32>
    %38 = tpu.matmul %35, %37, %cst_39 {dimension_numbers = #tpu.dot_dimension_numbers<[1], [0], [0], [1], [0, 0, 1, 1], [], []>} : vector<10x272xf32>, vector<272x320xf32>, vector<10x320xf32> -> vector<10x320xf32>
    %c1_40 = arith.constant 1 : index
    %c0_41 = arith.constant 0 : index
    %c0_42 = arith.constant 0 : index
    %39 = vector.load %arg7[%c1_40, %c0_41, %c0_42] : memref<3x10x17xf32, #tpu.memory_space<vmem>>, vector<1x10x17xf32>
    %40 = vector.shape_cast %39 : vector<1x10x17xf32> to vector<10x17xf32>
    %cst_43 = arith.constant dense<0.000000e+00> : vector<10x272xf32>
    %41 = tpu.matmul %40, %32, %cst_43 {dimension_numbers = #tpu.dot_dimension_numbers<[1], [0], [0], [1], [0, 0, 1, 1], [], []>} : vector<10x17xf32>, vector<17x272xf32>, vector<10x272xf32> -> vector<10x272xf32>
    %c1_44 = arith.constant 1 : index
    %c0_45 = arith.constant 0 : index
    %c0_46 = arith.constant 0 : index
    %42 = vector.load %arg8[%c1_44, %c0_45, %c0_46] : memref<3x272x320xf32, #tpu.memory_space<vmem>>, vector<1x272x320xf32>
    %43 = vector.shape_cast %42 : vector<1x272x320xf32> to vector<272x320xf32>
    %cst_47 = arith.constant dense<0.000000e+00> : vector<10x320xf32>
    %44 = tpu.matmul %41, %43, %cst_47 {dimension_numbers = #tpu.dot_dimension_numbers<[1], [0], [0], [1], [0, 0, 1, 1], [], []>} : vector<10x272xf32>, vector<272x320xf32>, vector<10x320xf32> -> vector<10x320xf32>
    %45 = arith.addf %38, %44 : vector<10x320xf32>
    %c2_48 = arith.constant 2 : index
    %c0_49 = arith.constant 0 : index
    %c0_50 = arith.constant 0 : index
    %46 = vector.load %arg7[%c2_48, %c0_49, %c0_50] : memref<3x10x17xf32, #tpu.memory_space<vmem>>, vector<1x10x17xf32>
    %47 = vector.shape_cast %46 : vector<1x10x17xf32> to vector<10x17xf32>
    %cst_51 = arith.constant dense<0.000000e+00> : vector<10x272xf32>
    %48 = tpu.matmul %47, %32, %cst_51 {dimension_numbers = #tpu.dot_dimension_numbers<[1], [0], [0], [1], [0, 0, 1, 1], [], []>} : vector<10x17xf32>, vector<17x272xf32>, vector<10x272xf32> -> vector<10x272xf32>
    %c2_52 = arith.constant 2 : index
    %c0_53 = arith.constant 0 : index
    %c0_54 = arith.constant 0 : index
    %49 = vector.load %arg8[%c2_52, %c0_53, %c0_54] : memref<3x272x320xf32, #tpu.memory_space<vmem>>, vector<1x272x320xf32>
    %50 = vector.shape_cast %49 : vector<1x272x320xf32> to vector<272x320xf32>
    %cst_55 = arith.constant dense<0.000000e+00> : vector<10x320xf32>
    %51 = tpu.matmul %48, %50, %cst_55 {dimension_numbers = #tpu.dot_dimension_numbers<[1], [0], [0], [1], [0, 0, 1, 1], [], []>} : vector<10x272xf32>, vector<272x320xf32>, vector<10x320xf32> -> vector<10x320xf32>
    %52 = arith.addf %45, %51 : vector<10x320xf32>
    %c0_56 = arith.constant 0 : index
    %c0_57 = arith.constant 0 : index
    %53 = vector.load %arg9[%c0_56, %c0_57] : memref<1x320xf32, #tpu.memory_space<vmem>>, vector<1x320xf32>
    %54 = vector.broadcast %53 : vector<1x320xf32> to vector<10x320xf32>
    %55 = arith.addf %52, %54 : vector<10x320xf32>
    %cst_58 = arith.constant 0.000000e+00 : f32
    %56 = vector.broadcast %cst_58 : f32 to vector<10x320xf32>
    %57 = arith.maximumf %55, %56 : vector<10x320xf32>
    %c0_59 = arith.constant 0 : index
    %c0_60 = arith.constant 0 : index
    %58 = vector.load %arg10[%c0_59, %c0_60] : memref<320x32xf32, #tpu.memory_space<vmem>>, vector<320x32xf32>
    %cst_61 = arith.constant dense<0.000000e+00> : vector<10x32xf32>
    %59 = tpu.matmul %57, %58, %cst_61 {dimension_numbers = #tpu.dot_dimension_numbers<[1], [0], [0], [1], [0, 0, 1, 1], [], []>} : vector<10x320xf32>, vector<320x32xf32>, vector<10x32xf32> -> vector<10x32xf32>
    %cst_62 = arith.constant dense<0.000000e+00> : vector<32xf32>
    %60 = vector.multi_reduction <add>, %59, %cst_62 [0] : vector<10x32xf32> to vector<32xf32>
    %61 = vector.shape_cast %60 : vector<32xf32> to vector<1x32xf32>
    %cst_63 = arith.constant 0.00999999977 : f32
    %62 = vector.broadcast %cst_63 : f32 to vector<1x32xf32>
    %63 = arith.mulf %61, %62 : vector<1x32xf32>
    %c0_64 = arith.constant 0 : index
    %c0_65 = arith.constant 0 : index
    %c0_66 = arith.constant 0 : index
    %64 = vector.load %arg11[%c0_64, %c0_65, %c0_66] : memref<1x1x32xf32, #tpu.memory_space<vmem>>, vector<1x1x32xf32>
    %65 = vector.shape_cast %64 : vector<1x1x32xf32> to vector<1x32xf32>
    %66 = vector.shape_cast %63 : vector<1x32xf32> to vector<1x1x32xf32>
    tpu.vector_store %arg11[%c0_64, %c0_65, %c0_66], %66 {strides = array<i32>} : memref<1x1x32xf32, #tpu.memory_space<vmem>>, vector<1x1x32xf32>,
    return
  }
  func.func @transform_0(%arg0: i32) -> (i32, i32, i32) {
    %c0_i32 = arith.constant 0 : i32
    %c0_i32_0 = arith.constant 0 : i32
    %c0_i32_1 = arith.constant 0 : i32
    return %arg0, %c0_i32, %c0_i32_0 : i32, i32, i32
  }
  func.func @transform_1(%arg0: i32) -> (i32, i32) {
    %c0_i32 = arith.constant 0 : i32
    %c0_i32_0 = arith.constant 0 : i32
    %c0_i32_1 = arith.constant 0 : i32
    return %c0_i32, %c0_i32_0 : i32, i32
  }
  func.func @transform_2(%arg0: i32) -> (i32, i32) {
    %c0_i32 = arith.constant 0 : i32
    %c0_i32_0 = arith.constant 0 : i32
    %c0_i32_1 = arith.constant 0 : i32
    return %c0_i32, %c0_i32_0 : i32, i32
  }
  func.func @transform_3(%arg0: i32) -> (i32, i32, i32) {
    %c0_i32 = arith.constant 0 : i32
    %c0_i32_0 = arith.constant 0 : i32
    %c0_i32_1 = arith.constant 0 : i32
    %c0_i32_2 = arith.constant 0 : i32
    return %c0_i32, %c0_i32_0, %c0_i32_1 : i32, i32, i32
  }
  func.func @transform_4(%arg0: i32) -> (i32, i32, i32) {
    %c0_i32 = arith.constant 0 : i32
    %c0_i32_0 = arith.constant 0 : i32
    %c0_i32_1 = arith.constant 0 : i32
    %c0_i32_2 = arith.constant 0 : i32
    return %c0_i32, %c0_i32_0, %c0_i32_1 : i32, i32, i32
  }
  func.func @transform_5(%arg0: i32) -> (i32, i32) {
    %c0_i32 = arith.constant 0 : i32
    %c0_i32_0 = arith.constant 0 : i32
    %c0_i32_1 = arith.constant 0 : i32
    return %c0_i32, %c0_i32_0 : i32, i32
  }
  func.func @transform_6(%arg0: i32) -> (i32, i32, i32) {
    %c0_i32 = arith.constant 0 : i32
    %c0_i32_0 = arith.constant 0 : i32
    %c0_i32_1 = arith.constant 0 : i32
    %c0_i32_2 = arith.constant 0 : i32
    return %c0_i32, %c0_i32_0, %c0_i32_1 : i32, i32, i32
  }
  func.func @transform_7(%arg0: i32) -> (i32, i32, i32) {
    %c0_i32 = arith.constant 0 : i32
    %c0_i32_0 = arith.constant 0 : i32
    %c0_i32_1 = arith.constant 0 : i32
    %c0_i32_2 = arith.constant 0 : i32
    return %c0_i32, %c0_i32_0, %c0_i32_1 : i32, i32, i32
  }
  func.func @transform_8(%arg0: i32) -> (i32, i32) {
    %c0_i32 = arith.constant 0 : i32
    %c0_i32_0 = arith.constant 0 : i32
    %c0_i32_1 = arith.constant 0 : i32
    return %c0_i32, %c0_i32_0 : i32, i32
  }
  func.func @transform_9(%arg0: i32) -> (i32, i32) {
    %c0_i32 = arith.constant 0 : i32
    %c0_i32_0 = arith.constant 0 : i32
    %c0_i32_1 = arith.constant 0 : i32
    return %c0_i32, %c0_i32_0 : i32, i32
  }
  func.func @transform_10(%arg0: i32) -> (i32, i32, i32) {
    %c0_i32 = arith.constant 0 : i32
    %c0_i32_0 = arith.constant 0 : i32
    %c0_i32_1 = arith.constant 0 : i32
    return %arg0, %c0_i32, %c0_i32_0 : i32, i32, i32
  }
}

</mosaic_0001>

<llo_original>
// kernel: tile.13
$region0: #{tile.13}
  #allocation0 [shape = 's32[1]{0}', space=sflag, size = 0x4, scoped, tag = 'scoped memory for tile.13']
  %s0 = inlined_call_operand.vmem [shape: f32[16], index: 0, kind: input, shape index: {}]
  %s1 = inlined_call_operand.vmem [shape: f32[17,16], index: 1, kind: output, shape index: {}]
  // Predicated region
  $region2: #{tile.13} parent=0 // pred_check
    _
  $region3: #{tile.13} parent=0 // pred_check_branch
    %3 = sbr.rel (0) target = $region5
  $region4: #{tile.13} parent=0 // pred_region
    _
  $region5: #{tile.13} parent=0 // pred_fallthru
    _
  %v4 = vld [vmem:[%s0] ss:$0 sm:$0xff]
  %5 = vst [vmem:[%s1] sm:$0xff] %v4
  %s6 = scalar_lea.vmem %s1, 8
  %7 = vst [vmem:[%s6] sm:$0xff] %v4
  %s8 = scalar_lea.vmem %s1, 16
  %9 = vst [vmem:[%s8] sm:$0xff] %v4

// kernel: tile.14
$region0: #{tile.14}
  %s0 = inlined_call_operand.vmem [shape: f32[17,16], index: 0, kind: input, shape index: {}]
  %s1 = inlined_call_operand.vmem [shape: f32[1,272], index: 1, kind: output, shape index: {}]
  $region1: #{tile.14} parent=0
    #allocation0 [shape = 'u8[12288]{0}', space=vmem, size = 0x3000, scoped, tag = 'scoped mem for output reshape']
    %v2 = vld [vmem:[%s0] ss:$8 sm:$0x7]
    %vm3 = vcmask 130048
    %4 = vst.msk [vmem:[#allocation0] ss:$8 sm:$0x7] %vm3, %v2
    %s5 = scalar_lea.vmem %s0, 7
    %s6 = smov 3
    %v7 = vld [vmem:[%s5] ss:$8 sm:%s6]
    %8 = vrot.lane.b32.xlu0 %v7, 112
    %v9 = vpop.permute.xlu0 %8
    %vm10 = vcmask 1048448
    %11 = vst.msk [vmem:[#allocation0] ss:$8 sm:$0x3] %vm10, %v9
    %s12 = scalar_lea.vmem %s0, 6
    %s13 = smov 3
    %v14 = vld [vmem:[%s12] ss:$8 sm:%s13]
    %15 = vrot.lane.b32.xlu0 %v14, 96
    %v16 = vpop.permute.xlu0 %15
    %vm17 = vcmask 917248
    %18 = vst.msk [vmem:[#allocation0] ss:$8 sm:$0x3] %vm17, %v16
    %s19 = scalar_lea.vmem %s0, 5
    %s20 = smov 3
    %v21 = vld [vmem:[%s19] ss:$8 sm:%s20]
    %22 = vrot.lane.b32.xlu0 %v21, 80
    %v23 = vpop.permute.xlu0 %22
    %vm24 = vcmask 786048
    %25 = vst.msk [vmem:[#allocation0] ss:$8 sm:$0x3] %vm24, %v23
    %s26 = scalar_lea.vmem %s0, 4
    %s27 = smov 3
    %v28 = vld [vmem:[%s26] ss:$8 sm:%s27]
    %29 = vrot.lane.b32.xlu0 %v28, 64
    %v30 = vpop.permute.xlu0 %29
    %vm31 = vcmask 654848
    %32 = vst.msk [vmem:[#allocation0] ss:$8 sm:$0x3] %vm31, %v30
    %s33 = scalar_lea.vmem %s0, 3
    %s34 = smov 3
    %v35 = vld [vmem:[%s33] ss:$8 sm:%s34]
    %36 = vrot.lane.b32.xlu0 %v35, 48
    %v37 = vpop.permute.xlu0 %36
    %vm38 = vcmask 523648
    %39 = vst.msk [vmem:[#allocation0] ss:$8 sm:$0x3] %vm38, %v37
    %s40 = scalar_lea.vmem %s0, 2
    %s41 = smov 3
    %v42 = vld [vmem:[%s40] ss:$8 sm:%s41]
    %43 = vrot.lane.b32.xlu0 %v42, 32
    %v44 = vpop.permute.xlu0 %43
    %vm45 = vcmask 392448
    %46 = vst.msk [vmem:[#allocation0] ss:$8 sm:$0x3] %vm45, %v44
    %s47 = scalar_lea.vmem %s0, 1
    %s48 = smov 3
    %v49 = vld [vmem:[%s47] ss:$8 sm:%s48]
    %50 = vrot.lane.b32.xlu0 %v49, 16
    %v51 = vpop.permute.xlu0 %50
    %vm52 = vcmask 261248
    %53 = vst.msk [vmem:[#allocation0] ss:$8 sm:$0x3] %vm52, %v51
    %s55 = sshllo.u32 0, 1
    %v57 = vld [vmem:[#allocation0] sm:%s55]
    %s58 = sshllo.u32 0, 1
    %59 = vst [vmem:[%s1] sm:%s58] %v57
    %s60 = scalar_lea.vmem [#allocation0], 8
    %v61 = vld [vmem:[%s60] sm:%s55]
    %s62 = sshllo.u32 0, 1
    %s63 = scalar_lea.vmem %s1, 1
    %64 = vst [vmem:[%s63] sm:%s62] %v61
    %s65 = scalar_lea.vmem [#allocation0], 16
    %v66 = vld [vmem:[%s65] sm:%s55]
    %s67 = sshllo.u32 0, 1
    %s68 = smul.addr 1, 2
    %s69 = scalar_lea.vmem %s1, %s68
    %70 = vst [vmem:[%s69] sm:%s67] %v66

// kernel: tile.18
$region0: #{tile.18}
  #allocation0 [shape = 's32[1]{0}', space=sflag, size = 0x4, scoped, tag = 'scoped memory for tile.18']
  %s0 = inlined_call_operand.vmem [shape: f32[32], index: 0, kind: input, shape index: {}]
  %s1 = inlined_call_operand.vmem [shape: f32[10,32], index: 1, kind: output, shape index: {}]
  // Predicated region
  $region2: #{tile.18} parent=0 // pred_check
    _
  $region3: #{tile.18} parent=0 // pred_check_branch
    %3 = sbr.rel (0) target = $region5
  $region4: #{tile.18} parent=0 // pred_region
    _
  $region5: #{tile.18} parent=0 // pred_fallthru
    _
  %v4 = vld [vmem:[%s0] ss:$0 sm:$0xff]
  %5 = vst [vmem:[%s1] sm:$0xff] %v4
  %s6 = scalar_lea.vmem %s1, 8
  %7 = vst [vmem:[%s6] sm:$0xff] %v4

// kernel: tile.19
$region0: #{tile.19}
  %s0 = inlined_call_operand.vmem [shape: f32[10,32], index: 0, kind: input, shape index: {}]
  %s1 = inlined_call_operand.vmem [shape: f32[1,320], index: 1, kind: output, shape index: {}]
  $region1: #{tile.19} parent=0
    #allocation0 [shape = 'u8[12288]{0}', space=vmem, size = 0x3000, scoped, tag = 'scoped mem for output reshape']
    %v2 = vld [vmem:[%s0] ss:$4 sm:$0x7]
    %vm3 = vcmask 261120
    %4 = vst.msk [vmem:[#allocation0] ss:$8 sm:$0x7] %vm3, %v2
    %s5 = scalar_lea.vmem %s0, 3
    %s6 = smov 3
    %v7 = vld [vmem:[%s5] ss:$4 sm:%s6]
    %8 = vrot.lane.b32.xlu0 %v7, 96
    %v9 = vpop.permute.xlu0 %8
    %vm10 = vcmask 1048320
    %11 = vst.msk [vmem:[#allocation0] ss:$8 sm:$0x3] %vm10, %v9
    %s12 = scalar_lea.vmem %s0, 2
    %s13 = smov 3
    %v14 = vld [vmem:[%s12] ss:$4 sm:%s13]
    %15 = vrot.lane.b32.xlu0 %v14, 64
    %v16 = vpop.permute.xlu0 %15
    %vm17 = vcmask 785920
    %18 = vst.msk [vmem:[#allocation0] ss:$8 sm:$0x3] %vm17, %v16
    %s19 = scalar_lea.vmem %s0, 1
    %v20 = vld [vmem:[%s19] ss:$4 sm:$0x7]
    %21 = vrot.lane.b32.xlu0 %v20, 32
    %v22 = vpop.permute.xlu0 %21
    %vm23 = vcmask 523520
    %24 = vst.msk [vmem:[#allocation0] ss:$8 sm:$0x7] %vm23, %v22
    %s26 = sshllo.u32 0, 1
    %v28 = vld [vmem:[#allocation0] sm:%s26]
    %s29 = sshllo.u32 0, 1
    %30 = vst [vmem:[%s1] sm:%s29] %v28
    %s31 = scalar_lea.vmem [#allocation0], 8
    %v32 = vld [vmem:[%s31] sm:%s26]
    %s33 = sshllo.u32 0, 1
    %s34 = scalar_lea.vmem %s1, 1
    %35 = vst [vmem:[%s34] sm:%s33] %v32
    %s36 = scalar_lea.vmem [#allocation0], 16
    %v37 = vld [vmem:[%s36] sm:%s26]
    %s38 = sshllo.u32 0, 1
    %s39 = smul.addr 1, 2
    %s40 = scalar_lea.vmem %s1, %s39
    %41 = vst [vmem:[%s40] sm:%s38] %v37

// kernel: gram_block_forward.1
$region0: #{gram_block_forward.1}
  #allocation0 [shape = 'u32[]', space=smem, size = 0x4, offset = 0x4, fixed_abs, tag = 'smem constant byte address 0x4 - core index']
  #allocation1 [shape = 'u32[144,128]{1,0:T(1,128)}', space=vmem, size = 0x12000, scoped, tag = 'internal scratch']
  %s0 = inlined_call_operand.vmem [shape: f32[2,36,324], index: 0, kind: input, shape index: {}]
  %s1 = inlined_call_operand.vmem [shape: f32[32,36], index: 1, kind: input, shape index: {}]
  %s2 = inlined_call_operand.vmem [shape: f32[32,1], index: 2, kind: input, shape index: {}]
  %s3 = inlined_call_operand.vmem [shape: f32[3,17,32], index: 3, kind: input, shape index: {}]
  %s4 = inlined_call_operand.vmem [shape: f32[3,32,272], index: 4, kind: input, shape index: {}]
  %s5 = inlined_call_operand.vmem [shape: f32[1,272], index: 5, kind: input, shape index: {}]
  %s6 = inlined_call_operand.vmem [shape: f32[3,10,17], index: 6, kind: input, shape index: {}]
  %s7 = inlined_call_operand.vmem [shape: f32[3,272,320], index: 7, kind: input, shape index: {}]
  %s8 = inlined_call_operand.vmem [shape: f32[1,320], index: 8, kind: input, shape index: {}]
  %s9 = inlined_call_operand.vmem [shape: f32[320,32], index: 9, kind: input, shape index: {}]
  %s10 = inlined_call_operand.hbm [shape: f32[2,1,32], index: 10, kind: output, shape index: {}]
  %s11 = sld [smem:[#allocation0]]
  $region73: #{gram_block_forward.1} parent=0
    _
  %s13 = ssub.s32 1, %s11
  %s14 = scalar_select 0, %s13, %s11
  $region1: #{gram_block_forward.1} parent=0
    #allocation2 [shape = 'u8[1024]{0}', space=vmem, size = 0x400, scoped, tag = 'output window, operand 0']
    #allocation3 [shape = 's32[2]{0}', space=sflag, size = 0x8, scoped, tag = 'scoped memory for gram_block_forward.1']
    %15 = vsyncpa [#allocation3], 0
    %s16 = scalar_lea.sflag [#allocation3], 1
    %17 = vsyncpa %s16, 0
    loop: start=0, step=1, limit=4
    $region2: #{gram_block_forward.1} parent=1 // loop_pre_header
      _
    $region3: #{gram_block_forward.1} parent=1 // loop_header
      %s19 = sphi 0, %s23
      %p20 = scmp.ge.s32.totalorder %s19, 4
      %s29 = sphi 0, %s31
      %s32 = sphi 0, %s29
      %s33 = sphi 0, %s32
      %s49 = sphi 0, %s33
      %s53 = sphi 0, %s53
      %s55 = sphi 0, %s53
      %s56 = sphi 0, %s55
      %s70 = sphi 0, %s56
      %s74 = sphi 0, %s74
      %s76 = sphi 0, %s74
      %s77 = sphi 0, %s76
      %s91 = sphi 0, %s77
      %s95 = sphi 0, %s95
      %s97 = sphi 0, %s95
      %s98 = sphi 0, %s97
      %s112 = sphi 0, %s98
      %s116 = sphi 0, %s116
      %s118 = sphi 0, %s116
      %s119 = sphi 0, %s118
      %s133 = sphi 0, %s119
      %s137 = sphi 0, %s137
      %s139 = sphi 0, %s137
      %s140 = sphi 0, %s139
      %s154 = sphi 0, %s140
      %s158 = sphi 0, %s158
      %s160 = sphi 0, %s158
      %s161 = sphi 0, %s160
      %s175 = sphi 0, %s161
      %s179 = sphi 0, %s179
      %s181 = sphi 0, %s179
      %s182 = sphi 0, %s181
      %s196 = sphi 0, %s182
      %s200 = sphi 0, %s200
      %s202 = sphi 0, %s200
      %s203 = sphi 0, %s202
      %s217 = sphi 0, %s203
      %s221 = sphi 0, %s221
      %s223 = sphi 0, %s221
      %s224 = sphi 0, %s223
      %s238 = sphi 0, %s224
      %s244 = sphi 0, %s246
      %s247 = sphi 0, %s244
      %s248 = sphi 0, %s247
      %s264 = sphi 0, %s248
    $region4: #{gram_block_forward.1} parent=1 // loop_header_branch
      %22 = sbr.rel (%p20) target = $region8
    $region5: #{gram_block_forward.1} parent=1 // loop_body
      %s24 = ssub.s32 %s19, 1
      %s25 = ssub.s32 %s19, 2
      %s26 = sadd.s32 %s19, 1
      %s27 = ssub.s32 %s19, %s26
      %p28 = scmp.eq.s32.totalorder %s27, 0
      %s30 = sadd.s32 %s29, 1
      %s31 = scalar_select %p28, %s29, %s30
      %p34 = pneg %p28
      %p35 = scmp.eq.s32.totalorder %s19, 1
      %p36 = por %p34, %p35
      %p37 = scmp.ne.s32.totalorder %s29, %s32
      %p38 = scmp.eq.s32.totalorder %s19, 0
      %p39 = por %p37, %p38
      %p40 = scmp.ne.s32.totalorder %s29, %s32
      %p41 = scmp.eq.s32.totalorder %s24, 1
      %p42 = por %p40, %p41
      %p43 = scmp.ne.s32.totalorder %s32, %s33
      %p44 = scmp.eq.s32.totalorder %s24, 0
      %p45 = por %p43, %p44
      %p46 = scmp.ne.s32.totalorder %s32, %s33
      %p47 = scmp.eq.s32.totalorder %s25, 1
      %p48 = por %p46, %p47
      %p50 = scmp.ne.s32.totalorder %s33, %s49
      %p51 = scmp.eq.s32.totalorder %s25, 0
      %p52 = por %p50, %p51
      %s54 = sadd.s32 %s53, 1
      %p57 = scmp.eq.s32.totalorder %s19, 1
      %p58 = scmp.ne.s32.totalorder %s53, %s55
      %p59 = scmp.eq.s32.totalorder %s19, 0
      %p60 = por %p58, %p59
      %p61 = scmp.ne.s32.totalorder %s53, %s55
      %p62 = scmp.eq.s32.totalorder %s24, 1
      %p63 = por %p61, %p62
      %p64 = scmp.ne.s32.totalorder %s55, %s56
      %p65 = scmp.eq.s32.totalorder %s24, 0
      %p66 = por %p64, %p65
      %p67 = scmp.ne.s32.totalorder %s55, %s56
      %p68 = scmp.eq.s32.totalorder %s25, 1
      %p69 = por %p67, %p68
      %p71 = scmp.ne.s32.totalorder %s56, %s70
      %p72 = scmp.eq.s32.totalorder %s25, 0
      %p73 = por %p71, %p72
      %s75 = sadd.s32 %s74, 1
      %p78 = scmp.eq.s32.totalorder %s19, 1
      %p79 = scmp.ne.s32.totalorder %s74, %s76
      %p80 = scmp.eq.s32.totalorder %s19, 0
      %p81 = por %p79, %p80
      %p82 = scmp.ne.s32.totalorder %s74, %s76
      %p83 = scmp.eq.s32.totalorder %s24, 1
      %p84 = por %p82, %p83
      %p85 = scmp.ne.s32.totalorder %s76, %s77
      %p86 = scmp.eq.s32.totalorder %s24, 0
      %p87 = por %p85, %p86
      %p88 = scmp.ne.s32.totalorder %s76, %s77
      %p89 = scmp.eq.s32.totalorder %s25, 1
      %p90 = por %p88, %p89
      %p92 = scmp.ne.s32.totalorder %s77, %s91
      %p93 = scmp.eq.s32.totalorder %s25, 0
      %p94 = por %p92, %p93
      %s96 = sadd.s32 %s95, 1
      %p99 = scmp.eq.s32.totalorder %s19, 1
      %p100 = scmp.ne.s32.totalorder %s95, %s97
      %p101 = scmp.eq.s32.totalorder %s19, 0
      %p102 = por %p100, %p101
      %p103 = scmp.ne.s32.totalorder %s95, %s97
      %p104 = scmp.eq.s32.totalorder %s24, 1
      %p105 = por %p103, %p104
      %p106 = scmp.ne.s32.totalorder %s97, %s98
      %p107 = scmp.eq.s32.totalorder %s24, 0
      %p108 = por %p106, %p107
      %p109 = scmp.ne.s32.totalorder %s97, %s98
      %p110 = scmp.eq.s32.totalorder %s25, 1
      %p111 = por %p109, %p110
      %p113 = scmp.ne.s32.totalorder %s98, %s112
      %p114 = scmp.eq.s32.totalorder %s25, 0
      %p115 = por %p113, %p114
      %s117 = sadd.s32 %s116, 1
      %p120 = scmp.eq.s32.totalorder %s19, 1
      %p121 = scmp.ne.s32.totalorder %s116, %s118
      %p122 = scmp.eq.s32.totalorder %s19, 0
      %p123 = por %p121, %p122
      %p124 = scmp.ne.s32.totalorder %s116, %s118
      %p125 = scmp.eq.s32.totalorder %s24, 1
      %p126 = por %p124, %p125
      %p127 = scmp.ne.s32.totalorder %s118, %s119
      %p128 = scmp.eq.s32.totalorder %s24, 0
      %p129 = por %p127, %p128
      %p130 = scmp.ne.s32.totalorder %s118, %s119
      %p131 = scmp.eq.s32.totalorder %s25, 1
      %p132 = por %p130, %p131
      %p134 = scmp.ne.s32.totalorder %s119, %s133
      %p135 = scmp.eq.s32.totalorder %s25, 0
      %p136 = por %p134, %p135
      %s138 = sadd.s32 %s137, 1
      %p141 = scmp.eq.s32.totalorder %s19, 1
      %p142 = scmp.ne.s32.totalorder %s137, %s139
      %p143 = scmp.eq.s32.totalorder %s19, 0
      %p144 = por %p142, %p143
      %p145 = scmp.ne.s32.totalorder %s137, %s139
      %p146 = scmp.eq.s32.totalorder %s24, 1
      %p147 = por %p145, %p146
      %p148 = scmp.ne.s32.totalorder %s139, %s140
      %p149 = scmp.eq.s32.totalorder %s24, 0
      %p150 = por %p148, %p149
      %p151 = scmp.ne.s32.totalorder %s139, %s140
      %p152 = scmp.eq.s32.totalorder %s25, 1
      %p153 = por %p151, %p152
      %p155 = scmp.ne.s32.totalorder %s140, %s154
      %p156 = scmp.eq.s32.totalorder %s25, 0
      %p157 = por %p155, %p156
      %s159 = sadd.s32 %s158, 1
      %p162 = scmp.eq.s32.totalorder %s19, 1
      %p163 = scmp.ne.s32.totalorder %s158, %s160
      %p164 = scmp.eq.s32.totalorder %s19, 0
      %p165 = por %p163, %p164
      %p166 = scmp.ne.s32.totalorder %s158, %s160
      %p167 = scmp.eq.s32.totalorder %s24, 1
      %p168 = por %p166, %p167
      %p169 = scmp.ne.s32.totalorder %s160, %s161
      %p170 = scmp.eq.s32.totalorder %s24, 0
      %p171 = por %p169, %p170
      %p172 = scmp.ne.s32.totalorder %s160, %s161
      %p173 = scmp.eq.s32.totalorder %s25, 1
      %p174 = por %p172, %p173
      %p176 = scmp.ne.s32.totalorder %s161, %s175
      %p177 = scmp.eq.s32.totalorder %s25, 0
      %p178 = por %p176, %p177
      %s180 = sadd.s32 %s179, 1
      %p183 = scmp.eq.s32.totalorder %s19, 1
      %p184 = scmp.ne.s32.totalorder %s179, %s181
      %p185 = scmp.eq.s32.totalorder %s19, 0
      %p186 = por %p184, %p185
      %p187 = scmp.ne.s32.totalorder %s179, %s181
      %p188 = scmp.eq.s32.totalorder %s24, 1
      %p189 = por %p187, %p188
      %p190 = scmp.ne.s32.totalorder %s181, %s182
      %p191 = scmp.eq.s32.totalorder %s24, 0
      %p192 = por %p190, %p191
      %p193 = scmp.ne.s32.totalorder %s181, %s182
      %p194 = scmp.eq.s32.totalorder %s25, 1
      %p195 = por %p193, %p194
      %p197 = scmp.ne.s32.totalorder %s182, %s196
      %p198 = scmp.eq.s32.totalorder %s25, 0
      %p199 = por %p197, %p198
      %s201 = sadd.s32 %s200, 1
      %p204 = scmp.eq.s32.totalorder %s19, 1
      %p205 = scmp.ne.s32.totalorder %s200, %s202
      %p206 = scmp.eq.s32.totalorder %s19, 0
      %p207 = por %p205, %p206
      %p208 = scmp.ne.s32.totalorder %s200, %s202
      %p209 = scmp.eq.s32.totalorder %s24, 1
      %p210 = por %p208, %p209
      %p211 = scmp.ne.s32.totalorder %s202, %s203
      %p212 = scmp.eq.s32.totalorder %s24, 0
      %p213 = por %p211, %p212
      %p214 = scmp.ne.s32.totalorder %s202, %s203
      %p215 = scmp.eq.s32.totalorder %s25, 1
      %p216 = por %p214, %p215
      %p218 = scmp.ne.s32.totalorder %s203, %s217
      %p219 = scmp.eq.s32.totalorder %s25, 0
      %p220 = por %p218, %p219
      %s222 = sadd.s32 %s221, 1
      %p225 = scmp.eq.s32.totalorder %s19, 1
      %p226 = scmp.ne.s32.totalorder %s221, %s223
      %p227 = scmp.eq.s32.totalorder %s19, 0
      %p228 = por %p226, %p227
      %p229 = scmp.ne.s32.totalorder %s221, %s223
      %p230 = scmp.eq.s32.totalorder %s24, 1
      %p231 = por %p229, %p230
      %p232 = scmp.ne.s32.totalorder %s223, %s224
      %p233 = scmp.eq.s32.totalorder %s24, 0
      %p234 = por %p232, %p233
      %p235 = scmp.ne.s32.totalorder %s223, %s224
      %p236 = scmp.eq.s32.totalorder %s25, 1
      %p237 = por %p235, %p236
      %p239 = scmp.ne.s32.totalorder %s224, %s238
      %p240 = scmp.eq.s32.totalorder %s25, 0
      %p241 = por %p239, %p240
      %s242 = ssub.s32 %s19, %s26
      %p243 = scmp.eq.s32.totalorder %s242, 0
      %s245 = sadd.s32 %s244, 1
      %s246 = scalar_select %p243, %s244, %s245
      %p249 = pneg %p243
      %p250 = scmp.eq.s32.totalorder %s19, 1
      %p251 = por %p249, %p250
      %p252 = scmp.ne.s32.totalorder %s244, %s247
      %p253 = scmp.eq.s32.totalorder %s19, 0
      %p254 = por %p252, %p253
      %p255 = scmp.ne.s32.totalorder %s244, %s247
      %p256 = scmp.eq.s32.totalorder %s24, 1
      %p257 = por %p255, %p256
      %p258 = scmp.ne.s32.totalorder %s247, %s248
      %p259 = scmp.eq.s32.totalorder %s24, 0
      %p260 = por %p258, %p259
      %p261 = scmp.ne.s32.totalorder %s247, %s248
      %p262 = scmp.eq.s32.totalorder %s25, 1
      %p263 = por %p261, %p262
      %p265 = scmp.ne.s32.totalorder %s248, %s264
      %p266 = scmp.eq.s32.totalorder %s25, 0
      %p267 = por %p265, %p266
      %p268 = scmp.le.s32.totalorder 1, %s19
      %p269 = scmp.lt.s32.totalorder %s19, 3
      %p270 = pnand %p268, %p269
      %p271 = pneg %p270
      // Predicated region
      $region9: #{gram_block_forward.1} parent=5 // pred_check
        _
      $region10: #{gram_block_forward.1} parent=5 // pred_check_branch
        %273 = sbr.rel (%p270) target = $region12
      $region11: #{gram_block_forward.1} parent=5 // pred_region
        %s274 = ssub.s32 %s19, 1
        // Predicated region
        $region13: #{gram_block_forward.1} parent=11 // pred_check
          %p275 = pneg %p66
        $region14: #{gram_block_forward.1} parent=11 // pred_check_branch
          %277 = sbr.rel (%p275) target = $region16
        $region15: #{gram_block_forward.1} parent=11 // pred_region
          _
        $region16: #{gram_block_forward.1} parent=11 // pred_fallthru
          _
        // Predicated region
        $region17: #{gram_block_forward.1} parent=11 // pred_check
          %p278 = pneg %p87
        $region18: #{gram_block_forward.1} parent=11 // pred_check_branch
          %280 = sbr.rel (%p278) target = $region20
        $region19: #{gram_block_forward.1} parent=11 // pred_region
          _
        $region20: #{gram_block_forward.1} parent=11 // pred_fallthru
          _
        // Predicated region
        $region21: #{gram_block_forward.1} parent=11 // pred_check
          %p281 = pneg %p108
        $region22: #{gram_block_forward.1} parent=11 // pred_check_branch
          %283 = sbr.rel (%p281) target = $region24
        $region23: #{gram_block_forward.1} parent=11 // pred_region
          _
        $region24: #{gram_block_forward.1} parent=11 // pred_fallthru
          _
        // Predicated region
        $region25: #{gram_block_forward.1} parent=11 // pred_check
          %p284 = pneg %p129
        $region26: #{gram_block_forward.1} parent=11 // pred_check_branch
          %286 = sbr.rel (%p284) target = $region28
        $region27: #{gram_block_forward.1} parent=11 // pred_region
          _
        $region28: #{gram_block_forward.1} parent=11 // pred_fallthru
          _
        // Predicated region
        $region29: #{gram_block_forward.1} parent=11 // pred_check
          %p287 = pneg %p150
        $region30: #{gram_block_forward.1} parent=11 // pred_check_branch
          %289 = sbr.rel (%p287) target = $region32
        $region31: #{gram_block_forward.1} parent=11 // pred_region
          _
        $region32: #{gram_block_forward.1} parent=11 // pred_fallthru
          _
        // Predicated region
        $region33: #{gram_block_forward.1} parent=11 // pred_check
          %p290 = pneg %p171
        $region34: #{gram_block_forward.1} parent=11 // pred_check_branch
          %292 = sbr.rel (%p290) target = $region36
        $region35: #{gram_block_forward.1} parent=11 // pred_region
          _
        $region36: #{gram_block_forward.1} parent=11 // pred_fallthru
          _
        // Predicated region
        $region37: #{gram_block_forward.1} parent=11 // pred_check
          %p293 = pneg %p192
        $region38: #{gram_block_forward.1} parent=11 // pred_check_branch
          %295 = sbr.rel (%p293) target = $region40
        $region39: #{gram_block_forward.1} parent=11 // pred_region
          _
        $region40: #{gram_block_forward.1} parent=11 // pred_fallthru
          _
        // Predicated region
        $region41: #{gram_block_forward.1} parent=11 // pred_check
          %p296 = pneg %p213
        $region42: #{gram_block_forward.1} parent=11 // pred_check_branch
          %298 = sbr.rel (%p296) target = $region44
        $region43: #{gram_block_forward.1} parent=11 // pred_region
          _
        $region44: #{gram_block_forward.1} parent=11 // pred_fallthru
          _
        // Predicated region
        $region45: #{gram_block_forward.1} parent=11 // pred_check
          %p299 = pneg %p234
        $region46: #{gram_block_forward.1} parent=11 // pred_check_branch
          %301 = sbr.rel (%p299) target = $region48
        $region47: #{gram_block_forward.1} parent=11 // pred_region
          _
        $region48: #{gram_block_forward.1} parent=11 // pred_fallthru
          _
      $region12: #{gram_block_forward.1} parent=5 // pred_fallthru
        _
      %p302 = scmp.lt.s32.totalorder %s19, 2
      // Predicated region
      $region49: #{gram_block_forward.1} parent=5 // pred_check
        %p303 = pneg %p302
      $region50: #{gram_block_forward.1} parent=5 // pred_check_branch
        %305 = sbr.rel (%p303) target = $region52
      $region51: #{gram_block_forward.1} parent=5 // pred_region
        // Predicated region
        $region53: #{gram_block_forward.1} parent=51 // pred_check
          %p306 = pneg %p39
        $region54: #{gram_block_forward.1} parent=51 // pred_check_branch
          %308 = sbr.rel (%p306) target = $region56
        $region55: #{gram_block_forward.1} parent=51 // pred_region
          %p309 = scmp.lt.s32.totalorder %s19, 1
          %s310 = scalar_select %p309, %s19, 1
          %s311 = smul.addr %s310, 15
          %s312 = smul.addr %s311, 8
          %s313 = scalar_lea.vmem %s0, %s312
        $region56: #{gram_block_forward.1} parent=51 // pred_fallthru
          _
      $region52: #{gram_block_forward.1} parent=5 // pred_fallthru
        _
      %p314 = scmp.le.s32.totalorder 1, %s19
      %p315 = scmp.lt.s32.totalorder %s19, 3
      %p316 = pnand %p314, %p315
      %p317 = pneg %p316
      // Predicated region
      $region57: #{gram_block_forward.1} parent=5 // pred_check
        _
      $region58: #{gram_block_forward.1} parent=5 // pred_check_branch
        %319 = sbr.rel (%p316) target = $region60
      $region59: #{gram_block_forward.1} parent=5 // pred_region
        %s320 = ssub.s32 %s19, 1
        %p321 = scmp.lt.s32.totalorder %s24, 1
        %s322 = scalar_select %p321, %s24, 1
        %s323 = smul.addr %s322, 15
        %s324 = smul.addr %s323, 8
        %s325 = scalar_lea.vmem %s0, %s324
        %p326 = pneg %p45
        %p327 = pneg %p42
        %p328 = pneg %p66
        %p329 = pneg %p63
        %p330 = pneg %p87
        %p331 = pneg %p84
        %p332 = pneg %p108
        %p333 = pneg %p105
        %p334 = pneg %p129
        %p335 = pneg %p126
        %p336 = pneg %p150
        %p337 = pneg %p147
        %p338 = pneg %p171
        %p339 = pneg %p168
        %p340 = pneg %p192
        %p341 = pneg %p189
        %p342 = pneg %p213
        %p343 = pneg %p210
        %p344 = pneg %p234
        %p345 = pneg %p231
        %p346 = pneg %p260
        %p347 = pneg %p257
        %s348 = sand.u32 %s247, 1
        %s349 = scalar_lea.sflag [#allocation3], %s348
        %s350 = sand.u32 %s247, 1
        %s351 = scalar_lea.vmem [#allocation2], %s350
        %p352 = scmp.lt.s32.totalorder %s24, 1
        %s353 = scalar_select %p352, %s24, 1
        %s354 = smul.addr %s353, 15
        %s355 = smul.addr %s354, 8
        %s356 = scalar_lea.vmem %s0, %s355
        %v357 = vld [vmem:[%s1] sm:$0xff]
        %v358 = vld [vmem:[%s1 + $0x8] sm:$0xff]
        %v359 = vld [vmem:[%s1 + $0x10] sm:$0xff]
        %v360 = vld [vmem:[%s1 + $0x18] sm:$0xff]
        %v361 = vld [vmem:[%s356] sm:$0xff]
        %v362 = vld [vmem:[%s356 + $0x8] sm:$0xff]
        %v363 = vld [vmem:[%s356 + $0x10] sm:$0xff]
        %v364 = vld [vmem:[%s356 + $0x18] sm:$0xff]
        %v365 = vld [vmem:[%s356 + $0x20] sm:$0xff]
        %v366 = vld [vmem:[%s356 + $0x28] sm:$0xff]
        %v367 = vld [vmem:[%s356 + $0x30] sm:$0xff]
        %v368 = vld [vmem:[%s356 + $0x38] sm:$0xff]
        %v369 = vld [vmem:[%s356 + $0x40] sm:$0xff]
        %v370 = vld [vmem:[%s356 + $0x48] sm:$0xff]
        %v371 = vld [vmem:[%s356 + $0x50] sm:$0xff]
        %v372 = vld [vmem:[%s356 + $0x58] sm:$0xff]
        %v373 = vld [vmem:[%s356 + $0x60] sm:$0xf]
        %v374 = vld [vmem:[%s356 + $0x68] sm:$0xf]
        %v375 = vld [vmem:[%s356 + $0x70] sm:$0xf]
        %v376 = vld [vmem:[%s2] sm:$0xff]
        %v377 = vld [vmem:[%s2 + $0x8] sm:$0xff]
        %v378 = vld [vmem:[%s2 + $0x10] sm:$0xff]
        %v379 = vld [vmem:[%s2 + $0x18] sm:$0xff]
        %381 = vset.pattern.permute.xlu0 0
        %382 = vperm.xlu0 %381, %v376
        %v383 = vpop.permute.xlu0 %382
        %386 = vset.pattern.permute.xlu0 0
        %387 = vperm.xlu0 %386, %v377
        %v388 = vpop.permute.xlu0 %387
        %391 = vset.pattern.permute.xlu0 0
        %392 = vperm.xlu0 %391, %v378
        %v393 = vpop.permute.xlu0 %392
        %396 = vset.pattern.permute.xlu0 0
        %397 = vperm.xlu0 %396, %v379
        %v398 = vpop.permute.xlu0 %397
        %vm400 = vcmask 293888
        %v402 = vsel %vm400, %v357, 0
        %v405 = vsel %vm400, %v358, 0
        %v408 = vsel %vm400, %v359, 0
        %v411 = vsel %vm400, %v360, 0
        %vm413 = vcmask 1043456
        %v415 = vsel %vm413, %v373, 0
        %v418 = vsel %vm413, %v374, 0
        %v421 = vsel %vm413, %v375, 0
        %423 = vmatprep.subr.mxu0 %v362
        %424 = vmatpush1.msra.mxu0 %v361
        %425 = vmatprep.subr.mxu0 %v365
        %426 = vmatpush1.msra.mxu0 %v364
        %427 = vmatprep.subr.mxu0 %v368
        %428 = vmatpush1.msra.mxu0 %v367
        %429 = vmatprep.subr.mxu0 %v371
        %430 = vmatpush1.msra.mxu0 %v370
        %431 = vmatprep.subr.mxu0 %v418
        %432 = vmatpush1.msra.mxu0 %v415
        %433 = vmatprep.subr.mxu0 0.0
        %434 = vmatpush1.msra.mxu0 0.0
        %435 = vmatprep.subr.mxu0 0.0
        %436 = vmatpush1.msra.mxu0 0.0
        %437 = vmatprep.subr.mxu0 0.0
        %438 = vmatpush1.msra.mxu0 0.0
        %439 = vmatprep.subr.mxu0 0.0
        %440 = vmatpush1.msra.mxu0 0.0
        %441 = vmatprep.subr.mxu0 0.0
        %442 = vmatpush1.msra.mxu0 0.0
        %443 = vmatprep.subr.mxu0 0.0
        %444 = vmatpush1.msra.mxu0 0.0
        %445 = vmatprep.subr.mxu0 0.0
        %446 = vmatpush1.msra.mxu0 0.0
        %447 = vmatprep.subr.mxu0 0.0
        %448 = vmatpush1.msra.mxu0 0.0
        %449 = vmatprep.subr.mxu0 0.0
        %450 = vmatpush1.msra.mxu0 0.0
        %451 = vmatprep.subr.mxu0 0.0
        %452 = vmatpush1.msra.mxu0 0.0
        %453 = vmatprep.subr.mxu0 0.0
        %454 = vmatpush1.msra.mxu0 0.0
        %455 = vmatprep.subr.mxu0 0.0
        %456 = vmatpush1.msra.mxu0 0.0
        %457 = vmatprep.subr.mxu0 0.0
        %458 = vmatpush1.msra.mxu0 0.0
        %459 = vmatprep.subr.mxu0 0.0
        %460 = vmatpush1.msra.mxu0 0.0
        %461 = vmatprep.subr.mxu0 0.0
        %462 = vmatpush1.msra.mxu0 0.0
        %463 = vmatprep.subr.mxu0 0.0
        %464 = vmatpush1.msra.mxu0 0.0
        %465 = vmatprep.subr.mxu0 0.0
        %466 = vmatpush1.msra.mxu0 0.0
        %467 = vmatprep.subr.mxu0 0.0
        %468 = vmatpush1.msra.mxu0 0.0
        %469 = vmatprep.subr.mxu0 0.0
        %470 = vmatpush1.msra.mxu0 0.0
        %471 = vmatprep.subr.mxu0 0.0
        %472 = vmatpush1.msra.mxu0 0.0
        %473 = vmatprep.subr.mxu0 0.0
        %474 = vmatpush1.msra.mxu0 0.0
        %475 = vmatprep.subr.mxu0 0.0
        %476 = vmatpush1.msra.mxu0 0.0
        %477 = vmatprep.subr.mxu0 0.0
        %478 = vmatpush1.msra.mxu0 0.0
        %479 = vmatprep.subr.mxu0 0.0
        %480 = vmatpush1.msra.mxu0 0.0
        %481 = vmatprep.subr.mxu0 0.0
        %482 = vmatpush1.msra.mxu0 0.0
        %483 = vmatprep.subr.mxu0 0.0
        %484 = vmatpush1.msra.mxu0 0.0
        %485 = vmatprep.subr.mxu0 0.0
        %486 = vmatpush1.msra.mxu0 0.0
        %487 = vmatprep.mubr.f32.mxu0 0.0
        %488 = vmatmul.mubr.f32.gmra.mrb[0].mxu0 %v402
        %v489 = vpop.f32.mrb[0].mxu0
        %v490 = vadd.f32 %v383, %v489
        %v491 = vpop.f32.mrb[0].mxu0
        %v492 = vadd.f32 %v383, %v491
        %493 = vmatprep.mubr.f32.mxu0 0.0
        %494 = vmatmul.mubr.f32.gmra.mrb[0].mxu0 %v405
        %v495 = vpop.f32.mrb[0].mxu0
        %v496 = vadd.f32 %v388, %v495
        %v497 = vpop.f32.mrb[0].mxu0
        %v498 = vadd.f32 %v388, %v497
        %499 = vmatprep.mubr.f32.mxu0 0.0
        %500 = vmatmul.mubr.f32.gmra.mrb[0].mxu0 %v408
        %v501 = vpop.f32.mrb[0].mxu0
        %v502 = vadd.f32 %v393, %v501
        %v503 = vpop.f32.mrb[0].mxu0
        %v504 = vadd.f32 %v393, %v503
        %505 = vmatprep.mubr.f32.mxu0 0.0
        %506 = vmatmul.mubr.f32.gmra.mrb[0].mxu0 %v411
        %v507 = vpop.f32.mrb[0].mxu0
        %v508 = vadd.f32 %v398, %v507
        %v509 = vpop.f32.mrb[0].mxu0
        %v510 = vadd.f32 %v398, %v509
        %511 = vdwg.mxu0
        %512 = vmatprep.subr.mxu0 0.0
        %513 = vmatpush1.msra.mxu0 %v363
        %514 = vmatprep.subr.mxu0 0.0
        %515 = vmatpush1.msra.mxu0 %v366
        %516 = vmatprep.subr.mxu0 0.0
        %517 = vmatpush1.msra.mxu0 %v369
        %518 = vmatprep.subr.mxu0 0.0
        %519 = vmatpush1.msra.mxu0 %v372
        %520 = vmatprep.subr.mxu0 0.0
        %521 = vmatpush1.msra.mxu0 %v421
        %522 = vmatprep.subr.mxu0 0.0
        %523 = vmatpush1.msra.mxu0 0.0
        %524 = vmatprep.subr.mxu0 0.0
        %525 = vmatpush1.msra.mxu0 0.0
        %526 = vmatprep.subr.mxu0 0.0
        %527 = vmatpush1.msra.mxu0 0.0
        %528 = vmatprep.subr.mxu0 0.0
        %529 = vmatpush1.msra.mxu0 0.0
        %530 = vmatprep.subr.mxu0 0.0
        %531 = vmatpush1.msra.mxu0 0.0
        %532 = vmatprep.subr.mxu0 0.0
        %533 = vmatpush1.msra.mxu0 0.0
        %534 = vmatprep.subr.mxu0 0.0
        %535 = vmatpush1.msra.mxu0 0.0
        %536 = vmatprep.subr.mxu0 0.0
        %537 = vmatpush1.msra.mxu0 0.0
        %538 = vmatprep.subr.mxu0 0.0
        %539 = vmatpush1.msra.mxu0 0.0
        %540 = vmatprep.subr.mxu0 0.0
        %541 = vmatpush1.msra.mxu0 0.0
        %542 = vmatprep.subr.mxu0 0.0
        %543 = vmatpush1.msra.mxu0 0.0
        %544 = vmatprep.subr.mxu0 0.0
        %545 = vmatpush1.msra.mxu0 0.0
        %546 = vmatprep.subr.mxu0 0.0
        %547 = vmatpush1.msra.mxu0 0.0
        %548 = vmatprep.subr.mxu0 0.0
        %549 = vmatpush1.msra.mxu0 0.0
        %550 = vmatprep.subr.mxu0 0.0
        %551 = vmatpush1.msra.mxu0 0.0
        %552 = vmatprep.subr.mxu0 0.0
        %553 = vmatpush1.msra.mxu0 0.0
        %554 = vmatprep.subr.mxu0 0.0
        %555 = vmatpush1.msra.mxu0 0.0
        %556 = vmatprep.subr.mxu0 0.0
        %557 = vmatpush1.msra.mxu0 0.0
        %558 = vmatprep.subr.mxu0 0.0
        %559 = vmatpush1.msra.mxu0 0.0
        %560 = vmatprep.subr.mxu0 0.0
        %561 = vmatpush1.msra.mxu0 0.0
        %562 = vmatprep.subr.mxu0 0.0
        %563 = vmatpush1.msra.mxu0 0.0
        %564 = vmatprep.subr.mxu0 0.0
        %565 = vmatpush1.msra.mxu0 0.0
        %566 = vmatprep.subr.mxu0 0.0
        %567 = vmatpush1.msra.mxu0 0.0
        %568 = vmatprep.subr.mxu0 0.0
        %569 = vmatpush1.msra.mxu0 0.0
        %570 = vmatprep.subr.mxu0 0.0
        %571 = vmatpush1.msra.mxu0 0.0
        %572 = vmatprep.subr.mxu0 0.0
        %573 = vmatpush1.msra.mxu0 0.0
        %574 = vmatprep.subr.mxu0 0.0
        %575 = vmatpush1.msra.mxu0 0.0
        %576 = vmatprep.mubr.f32.mxu0 0.0
        %577 = vmatmul.mubr.f32.gmra.mrb[0].mxu0 %v402
        %v578 = vpop.f32.mrb[0].mxu0
        %v579 = vadd.f32 %v383, %v578
        %v580 = vpop.f32.mrb[0].mxu0
        %581 = vmatprep.mubr.f32.mxu0 0.0
        %582 = vmatmul.mubr.f32.gmra.mrb[0].mxu0 %v405
        %v583 = vpop.f32.mrb[0].mxu0
        %v584 = vadd.f32 %v388, %v583
        %v585 = vpop.f32.mrb[0].mxu0
        %586 = vmatprep.mubr.f32.mxu0 0.0
        %587 = vmatmul.mubr.f32.gmra.mrb[0].mxu0 %v408
        %v588 = vpop.f32.mrb[0].mxu0
        %v589 = vadd.f32 %v393, %v588
        %v590 = vpop.f32.mrb[0].mxu0
        %591 = vmatprep.mubr.f32.mxu0 0.0
        %592 = vmatmul.mubr.f32.gmra.mrb[0].mxu0 %v411
        %v593 = vpop.f32.mrb[0].mxu0
        %v594 = vadd.f32 %v398, %v593
        %v595 = vpop.f32.mrb[0].mxu0
        %596 = vdwg.mxu0
        %vm597 = vcmask 556032
        %v599 = vsel %vm597, %v579, 0
        %v602 = vsel %vm597, %v584, 0
        %v605 = vsel %vm597, %v589, 0
        %v608 = vsel %vm597, %v594, 0
        %610 = vmatprep.subr.mxu0 %v492
        %611 = vmatpush1.xpose.msra.mxu0 %v490
        %612 = vmatprep.subr.mxu0 %v498
        %613 = vmatpush1.xpose.msra.mxu0 %v496
        %614 = vmatprep.subr.mxu0 %v504
        %615 = vmatpush1.xpose.msra.mxu0 %v502
        %616 = vmatprep.subr.mxu0 %v510
        %617 = vmatpush1.xpose.msra.mxu0 %v508
        %618 = vmatprep.subr.mxu0 0.0
        %619 = vmatpush1.xpose.msra.mxu0 0.0
        %620 = vmatprep.subr.mxu0 0.0
        %621 = vmatpush1.xpose.msra.mxu0 0.0
        %622 = vmatprep.subr.mxu0 0.0
        %623 = vmatpush1.xpose.msra.mxu0 0.0
        %624 = vmatprep.subr.mxu0 0.0
        %625 = vmatpush1.xpose.msra.mxu0 0.0
        %626 = vmatprep.subr.mxu0 0.0
        %627 = vmatpush1.xpose.msra.mxu0 0.0
        %628 = vmatprep.subr.mxu0 0.0
        %629 = vmatpush1.xpose.msra.mxu0 0.0
        %630 = vmatprep.subr.mxu0 0.0
        %631 = vmatpush1.xpose.msra.mxu0 0.0
        %632 = vmatprep.subr.mxu0 0.0
        %633 = vmatpush1.xpose.msra.mxu0 0.0
        %634 = vmatprep.subr.mxu0 0.0
        %635 = vmatpush1.xpose.msra.mxu0 0.0
        %636 = vmatprep.subr.mxu0 0.0
        %637 = vmatpush1.xpose.msra.mxu0 0.0
        %638 = vmatprep.subr.mxu0 0.0
        %639 = vmatpush1.xpose.msra.mxu0 0.0
        %640 = vmatprep.subr.mxu0 0.0
        %641 = vmatpush1.xpose.msra.mxu0 0.0
        %642 = vmatprep.subr.mxu0 0.0
        %643 = vmatpush1.xpose.msra.mxu0 0.0
        %644 = vmatprep.subr.mxu0 0.0
        %645 = vmatpush1.xpose.msra.mxu0 0.0
        %646 = vmatprep.subr.mxu0 0.0
        %647 = vmatpush1.xpose.msra.mxu0 0.0
        %648 = vmatprep.subr.mxu0 0.0
        %649 = vmatpush1.xpose.msra.mxu0 0.0
        %650 = vmatprep.subr.mxu0 0.0
        %651 = vmatpush1.xpose.msra.mxu0 0.0
        %652 = vmatprep.subr.mxu0 0.0
        %653 = vmatpush1.xpose.msra.mxu0 0.0
        %654 = vmatprep.subr.mxu0 0.0
        %655 = vmatpush1.xpose.msra.mxu0 0.0
        %656 = vmatprep.subr.mxu0 0.0
        %657 = vmatpush1.xpose.msra.mxu0 0.0
        %658 = vmatprep.subr.mxu0 0.0
        %659 = vmatpush1.xpose.msra.mxu0 0.0
        %660 = vmatprep.subr.mxu0 0.0
        %661 = vmatpush1.xpose.msra.mxu0 0.0
        %662 = vmatprep.subr.mxu0 0.0
        %663 = vmatpush1.xpose.msra.mxu0 0.0
        %664 = vmatprep.subr.mxu0 0.0
        %665 = vmatpush1.xpose.msra.mxu0 0.0
        %666 = vmatprep.subr.mxu0 0.0
        %667 = vmatpush1.xpose.msra.mxu0 0.0
        %668 = vmatprep.subr.mxu0 0.0
        %669 = vmatpush1.xpose.msra.mxu0 0.0
        %670 = vmatprep.subr.mxu0 0.0
        %671 = vmatpush1.xpose.msra.mxu0 0.0
        %672 = vmatprep.subr.mxu0 0.0
        %673 = vmatpush1.xpose.msra.mxu0 0.0
        %674 = vmatprep.mubr.f32.mxu0 %v492
        %675 = vmatmul.mubr.f32.gmra.mrb[0].mxu0 %v490
        %v676 = vpop.f32.mrb[0].mxu0
        %v677 = vadd.f32 0.0, %v676
        %v678 = vpop.f32.mrb[0].mxu0
        %679 = vmatprep.mubr.f32.mxu0 %v498
        %680 = vmatmul.mubr.f32.gmra.mrb[0].mxu0 %v496
        %v681 = vpop.f32.mrb[0].mxu0
        %v682 = vadd.f32 0.0, %v681
        %v683 = vpop.f32.mrb[0].mxu0
        %684 = vmatprep.mubr.f32.mxu0 %v504
        %685 = vmatmul.mubr.f32.gmra.mrb[0].mxu0 %v502
        %v686 = vpop.f32.mrb[0].mxu0
        %v687 = vadd.f32 0.0, %v686
        %v688 = vpop.f32.mrb[0].mxu0
        %689 = vmatprep.mubr.f32.mxu0 %v510
        %690 = vmatmul.mubr.f32.gmra.mrb[0].mxu0 %v508
        %v691 = vpop.f32.mrb[0].mxu0
        %v692 = vadd.f32 0.0, %v691
        %v693 = vpop.f32.mrb[0].mxu0
        %694 = vdwg.mxu0
        %695 = vmatprep.subr.mxu0 0.0
        %696 = vmatpush1.xpose.msra.mxu0 %v599
        %697 = vmatprep.subr.mxu0 0.0
        %698 = vmatpush1.xpose.msra.mxu0 %v602
        %699 = vmatprep.subr.mxu0 0.0
        %700 = vmatpush1.xpose.msra.mxu0 %v605
        %701 = vmatprep.subr.mxu0 0.0
        %702 = vmatpush1.xpose.msra.mxu0 %v608
        %703 = vmatprep.subr.mxu0 0.0
        %704 = vmatpush1.xpose.msra.mxu0 0.0
        %705 = vmatprep.subr.mxu0 0.0
        %706 = vmatpush1.xpose.msra.mxu0 0.0
        %707 = vmatprep.subr.mxu0 0.0
        %708 = vmatpush1.xpose.msra.mxu0 0.0
        %709 = vmatprep.subr.mxu0 0.0
        %710 = vmatpush1.xpose.msra.mxu0 0.0
        %711 = vmatprep.subr.mxu0 0.0
        %712 = vmatpush1.xpose.msra.mxu0 0.0
        %713 = vmatprep.subr.mxu0 0.0
        %714 = vmatpush1.xpose.msra.mxu0 0.0
        %715 = vmatprep.subr.mxu0 0.0
        %716 = vmatpush1.xpose.msra.mxu0 0.0
        %717 = vmatprep.subr.mxu0 0.0
        %718 = vmatpush1.xpose.msra.mxu0 0.0
        %719 = vmatprep.subr.mxu0 0.0
        %720 = vmatpush1.xpose.msra.mxu0 0.0
        %721 = vmatprep.subr.mxu0 0.0
        %722 = vmatpush1.xpose.msra.mxu0 0.0
        %723 = vmatprep.subr.mxu0 0.0
        %724 = vmatpush1.xpose.msra.mxu0 0.0
        %725 = vmatprep.subr.mxu0 0.0
        %726 = vmatpush1.xpose.msra.mxu0 0.0
        %727 = vmatprep.subr.mxu0 0.0
        %728 = vmatpush1.xpose.msra.mxu0 0.0
        %729 = vmatprep.subr.mxu0 0.0
        %730 = vmatpush1.xpose.msra.mxu0 0.0
        %731 = vmatprep.subr.mxu0 0.0
        %732 = vmatpush1.xpose.msra.mxu0 0.0
        %733 = vmatprep.subr.mxu0 0.0
        %734 = vmatpush1.xpose.msra.mxu0 0.0
        %735 = vmatprep.subr.mxu0 0.0
        %736 = vmatpush1.xpose.msra.mxu0 0.0
        %737 = vmatprep.subr.mxu0 0.0
        %738 = vmatpush1.xpose.msra.mxu0 0.0
        %739 = vmatprep.subr.mxu0 0.0
        %740 = vmatpush1.xpose.msra.mxu0 0.0
        %741 = vmatprep.subr.mxu0 0.0
        %742 = vmatpush1.xpose.msra.mxu0 0.0
        %743 = vmatprep.subr.mxu0 0.0
        %744 = vmatpush1.xpose.msra.mxu0 0.0
        %745 = vmatprep.subr.mxu0 0.0
        %746 = vmatpush1.xpose.msra.mxu0 0.0
        %747 = vmatprep.subr.mxu0 0.0
        %748 = vmatpush1.xpose.msra.mxu0 0.0
        %749 = vmatprep.subr.mxu0 0.0
        %750 = vmatpush1.xpose.msra.mxu0 0.0
        %751 = vmatprep.subr.mxu0 0.0
        %752 = vmatpush1.xpose.msra.mxu0 0.0
        %753 = vmatprep.subr.mxu0 0.0
        %754 = vmatpush1.xpose.msra.mxu0 0.0
        %755 = vmatprep.subr.mxu0 0.0
        %756 = vmatpush1.xpose.msra.mxu0 0.0
        %757 = vmatprep.subr.mxu0 0.0
        %758 = vmatpush1.xpose.msra.mxu0 0.0
        %759 = vmatprep.mubr.f32.mxu0 0.0
        %760 = vmatmul.mubr.f32.gmra.mrb[0].mxu0 %v599
        %v761 = vpop.f32.mrb[0].mxu0
        %v762 = vadd.f32 %v677, %v761
        %v763 = vpop.f32.mrb[0].mxu0
        %764 = vmatprep.mubr.f32.mxu0 0.0
        %765 = vmatmul.mubr.f32.gmra.mrb[0].mxu0 %v602
        %v766 = vpop.f32.mrb[0].mxu0
        %v767 = vadd.f32 %v682, %v766
        %v768 = vpop.f32.mrb[0].mxu0
        %769 = vmatprep.mubr.f32.mxu0 0.0
        %770 = vmatmul.mubr.f32.gmra.mrb[0].mxu0 %v605
        %v771 = vpop.f32.mrb[0].mxu0
        %v772 = vadd.f32 %v687, %v771
        %v773 = vpop.f32.mrb[0].mxu0
        %774 = vmatprep.mubr.f32.mxu0 0.0
        %775 = vmatmul.mubr.f32.gmra.mrb[0].mxu0 %v608
        %v776 = vpop.f32.mrb[0].mxu0
        %v777 = vadd.f32 %v692, %v776
        %v778 = vpop.f32.mrb[0].mxu0
        %779 = vdwg.mxu0
        %v780 = vld [vmem:[%s3] sm:$0xff]
        %v781 = vld [vmem:[%s3 + $0x8] sm:$0xff]
        %v782 = vld [vmem:[%s3 + $0x10] sm:$0x1]
        %vm783 = vcmask 261120
        %v785 = vsel %vm783, %v780, 0
        %v788 = vsel %vm783, %v781, 0
        %v791 = vsel %vm783, %v782, 0
        %793 = vmatprep.subr.mxu0 0.0
        %794 = vmatpush1.msra.mxu0 %v762
        %795 = vmatprep.subr.mxu0 0.0
        %796 = vmatpush1.msra.mxu0 %v767
        %797 = vmatprep.subr.mxu0 0.0
        %798 = vmatpush1.msra.mxu0 %v772
        %799 = vmatprep.subr.mxu0 0.0
        %800 = vmatpush1.msra.mxu0 %v777
        %801 = vmatprep.subr.mxu0 0.0
        %802 = vmatpush1.msra.mxu0 0.0
        %803 = vmatprep.subr.mxu0 0.0
        %804 = vmatpush1.msra.mxu0 0.0
        %805 = vmatprep.subr.mxu0 0.0
        %806 = vmatpush1.msra.mxu0 0.0
        %807 = vmatprep.subr.mxu0 0.0
        %808 = vmatpush1.msra.mxu0 0.0
        %809 = vmatprep.subr.mxu0 0.0
        %810 = vmatpush1.msra.mxu0 0.0
        %811 = vmatprep.subr.mxu0 0.0
        %812 = vmatpush1.msra.mxu0 0.0
        %813 = vmatprep.subr.mxu0 0.0
        %814 = vmatpush1.msra.mxu0 0.0
        %815 = vmatprep.subr.mxu0 0.0
        %816 = vmatpush1.msra.mxu0 0.0
        %817 = vmatprep.subr.mxu0 0.0
        %818 = vmatpush1.msra.mxu0 0.0
        %819 = vmatprep.subr.mxu0 0.0
        %820 = vmatpush1.msra.mxu0 0.0
        %821 = vmatprep.subr.mxu0 0.0
        %822 = vmatpush1.msra.mxu0 0.0
        %823 = vmatprep.subr.mxu0 0.0
        %824 = vmatpush1.msra.mxu0 0.0
        %825 = vmatprep.subr.mxu0 0.0
        %826 = vmatpush1.msra.mxu0 0.0
        %827 = vmatprep.subr.mxu0 0.0
        %828 = vmatpush1.msra.mxu0 0.0
        %829 = vmatprep.subr.mxu0 0.0
        %830 = vmatpush1.msra.mxu0 0.0
        %831 = vmatprep.subr.mxu0 0.0
        %832 = vmatpush1.msra.mxu0 0.0
        %833 = vmatprep.subr.mxu0 0.0
        %834 = vmatpush1.msra.mxu0 0.0
        %835 = vmatprep.subr.mxu0 0.0
        %836 = vmatpush1.msra.mxu0 0.0
        %837 = vmatprep.subr.mxu0 0.0
        %838 = vmatpush1.msra.mxu0 0.0
        %839 = vmatprep.subr.mxu0 0.0
        %840 = vmatpush1.msra.mxu0 0.0
        %841 = vmatprep.subr.mxu0 0.0
        %842 = vmatpush1.msra.mxu0 0.0
        %843 = vmatprep.subr.mxu0 0.0
        %844 = vmatpush1.msra.mxu0 0.0
        %845 = vmatprep.subr.mxu0 0.0
        %846 = vmatpush1.msra.mxu0 0.0
        %847 = vmatprep.subr.mxu0 0.0
        %848 = vmatpush1.msra.mxu0 0.0
        %849 = vmatprep.subr.mxu0 0.0
        %850 = vmatpush1.msra.mxu0 0.0
        %851 = vmatprep.subr.mxu0 0.0
        %852 = vmatpush1.msra.mxu0 0.0
        %853 = vmatprep.subr.mxu0 0.0
        %854 = vmatpush1.msra.mxu0 0.0
        %855 = vmatprep.subr.mxu0 0.0
        %856 = vmatpush1.msra.mxu0 0.0
        %857 = vmatprep.mubr.f32.mxu0 0.0
        %858 = vmatmul.mubr.f32.gmra.mrb[0].mxu0 %v785
        %v859 = vpop.f32.mrb[0].mxu0
        %v860 = vadd.f32 0.0, %v859
        %v861 = vpop.f32.mrb[0].mxu0
        %862 = vmatprep.mubr.f32.mxu0 0.0
        %863 = vmatmul.mubr.f32.gmra.mrb[0].mxu0 %v788
        %v864 = vpop.f32.mrb[0].mxu0
        %v865 = vadd.f32 0.0, %v864
        %v866 = vpop.f32.mrb[0].mxu0
        %867 = vmatprep.mubr.f32.mxu0 0.0
        %868 = vmatmul.mubr.f32.gmra.mrb[0].mxu0 %v791
        %v869 = vpop.f32.mrb[0].mxu0
        %v870 = vadd.f32 0.0, %v869
        %v871 = vpop.f32.mrb[0].mxu0
        %872 = vdwg.mxu0
        %v873 = vld [vmem:[%s4] sm:$0xff]
        %v874 = vld [vmem:[%s4 + $0x8] sm:$0xff]
        %v875 = vld [vmem:[%s4 + $0x10] sm:$0xff]
        %v876 = vld [vmem:[%s4 + $0x18] sm:$0xff]
        %v877 = vld [vmem:[%s4 + $0x20] sm:$0xff]
        %v878 = vld [vmem:[%s4 + $0x28] sm:$0xff]
        %v879 = vld [vmem:[%s4 + $0x30] sm:$0xff]
        %v880 = vld [vmem:[%s4 + $0x38] sm:$0xff]
        %v881 = vld [vmem:[%s4 + $0x40] sm:$0xff]
        %v882 = vld [vmem:[%s4 + $0x48] sm:$0xff]
        %v883 = vld [vmem:[%s4 + $0x50] sm:$0xff]
        %v884 = vld [vmem:[%s4 + $0x58] sm:$0xff]
        %s885 = scalar_lea.vmem %s3, 24
        %v886 = vld [vmem:[%s885] sm:$0xff]
        %v887 = vld [vmem:[%s885 + $0x8] sm:$0xff]
        %v888 = vld [vmem:[%s885 + $0x10] sm:$0x1]
        %v890 = vsel %vm783, %v886, 0
        %v893 = vsel %vm783, %v887, 0
        %v896 = vsel %vm783, %v888, 0
        %898 = vmatprep.subr.mxu0 0.0
        %899 = vmatpush1.msra.mxu0 %v762
        %900 = vmatprep.subr.mxu0 0.0
        %901 = vmatpush1.msra.mxu0 %v767
        %902 = vmatprep.subr.mxu0 0.0
        %903 = vmatpush1.msra.mxu0 %v772
        %904 = vmatprep.subr.mxu0 0.0
        %905 = vmatpush1.msra.mxu0 %v777
        %906 = vmatprep.subr.mxu0 0.0
        %907 = vmatpush1.msra.mxu0 0.0
        %908 = vmatprep.subr.mxu0 0.0
        %909 = vmatpush1.msra.mxu0 0.0
        %910 = vmatprep.subr.mxu0 0.0
        %911 = vmatpush1.msra.mxu0 0.0
        %912 = vmatprep.subr.mxu0 0.0
        %913 = vmatpush1.msra.mxu0 0.0
        %914 = vmatprep.subr.mxu0 0.0
        %915 = vmatpush1.msra.mxu0 0.0
        %916 = vmatprep.subr.mxu0 0.0
        %917 = vmatpush1.msra.mxu0 0.0
        %918 = vmatprep.subr.mxu0 0.0
        %919 = vmatpush1.msra.mxu0 0.0
        %920 = vmatprep.subr.mxu0 0.0
        %921 = vmatpush1.msra.mxu0 0.0
        %922 = vmatprep.subr.mxu0 0.0
        %923 = vmatpush1.msra.mxu0 0.0
        %924 = vmatprep.subr.mxu0 0.0
        %925 = vmatpush1.msra.mxu0 0.0
        %926 = vmatprep.subr.mxu0 0.0
        %927 = vmatpush1.msra.mxu0 0.0
        %928 = vmatprep.subr.mxu0 0.0
        %929 = vmatpush1.msra.mxu0 0.0
        %930 = vmatprep.subr.mxu0 0.0
        %931 = vmatpush1.msra.mxu0 0.0
        %932 = vmatprep.subr.mxu0 0.0
        %933 = vmatpush1.msra.mxu0 0.0
        %934 = vmatprep.subr.mxu0 0.0
        %935 = vmatpush1.msra.mxu0 0.0
        %936 = vmatprep.subr.mxu0 0.0
        %937 = vmatpush1.msra.mxu0 0.0
        %938 = vmatprep.subr.mxu0 0.0
        %939 = vmatpush1.msra.mxu0 0.0
        %940 = vmatprep.subr.mxu0 0.0
        %941 = vmatpush1.msra.mxu0 0.0
        %942 = vmatprep.subr.mxu0 0.0
        %943 = vmatpush1.msra.mxu0 0.0
        %944 = vmatprep.subr.mxu0 0.0
        %945 = vmatpush1.msra.mxu0 0.0
        %946 = vmatprep.subr.mxu0 0.0
        %947 = vmatpush1.msra.mxu0 0.0
        %948 = vmatprep.subr.mxu0 0.0
        %949 = vmatpush1.msra.mxu0 0.0
        %950 = vmatprep.subr.mxu0 0.0
        %951 = vmatpush1.msra.mxu0 0.0
        %952 = vmatprep.subr.mxu0 0.0
        %953 = vmatpush1.msra.mxu0 0.0
        %954 = vmatprep.subr.mxu0 0.0
        %955 = vmatpush1.msra.mxu0 0.0
        %956 = vmatprep.subr.mxu0 0.0
        %957 = vmatpush1.msra.mxu0 0.0
        %958 = vmatprep.subr.mxu0 0.0
        %959 = vmatpush1.msra.mxu0 0.0
        %960 = vmatprep.subr.mxu0 0.0
        %961 = vmatpush1.msra.mxu0 0.0
        %962 = vmatprep.mubr.f32.mxu0 0.0
        %963 = vmatmul.mubr.f32.gmra.mrb[0].mxu0 %v890
        %v964 = vpop.f32.mrb[0].mxu0
        %v965 = vadd.f32 0.0, %v964
        %v966 = vpop.f32.mrb[0].mxu0
        %967 = vmatprep.mubr.f32.mxu0 0.0
        %968 = vmatmul.mubr.f32.gmra.mrb[0].mxu0 %v893
        %v969 = vpop.f32.mrb[0].mxu0
        %v970 = vadd.f32 0.0, %v969
        %v971 = vpop.f32.mrb[0].mxu0
        %972 = vmatprep.mubr.f32.mxu0 0.0
        %973 = vmatmul.mubr.f32.gmra.mrb[0].mxu0 %v896
        %v974 = vpop.f32.mrb[0].mxu0
        %v975 = vadd.f32 0.0, %v974
        %v976 = vpop.f32.mrb[0].mxu0
        %977 = vdwg.mxu0
        %s978 = scalar_lea.vmem %s4, 96
        %v979 = vld [vmem:[%s978] sm:$0xff]
        %v980 = vld [vmem:[%s978 + $0x8] sm:$0xff]
        %v981 = vld [vmem:[%s978 + $0x10] sm:$0xff]
        %v982 = vld [vmem:[%s978 + $0x18] sm:$0xff]
        %v983 = vld [vmem:[%s978 + $0x20] sm:$0xff]
        %v984 = vld [vmem:[%s978 + $0x28] sm:$0xff]
        %v985 = vld [vmem:[%s978 + $0x30] sm:$0xff]
        %v986 = vld [vmem:[%s978 + $0x38] sm:$0xff]
        %v987 = vld [vmem:[%s978 + $0x40] sm:$0xff]
        %v988 = vld [vmem:[%s978 + $0x48] sm:$0xff]
        %v989 = vld [vmem:[%s978 + $0x50] sm:$0xff]
        %v990 = vld [vmem:[%s978 + $0x58] sm:$0xff]
        %v992 = vsel %vm783, %v965, 0
        %v995 = vsel %vm783, %v970, 0
        %v998 = vsel %vm783, %v975, 0
        %1000 = vmatprep.subr.mxu0 %v980
        %1001 = vmatpush1.msra.mxu0 %v979
        %1002 = vmatprep.subr.mxu0 %v983
        %1003 = vmatpush1.msra.mxu0 %v982
        %1004 = vmatprep.subr.mxu0 %v986
        %1005 = vmatpush1.msra.mxu0 %v985
        %1006 = vmatprep.subr.mxu0 %v989
        %1007 = vmatpush1.msra.mxu0 %v988
        %1008 = vmatprep.subr.mxu0 0.0
        %1009 = vmatpush1.msra.mxu0 0.0
        %1010 = vmatprep.subr.mxu0 0.0
        %1011 = vmatpush1.msra.mxu0 0.0
        %1012 = vmatprep.subr.mxu0 0.0
        %1013 = vmatpush1.msra.mxu0 0.0
        %1014 = vmatprep.subr.mxu0 0.0
        %1015 = vmatpush1.msra.mxu0 0.0
        %1016 = vmatprep.subr.mxu0 0.0
        %1017 = vmatpush1.msra.mxu0 0.0
        %1018 = vmatprep.subr.mxu0 0.0
        %1019 = vmatpush1.msra.mxu0 0.0
        %1020 = vmatprep.subr.mxu0 0.0
        %1021 = vmatpush1.msra.mxu0 0.0
        %1022 = vmatprep.subr.mxu0 0.0
        %1023 = vmatpush1.msra.mxu0 0.0
        %1024 = vmatprep.subr.mxu0 0.0
        %1025 = vmatpush1.msra.mxu0 0.0
        %1026 = vmatprep.subr.mxu0 0.0
        %1027 = vmatpush1.msra.mxu0 0.0
        %1028 = vmatprep.subr.mxu0 0.0
        %1029 = vmatpush1.msra.mxu0 0.0
        %1030 = vmatprep.subr.mxu0 0.0
        %1031 = vmatpush1.msra.mxu0 0.0
        %1032 = vmatprep.subr.mxu0 0.0
        %1033 = vmatpush1.msra.mxu0 0.0
        %1034 = vmatprep.subr.mxu0 0.0
        %1035 = vmatpush1.msra.mxu0 0.0
        %1036 = vmatprep.subr.mxu0 0.0
        %1037 = vmatpush1.msra.mxu0 0.0
        %1038 = vmatprep.subr.mxu0 0.0
        %1039 = vmatpush1.msra.mxu0 0.0
        %1040 = vmatprep.subr.mxu0 0.0
        %1041 = vmatpush1.msra.mxu0 0.0
        %1042 = vmatprep.subr.mxu0 0.0
        %1043 = vmatpush1.msra.mxu0 0.0
        %1044 = vmatprep.subr.mxu0 0.0
        %1045 = vmatpush1.msra.mxu0 0.0
        %1046 = vmatprep.subr.mxu0 0.0
        %1047 = vmatpush1.msra.mxu0 0.0
        %1048 = vmatprep.subr.mxu0 0.0
        %1049 = vmatpush1.msra.mxu0 0.0
        %1050 = vmatprep.subr.mxu0 0.0
        %1051 = vmatpush1.msra.mxu0 0.0
        %1052 = vmatprep.subr.mxu0 0.0
        %1053 = vmatpush1.msra.mxu0 0.0
        %1054 = vmatprep.subr.mxu0 0.0
        %1055 = vmatpush1.msra.mxu0 0.0
        %1056 = vmatprep.subr.mxu0 0.0
        %1057 = vmatpush1.msra.mxu0 0.0
        %1058 = vmatprep.subr.mxu0 0.0
        %1059 = vmatpush1.msra.mxu0 0.0
        %1060 = vmatprep.subr.mxu0 0.0
        %1061 = vmatpush1.msra.mxu0 0.0
        %1062 = vmatprep.subr.mxu0 0.0
        %1063 = vmatpush1.msra.mxu0 0.0
        %1064 = vmatprep.mubr.f32.mxu0 0.0
        %1065 = vmatmul.mubr.f32.gmra.mrb[0].mxu0 %v992
        %v1066 = vpop.f32.mrb[0].mxu0
        %v1067 = vadd.f32 0.0, %v1066
        %v1068 = vpop.f32.mrb[0].mxu0
        %v1069 = vadd.f32 0.0, %v1068
        %1070 = vmatprep.mubr.f32.mxu0 0.0
        %1071 = vmatmul.mubr.f32.gmra.mrb[0].mxu0 %v995
        %v1072 = vpop.f32.mrb[0].mxu0
        %v1073 = vadd.f32 0.0, %v1072
        %v1074 = vpop.f32.mrb[0].mxu0
        %v1075 = vadd.f32 0.0, %v1074
        %1076 = vmatprep.mubr.f32.mxu0 0.0
        %1077 = vmatmul.mubr.f32.gmra.mrb[0].mxu0 %v998
        %v1078 = vpop.f32.mrb[0].mxu0
        %v1079 = vadd.f32 0.0, %v1078
        %v1080 = vpop.f32.mrb[0].mxu0
        %v1081 = vadd.f32 0.0, %v1080
        %1082 = vdwg.mxu0
        %1083 = vmatprep.subr.mxu0 0.0
        %1084 = vmatpush1.msra.mxu0 %v981
        %1085 = vmatprep.subr.mxu0 0.0
        %1086 = vmatpush1.msra.mxu0 %v984
        %1087 = vmatprep.subr.mxu0 0.0
        %1088 = vmatpush1.msra.mxu0 %v987
        %1089 = vmatprep.subr.mxu0 0.0
        %1090 = vmatpush1.msra.mxu0 %v990
        %1091 = vmatprep.subr.mxu0 0.0
        %1092 = vmatpush1.msra.mxu0 0.0
        %1093 = vmatprep.subr.mxu0 0.0
        %1094 = vmatpush1.msra.mxu0 0.0
        %1095 = vmatprep.subr.mxu0 0.0
        %1096 = vmatpush1.msra.mxu0 0.0
        %1097 = vmatprep.subr.mxu0 0.0
        %1098 = vmatpush1.msra.mxu0 0.0
        %1099 = vmatprep.subr.mxu0 0.0
        %1100 = vmatpush1.msra.mxu0 0.0
        %1101 = vmatprep.subr.mxu0 0.0
        %1102 = vmatpush1.msra.mxu0 0.0
        %1103 = vmatprep.subr.mxu0 0.0
        %1104 = vmatpush1.msra.mxu0 0.0
        %1105 = vmatprep.subr.mxu0 0.0
        %1106 = vmatpush1.msra.mxu0 0.0
        %1107 = vmatprep.subr.mxu0 0.0
        %1108 = vmatpush1.msra.mxu0 0.0
        %1109 = vmatprep.subr.mxu0 0.0
        %1110 = vmatpush1.msra.mxu0 0.0
        %1111 = vmatprep.subr.mxu0 0.0
        %1112 = vmatpush1.msra.mxu0 0.0
        %1113 = vmatprep.subr.mxu0 0.0
        %1114 = vmatpush1.msra.mxu0 0.0
        %1115 = vmatprep.subr.mxu0 0.0
        %1116 = vmatpush1.msra.mxu0 0.0
        %1117 = vmatprep.subr.mxu0 0.0
        %1118 = vmatpush1.msra.mxu0 0.0
        %1119 = vmatprep.subr.mxu0 0.0
        %1120 = vmatpush1.msra.mxu0 0.0
        %1121 = vmatprep.subr.mxu0 0.0
        %1122 = vmatpush1.msra.mxu0 0.0
        %1123 = vmatprep.subr.mxu0 0.0
        %1124 = vmatpush1.msra.mxu0 0.0
        %1125 = vmatprep.subr.mxu0 0.0
        %1126 = vmatpush1.msra.mxu0 0.0
        %1127 = vmatprep.subr.mxu0 0.0
        %1128 = vmatpush1.msra.mxu0 0.0
        %1129 = vmatprep.subr.mxu0 0.0
        %1130 = vmatpush1.msra.mxu0 0.0
        %1131 = vmatprep.subr.mxu0 0.0
        %1132 = vmatpush1.msra.mxu0 0.0
        %1133 = vmatprep.subr.mxu0 0.0
        %1134 = vmatpush1.msra.mxu0 0.0
        %1135 = vmatprep.subr.mxu0 0.0
        %1136 = vmatpush1.msra.mxu0 0.0
        %1137 = vmatprep.subr.mxu0 0.0
        %1138 = vmatpush1.msra.mxu0 0.0
        %1139 = vmatprep.subr.mxu0 0.0
        %1140 = vmatpush1.msra.mxu0 0.0
        %1141 = vmatprep.subr.mxu0 0.0
        %1142 = vmatpush1.msra.mxu0 0.0
        %1143 = vmatprep.subr.mxu0 0.0
        %1144 = vmatpush1.msra.mxu0 0.0
        %1145 = vmatprep.subr.mxu0 0.0
        %1146 = vmatpush1.msra.mxu0 0.0
        %1147 = vmatprep.mubr.f32.mxu0 0.0
        %1148 = vmatmul.mubr.f32.gmra.mrb[0].mxu0 %v992
        %v1149 = vpop.f32.mrb[0].mxu0
        %v1150 = vadd.f32 0.0, %v1149
        %v1151 = vpop.f32.mrb[0].mxu0
        %1152 = vmatprep.mubr.f32.mxu0 0.0
        %1153 = vmatmul.mubr.f32.gmra.mrb[0].mxu0 %v995
        %v1154 = vpop.f32.mrb[0].mxu0
        %v1155 = vadd.f32 0.0, %v1154
        %v1156 = vpop.f32.mrb[0].mxu0
        %1157 = vmatprep.mubr.f32.mxu0 0.0
        %1158 = vmatmul.mubr.f32.gmra.mrb[0].mxu0 %v998
        %v1159 = vpop.f32.mrb[0].mxu0
        %v1160 = vadd.f32 0.0, %v1159
        %v1161 = vpop.f32.mrb[0].mxu0
        %1162 = vdwg.mxu0
        %v1164 = vsel %vm783, %v860, 0
        %v1167 = vsel %vm783, %v865, 0
        %v1170 = vsel %vm783, %v870, 0
        %1172 = vmatprep.subr.mxu0 %v874
        %1173 = vmatpush1.msra.mxu0 %v873
        %1174 = vmatprep.subr.mxu0 %v877
        %1175 = vmatpush1.msra.mxu0 %v876
        %1176 = vmatprep.subr.mxu0 %v880
        %1177 = vmatpush1.msra.mxu0 %v879
        %1178 = vmatprep.subr.mxu0 %v883
        %1179 = vmatpush1.msra.mxu0 %v882
        %1180 = vmatprep.subr.mxu0 0.0
        %1181 = vmatpush1.msra.mxu0 0.0
        %1182 = vmatprep.subr.mxu0 0.0
        %1183 = vmatpush1.msra.mxu0 0.0
        %1184 = vmatprep.subr.mxu0 0.0
        %1185 = vmatpush1.msra.mxu0 0.0
        %1186 = vmatprep.subr.mxu0 0.0
        %1187 = vmatpush1.msra.mxu0 0.0
        %1188 = vmatprep.subr.mxu0 0.0
        %1189 = vmatpush1.msra.mxu0 0.0
        %1190 = vmatprep.subr.mxu0 0.0
        %1191 = vmatpush1.msra.mxu0 0.0
        %1192 = vmatprep.subr.mxu0 0.0
        %1193 = vmatpush1.msra.mxu0 0.0
        %1194 = vmatprep.subr.mxu0 0.0
        %1195 = vmatpush1.msra.mxu0 0.0
        %1196 = vmatprep.subr.mxu0 0.0
        %1197 = vmatpush1.msra.mxu0 0.0
        %1198 = vmatprep.subr.mxu0 0.0
        %1199 = vmatpush1.msra.mxu0 0.0
        %1200 = vmatprep.subr.mxu0 0.0
        %1201 = vmatpush1.msra.mxu0 0.0
        %1202 = vmatprep.subr.mxu0 0.0
        %1203 = vmatpush1.msra.mxu0 0.0
        %1204 = vmatprep.subr.mxu0 0.0
        %1205 = vmatpush1.msra.mxu0 0.0
        %1206 = vmatprep.subr.mxu0 0.0
        %1207 = vmatpush1.msra.mxu0 0.0
        %1208 = vmatprep.subr.mxu0 0.0
        %1209 = vmatpush1.msra.mxu0 0.0
        %1210 = vmatprep.subr.mxu0 0.0
        %1211 = vmatpush1.msra.mxu0 0.0
        %1212 = vmatprep.subr.mxu0 0.0
        %1213 = vmatpush1.msra.mxu0 0.0
        %1214 = vmatprep.subr.mxu0 0.0
        %1215 = vmatpush1.msra.mxu0 0.0
        %1216 = vmatprep.subr.mxu0 0.0
        %1217 = vmatpush1.msra.mxu0 0.0
        %1218 = vmatprep.subr.mxu0 0.0
        %1219 = vmatpush1.msra.mxu0 0.0
        %1220 = vmatprep.subr.mxu0 0.0
        %1221 = vmatpush1.msra.mxu0 0.0
        %1222 = vmatprep.subr.mxu0 0.0
        %1223 = vmatpush1.msra.mxu0 0.0
        %1224 = vmatprep.subr.mxu0 0.0
        %1225 = vmatpush1.msra.mxu0 0.0
        %1226 = vmatprep.subr.mxu0 0.0
        %1227 = vmatpush1.msra.mxu0 0.0
        %1228 = vmatprep.subr.mxu0 0.0
        %1229 = vmatpush1.msra.mxu0 0.0
        %1230 = vmatprep.subr.mxu0 0.0
        %1231 = vmatpush1.msra.mxu0 0.0
        %1232 = vmatprep.subr.mxu0 0.0
        %1233 = vmatpush1.msra.mxu0 0.0
        %1234 = vmatprep.subr.mxu0 0.0
        %1235 = vmatpush1.msra.mxu0 0.0
        %1236 = vmatprep.mubr.f32.mxu0 0.0
        %1237 = vmatmul.mubr.f32.gmra.mrb[0].mxu0 %v1164
        %v1238 = vpop.f32.mrb[0].mxu0
        %v1239 = vadd.f32 %v1067, %v1238
        %v1240 = vpop.f32.mrb[0].mxu0
        %v1241 = vadd.f32 %v1069, %v1240
        %1242 = vmatprep.mubr.f32.mxu0 0.0
        %1243 = vmatmul.mubr.f32.gmra.mrb[0].mxu0 %v1167
        %v1244 = vpop.f32.mrb[0].mxu0
        %v1245 = vadd.f32 %v1073, %v1244
        %v1246 = vpop.f32.mrb[0].mxu0
        %v1247 = vadd.f32 %v1075, %v1246
        %1248 = vmatprep.mubr.f32.mxu0 0.0
        %1249 = vmatmul.mubr.f32.gmra.mrb[0].mxu0 %v1170
        %v1250 = vpop.f32.mrb[0].mxu0
        %v1251 = vadd.f32 %v1079, %v1250
        %v1252 = vpop.f32.mrb[0].mxu0
        %v1253 = vadd.f32 %v1081, %v1252
        %1254 = vdwg.mxu0
        %1255 = vmatprep.subr.mxu0 0.0
        %1256 = vmatpush1.msra.mxu0 %v875
        %1257 = vmatprep.subr.mxu0 0.0
        %1258 = vmatpush1.msra.mxu0 %v878
        %1259 = vmatprep.subr.mxu0 0.0
        %1260 = vmatpush1.msra.mxu0 %v881
        %1261 = vmatprep.subr.mxu0 0.0
        %1262 = vmatpush1.msra.mxu0 %v884
        %1263 = vmatprep.subr.mxu0 0.0
        %1264 = vmatpush1.msra.mxu0 0.0
        %1265 = vmatprep.subr.mxu0 0.0
        %1266 = vmatpush1.msra.mxu0 0.0
        %1267 = vmatprep.subr.mxu0 0.0
        %1268 = vmatpush1.msra.mxu0 0.0
        %1269 = vmatprep.subr.mxu0 0.0
        %1270 = vmatpush1.msra.mxu0 0.0
        %1271 = vmatprep.subr.mxu0 0.0
        %1272 = vmatpush1.msra.mxu0 0.0
        %1273 = vmatprep.subr.mxu0 0.0
        %1274 = vmatpush1.msra.mxu0 0.0
        %1275 = vmatprep.subr.mxu0 0.0
        %1276 = vmatpush1.msra.mxu0 0.0
        %1277 = vmatprep.subr.mxu0 0.0
        %1278 = vmatpush1.msra.mxu0 0.0
        %1279 = vmatprep.subr.mxu0 0.0
        %1280 = vmatpush1.msra.mxu0 0.0
        %1281 = vmatprep.subr.mxu0 0.0
        %1282 = vmatpush1.msra.mxu0 0.0
        %1283 = vmatprep.subr.mxu0 0.0
        %1284 = vmatpush1.msra.mxu0 0.0
        %1285 = vmatprep.subr.mxu0 0.0
        %1286 = vmatpush1.msra.mxu0 0.0
        %1287 = vmatprep.subr.mxu0 0.0
        %1288 = vmatpush1.msra.mxu0 0.0
        %1289 = vmatprep.subr.mxu0 0.0
        %1290 = vmatpush1.msra.mxu0 0.0
        %1291 = vmatprep.subr.mxu0 0.0
        %1292 = vmatpush1.msra.mxu0 0.0
        %1293 = vmatprep.subr.mxu0 0.0
        %1294 = vmatpush1.msra.mxu0 0.0
        %1295 = vmatprep.subr.mxu0 0.0
        %1296 = vmatpush1.msra.mxu0 0.0
        %1297 = vmatprep.subr.mxu0 0.0
        %1298 = vmatpush1.msra.mxu0 0.0
        %1299 = vmatprep.subr.mxu0 0.0
        %1300 = vmatpush1.msra.mxu0 0.0
        %1301 = vmatprep.subr.mxu0 0.0
        %1302 = vmatpush1.msra.mxu0 0.0
        %1303 = vmatprep.subr.mxu0 0.0
        %1304 = vmatpush1.msra.mxu0 0.0
        %1305 = vmatprep.subr.mxu0 0.0
        %1306 = vmatpush1.msra.mxu0 0.0
        %1307 = vmatprep.subr.mxu0 0.0
        %1308 = vmatpush1.msra.mxu0 0.0
        %1309 = vmatprep.subr.mxu0 0.0
        %1310 = vmatpush1.msra.mxu0 0.0
        %1311 = vmatprep.subr.mxu0 0.0
        %1312 = vmatpush1.msra.mxu0 0.0
        %1313 = vmatprep.subr.mxu0 0.0
        %1314 = vmatpush1.msra.mxu0 0.0
        %1315 = vmatprep.subr.mxu0 0.0
        %1316 = vmatpush1.msra.mxu0 0.0
        %1317 = vmatprep.subr.mxu0 0.0
        %1318 = vmatpush1.msra.mxu0 0.0
        %1319 = vmatprep.mubr.f32.mxu0 0.0
        %1320 = vmatmul.mubr.f32.gmra.mrb[0].mxu0 %v1164
        %v1321 = vpop.f32.mrb[0].mxu0
        %v1322 = vadd.f32 %v1150, %v1321
        %v1323 = vpop.f32.mrb[0].mxu0
        %1324 = vmatprep.mubr.f32.mxu0 0.0
        %1325 = vmatmul.mubr.f32.gmra.mrb[0].mxu0 %v1167
        %v1326 = vpop.f32.mrb[0].mxu0
        %v1327 = vadd.f32 %v1155, %v1326
        %v1328 = vpop.f32.mrb[0].mxu0
        %1329 = vmatprep.mubr.f32.mxu0 0.0
        %1330 = vmatmul.mubr.f32.gmra.mrb[0].mxu0 %v1170
        %v1331 = vpop.f32.mrb[0].mxu0
        %v1332 = vadd.f32 %v1160, %v1331
        %v1333 = vpop.f32.mrb[0].mxu0
        %1334 = vdwg.mxu0
        %s1335 = scalar_lea.vmem %s3, 48
        %v1336 = vld [vmem:[%s1335] sm:$0xff]
        %v1337 = vld [vmem:[%s1335 + $0x8] sm:$0xff]
        %v1338 = vld [vmem:[%s1335 + $0x10] sm:$0x1]
        %v1340 = vsel %vm783, %v1336, 0
        %v1343 = vsel %vm783, %v1337, 0
        %v1346 = vsel %vm783, %v1338, 0
        %1348 = vmatprep.subr.mxu0 0.0
        %1349 = vmatpush1.msra.mxu0 %v762
        %1350 = vmatprep.subr.mxu0 0.0
        %1351 = vmatpush1.msra.mxu0 %v767
        %1352 = vmatprep.subr.mxu0 0.0
        %1353 = vmatpush1.msra.mxu0 %v772
        %1354 = vmatprep.subr.mxu0 0.0
        %1355 = vmatpush1.msra.mxu0 %v777
        %1356 = vmatprep.subr.mxu0 0.0
        %1357 = vmatpush1.msra.mxu0 0.0
        %1358 = vmatprep.subr.mxu0 0.0
        %1359 = vmatpush1.msra.mxu0 0.0
        %1360 = vmatprep.subr.mxu0 0.0
        %1361 = vmatpush1.msra.mxu0 0.0
        %1362 = vmatprep.subr.mxu0 0.0
        %1363 = vmatpush1.msra.mxu0 0.0
        %1364 = vmatprep.subr.mxu0 0.0
        %1365 = vmatpush1.msra.mxu0 0.0
        %1366 = vmatprep.subr.mxu0 0.0
        %1367 = vmatpush1.msra.mxu0 0.0
        %1368 = vmatprep.subr.mxu0 0.0
        %1369 = vmatpush1.msra.mxu0 0.0
        %1370 = vmatprep.subr.mxu0 0.0
        %1371 = vmatpush1.msra.mxu0 0.0
        %1372 = vmatprep.subr.mxu0 0.0
        %1373 = vmatpush1.msra.mxu0 0.0
        %1374 = vmatprep.subr.mxu0 0.0
        %1375 = vmatpush1.msra.mxu0 0.0
        %1376 = vmatprep.subr.mxu0 0.0
        %1377 = vmatpush1.msra.mxu0 0.0
        %1378 = vmatprep.subr.mxu0 0.0
        %1379 = vmatpush1.msra.mxu0 0.0
        %1380 = vmatprep.subr.mxu0 0.0
        %1381 = vmatpush1.msra.mxu0 0.0
        %1382 = vmatprep.subr.mxu0 0.0
        %1383 = vmatpush1.msra.mxu0 0.0
        %1384 = vmatprep.subr.mxu0 0.0
        %1385 = vmatpush1.msra.mxu0 0.0
        %1386 = vmatprep.subr.mxu0 0.0
        %1387 = vmatpush1.msra.mxu0 0.0
        %1388 = vmatprep.subr.mxu0 0.0
        %1389 = vmatpush1.msra.mxu0 0.0
        %1390 = vmatprep.subr.mxu0 0.0
        %1391 = vmatpush1.msra.mxu0 0.0
        %1392 = vmatprep.subr.mxu0 0.0
        %1393 = vmatpush1.msra.mxu0 0.0
        %1394 = vmatprep.subr.mxu0 0.0
        %1395 = vmatpush1.msra.mxu0 0.0
        %1396 = vmatprep.subr.mxu0 0.0
        %1397 = vmatpush1.msra.mxu0 0.0
        %1398 = vmatprep.subr.mxu0 0.0
        %1399 = vmatpush1.msra.mxu0 0.0
        %1400 = vmatprep.subr.mxu0 0.0
        %1401 = vmatpush1.msra.mxu0 0.0
        %1402 = vmatprep.subr.mxu0 0.0
        %1403 = vmatpush1.msra.mxu0 0.0
        %1404 = vmatprep.subr.mxu0 0.0
        %1405 = vmatpush1.msra.mxu0 0.0
        %1406 = vmatprep.subr.mxu0 0.0
        %1407 = vmatpush1.msra.mxu0 0.0
        %1408 = vmatprep.subr.mxu0 0.0
        %1409 = vmatpush1.msra.mxu0 0.0
        %1410 = vmatprep.subr.mxu0 0.0
        %1411 = vmatpush1.msra.mxu0 0.0
        %1412 = vmatprep.mubr.f32.mxu0 0.0
        %1413 = vmatmul.mubr.f32.gmra.mrb[0].mxu0 %v1340
        %v1414 = vpop.f32.mrb[0].mxu0
        %v1415 = vadd.f32 0.0, %v1414
        %v1416 = vpop.f32.mrb[0].mxu0
        %1417 = vmatprep.mubr.f32.mxu0 0.0
        %1418 = vmatmul.mubr.f32.gmra.mrb[0].mxu0 %v1343
        %v1419 = vpop.f32.mrb[0].mxu0
        %v1420 = vadd.f32 0.0, %v1419
        %v1421 = vpop.f32.mrb[0].mxu0
        %1422 = vmatprep.mubr.f32.mxu0 0.0
        %1423 = vmatmul.mubr.f32.gmra.mrb[0].mxu0 %v1346
        %v1424 = vpop.f32.mrb[0].mxu0
        %v1425 = vadd.f32 0.0, %v1424
        %v1426 = vpop.f32.mrb[0].mxu0
        %1427 = vdwg.mxu0
        %s1428 = scalar_lea.vmem %s4, 192
        %v1429 = vld [vmem:[%s1428] sm:$0xff]
        %v1430 = vld [vmem:[%s1428 + $0x8] sm:$0xff]
        %v1431 = vld [vmem:[%s1428 + $0x10] sm:$0xff]
        %v1432 = vld [vmem:[%s1428 + $0x18] sm:$0xff]
        %v1433 = vld [vmem:[%s1428 + $0x20] sm:$0xff]
        %v1434 = vld [vmem:[%s1428 + $0x28] sm:$0xff]
        %v1435 = vld [vmem:[%s1428 + $0x30] sm:$0xff]
        %v1436 = vld [vmem:[%s1428 + $0x38] sm:$0xff]
        %v1437 = vld [vmem:[%s1428 + $0x40] sm:$0xff]
        %v1438 = vld [vmem:[%s1428 + $0x48] sm:$0xff]
        %v1439 = vld [vmem:[%s1428 + $0x50] sm:$0xff]
        %v1440 = vld [vmem:[%s1428 + $0x58] sm:$0xff]
        %v1442 = vsel %vm783, %v1415, 0
        %v1445 = vsel %vm783, %v1420, 0
        %v1448 = vsel %vm783, %v1425, 0
        %1450 = vmatprep.subr.mxu0 %v1430
        %1451 = vmatpush1.msra.mxu0 %v1429
        %1452 = vmatprep.subr.mxu0 %v1433
        %1453 = vmatpush1.msra.mxu0 %v1432
        %1454 = vmatprep.subr.mxu0 %v1436
        %1455 = vmatpush1.msra.mxu0 %v1435
        %1456 = vmatprep.subr.mxu0 %v1439
        %1457 = vmatpush1.msra.mxu0 %v1438
        %1458 = vmatprep.subr.mxu0 0.0
        %1459 = vmatpush1.msra.mxu0 0.0
        %1460 = vmatprep.subr.mxu0 0.0
        %1461 = vmatpush1.msra.mxu0 0.0
        %1462 = vmatprep.subr.mxu0 0.0
        %1463 = vmatpush1.msra.mxu0 0.0
        %1464 = vmatprep.subr.mxu0 0.0
        %1465 = vmatpush1.msra.mxu0 0.0
        %1466 = vmatprep.subr.mxu0 0.0
        %1467 = vmatpush1.msra.mxu0 0.0
        %1468 = vmatprep.subr.mxu0 0.0
        %1469 = vmatpush1.msra.mxu0 0.0
        %1470 = vmatprep.subr.mxu0 0.0
        %1471 = vmatpush1.msra.mxu0 0.0
        %1472 = vmatprep.subr.mxu0 0.0
        %1473 = vmatpush1.msra.mxu0 0.0
        %1474 = vmatprep.subr.mxu0 0.0
        %1475 = vmatpush1.msra.mxu0 0.0
        %1476 = vmatprep.subr.mxu0 0.0
        %1477 = vmatpush1.msra.mxu0 0.0
        %1478 = vmatprep.subr.mxu0 0.0
        %1479 = vmatpush1.msra.mxu0 0.0
        %1480 = vmatprep.subr.mxu0 0.0
        %1481 = vmatpush1.msra.mxu0 0.0
        %1482 = vmatprep.subr.mxu0 0.0
        %1483 = vmatpush1.msra.mxu0 0.0
        %1484 = vmatprep.subr.mxu0 0.0
        %1485 = vmatpush1.msra.mxu0 0.0
        %1486 = vmatprep.subr.mxu0 0.0
        %1487 = vmatpush1.msra.mxu0 0.0
        %1488 = vmatprep.subr.mxu0 0.0
        %1489 = vmatpush1.msra.mxu0 0.0
        %1490 = vmatprep.subr.mxu0 0.0
        %1491 = vmatpush1.msra.mxu0 0.0
        %1492 = vmatprep.subr.mxu0 0.0
        %1493 = vmatpush1.msra.mxu0 0.0
        %1494 = vmatprep.subr.mxu0 0.0
        %1495 = vmatpush1.msra.mxu0 0.0
        %1496 = vmatprep.subr.mxu0 0.0
        %1497 = vmatpush1.msra.mxu0 0.0
        %1498 = vmatprep.subr.mxu0 0.0
        %1499 = vmatpush1.msra.mxu0 0.0
        %1500 = vmatprep.subr.mxu0 0.0
        %1501 = vmatpush1.msra.mxu0 0.0
        %1502 = vmatprep.subr.mxu0 0.0
        %1503 = vmatpush1.msra.mxu0 0.0
        %1504 = vmatprep.subr.mxu0 0.0
        %1505 = vmatpush1.msra.mxu0 0.0
        %1506 = vmatprep.subr.mxu0 0.0
        %1507 = vmatpush1.msra.mxu0 0.0
        %1508 = vmatprep.subr.mxu0 0.0
        %1509 = vmatpush1.msra.mxu0 0.0
        %1510 = vmatprep.subr.mxu0 0.0
        %1511 = vmatpush1.msra.mxu0 0.0
        %1512 = vmatprep.subr.mxu0 0.0
        %1513 = vmatpush1.msra.mxu0 0.0
        %1514 = vmatprep.mubr.f32.mxu0 0.0
        %1515 = vmatmul.mubr.f32.gmra.mrb[0].mxu0 %v1442
        %v1516 = vpop.f32.mrb[0].mxu0
        %v1517 = vadd.f32 0.0, %v1516
        %v1518 = vpop.f32.mrb[0].mxu0
        %v1519 = vadd.f32 0.0, %v1518
        %1520 = vmatprep.mubr.f32.mxu0 0.0
        %1521 = vmatmul.mubr.f32.gmra.mrb[0].mxu0 %v1445
        %v1522 = vpop.f32.mrb[0].mxu0
        %v1523 = vadd.f32 0.0, %v1522
        %v1524 = vpop.f32.mrb[0].mxu0
        %v1525 = vadd.f32 0.0, %v1524
        %1526 = vmatprep.mubr.f32.mxu0 0.0
        %1527 = vmatmul.mubr.f32.gmra.mrb[0].mxu0 %v1448
        %v1528 = vpop.f32.mrb[0].mxu0
        %v1529 = vadd.f32 0.0, %v1528
        %v1530 = vpop.f32.mrb[0].mxu0
        %v1531 = vadd.f32 0.0, %v1530
        %1532 = vdwg.mxu0
        %1533 = vmatprep.subr.mxu0 0.0
        %1534 = vmatpush1.msra.mxu0 %v1431
        %1535 = vmatprep.subr.mxu0 0.0
        %1536 = vmatpush1.msra.mxu0 %v1434
        %1537 = vmatprep.subr.mxu0 0.0
        %1538 = vmatpush1.msra.mxu0 %v1437
        %1539 = vmatprep.subr.mxu0 0.0
        %1540 = vmatpush1.msra.mxu0 %v1440
        %1541 = vmatprep.subr.mxu0 0.0
        %1542 = vmatpush1.msra.mxu0 0.0
        %1543 = vmatprep.subr.mxu0 0.0
        %1544 = vmatpush1.msra.mxu0 0.0
        %1545 = vmatprep.subr.mxu0 0.0
        %1546 = vmatpush1.msra.mxu0 0.0
        %1547 = vmatprep.subr.mxu0 0.0
        %1548 = vmatpush1.msra.mxu0 0.0
        %1549 = vmatprep.subr.mxu0 0.0
        %1550 = vmatpush1.msra.mxu0 0.0
        %1551 = vmatprep.subr.mxu0 0.0
        %1552 = vmatpush1.msra.mxu0 0.0
        %1553 = vmatprep.subr.mxu0 0.0
        %1554 = vmatpush1.msra.mxu0 0.0
        %1555 = vmatprep.subr.mxu0 0.0
        %1556 = vmatpush1.msra.mxu0 0.0
        %1557 = vmatprep.subr.mxu0 0.0
        %1558 = vmatpush1.msra.mxu0 0.0
        %1559 = vmatprep.subr.mxu0 0.0
        %1560 = vmatpush1.msra.mxu0 0.0
        %1561 = vmatprep.subr.mxu0 0.0
        %1562 = vmatpush1.msra.mxu0 0.0
        %1563 = vmatprep.subr.mxu0 0.0
        %1564 = vmatpush1.msra.mxu0 0.0
        %1565 = vmatprep.subr.mxu0 0.0
        %1566 = vmatpush1.msra.mxu0 0.0
        %1567 = vmatprep.subr.mxu0 0.0
        %1568 = vmatpush1.msra.mxu0 0.0
        %1569 = vmatprep.subr.mxu0 0.0
        %1570 = vmatpush1.msra.mxu0 0.0
        %1571 = vmatprep.subr.mxu0 0.0
        %1572 = vmatpush1.msra.mxu0 0.0
        %1573 = vmatprep.subr.mxu0 0.0
        %1574 = vmatpush1.msra.mxu0 0.0
        %1575 = vmatprep.subr.mxu0 0.0
        %1576 = vmatpush1.msra.mxu0 0.0
        %1577 = vmatprep.subr.mxu0 0.0
        %1578 = vmatpush1.msra.mxu0 0.0
        %1579 = vmatprep.subr.mxu0 0.0
        %1580 = vmatpush1.msra.mxu0 0.0
        %1581 = vmatprep.subr.mxu0 0.0
        %1582 = vmatpush1.msra.mxu0 0.0
        %1583 = vmatprep.subr.mxu0 0.0
        %1584 = vmatpush1.msra.mxu0 0.0
        %1585 = vmatprep.subr.mxu0 0.0
        %1586 = vmatpush1.msra.mxu0 0.0
        %1587 = vmatprep.subr.mxu0 0.0
        %1588 = vmatpush1.msra.mxu0 0.0
        %1589 = vmatprep.subr.mxu0 0.0
        %1590 = vmatpush1.msra.mxu0 0.0
        %1591 = vmatprep.subr.mxu0 0.0
        %1592 = vmatpush1.msra.mxu0 0.0
        %1593 = vmatprep.subr.mxu0 0.0
        %1594 = vmatpush1.msra.mxu0 0.0
        %1595 = vmatprep.subr.mxu0 0.0
        %1596 = vmatpush1.msra.mxu0 0.0
        %1597 = vmatprep.mubr.f32.mxu0 0.0
        %1598 = vmatmul.mubr.f32.gmra.mrb[0].mxu0 %v1442
        %v1599 = vpop.f32.mrb[0].mxu0
        %v1600 = vadd.f32 0.0, %v1599
        %v1601 = vpop.f32.mrb[0].mxu0
        %1602 = vmatprep.mubr.f32.mxu0 0.0
        %1603 = vmatmul.mubr.f32.gmra.mrb[0].mxu0 %v1445
        %v1604 = vpop.f32.mrb[0].mxu0
        %v1605 = vadd.f32 0.0, %v1604
        %v1606 = vpop.f32.mrb[0].mxu0
        %1607 = vmatprep.mubr.f32.mxu0 0.0
        %1608 = vmatmul.mubr.f32.gmra.mrb[0].mxu0 %v1448
        %v1609 = vpop.f32.mrb[0].mxu0
        %v1610 = vadd.f32 0.0, %v1609
        %v1611 = vpop.f32.mrb[0].mxu0
        %1612 = vdwg.mxu0
        %v1613 = vadd.f32 %v1239, %v1517
        %v1614 = vadd.f32 %v1241, %v1519
        %v1615 = vadd.f32 %v1322, %v1600
        %v1616 = vadd.f32 %v1245, %v1523
        %v1617 = vadd.f32 %v1247, %v1525
        %v1618 = vadd.f32 %v1327, %v1605
        %v1619 = vadd.f32 %v1251, %v1529
        %v1620 = vadd.f32 %v1253, %v1531
        %v1621 = vadd.f32 %v1332, %v1610
        %v1622 = vld [vmem:[%s5] sm:$0x7]
        %v1624 = vlaneseq
        %v1625 = vshrl.u32 %v1624, 7
        %v1626 = vsub.s32 0, %v1625
        %v1627 = vrot.slane %v1622, %v1626
        %v1628 = vlaneseq
        %v1629 = vshrl.u32 %v1628, 7
        %v1630 = vsub.s32 1, %v1629
        %v1631 = vrot.slane %v1622, %v1630
        %v1632 = vlaneseq
        %v1633 = vshrl.u32 %v1632, 7
        %v1634 = vsub.s32 2, %v1633
        %v1635 = vrot.slane %v1622, %v1634
        %v1639 = vadd.f32 %v1613, %v1627
        %v1640 = vadd.f32 %v1614, %v1631
        %v1641 = vadd.f32 %v1615, %v1635
        %v1642 = vadd.f32 %v1616, %v1627
        %v1643 = vadd.f32 %v1617, %v1631
        %v1644 = vadd.f32 %v1618, %v1635
        %v1645 = vadd.f32 %v1619, %v1627
        %v1646 = vadd.f32 %v1620, %v1631
        %v1647 = vadd.f32 %v1621, %v1635
        %v1648 = vmax.f32 %v1639, 0.0
        %v1649 = vmax.f32 %v1640, 0.0
        %v1650 = vmax.f32 %v1641, 0.0
        %v1651 = vmax.f32 %v1642, 0.0
        %v1652 = vmax.f32 %v1643, 0.0
        %v1653 = vmax.f32 %v1644, 0.0
        %v1654 = vmax.f32 %v1645, 0.0
        %v1655 = vmax.f32 %v1646, 0.0
        %v1656 = vmax.f32 %v1647, 0.0
        %v1657 = vld [vmem:[%s6] sm:$0xff]
        %v1658 = vld [vmem:[%s6 + $0x8] sm:$0x3]
        %vm1659 = vcmask 138240
        %v1661 = vsel %vm1659, %v1657, 0
        %v1664 = vsel %vm1659, %v1658, 0
        %vm1666 = vcmask 1040384
        %v1668 = vsel %vm1666, %v1654, 0
        %v1671 = vsel %vm1666, %v1655, 0
        %v1674 = vsel %vm1666, %v1656, 0
        %1676 = vmatprep.subr.mxu0 %v1649
        %1677 = vmatpush1.msra.mxu0 %v1648
        %1678 = vmatprep.subr.mxu0 %v1652
        %1679 = vmatpush1.msra.mxu0 %v1651
        %1680 = vmatprep.subr.mxu0 %v1671
        %1681 = vmatpush1.msra.mxu0 %v1668
        %1682 = vmatprep.subr.mxu0 0.0
        %1683 = vmatpush1.msra.mxu0 0.0
        %1684 = vmatprep.subr.mxu0 0.0
        %1685 = vmatpush1.msra.mxu0 0.0
        %1686 = vmatprep.subr.mxu0 0.0
        %1687 = vmatpush1.msra.mxu0 0.0
        %1688 = vmatprep.subr.mxu0 0.0
        %1689 = vmatpush1.msra.mxu0 0.0
        %1690 = vmatprep.subr.mxu0 0.0
        %1691 = vmatpush1.msra.mxu0 0.0
        %1692 = vmatprep.subr.mxu0 0.0
        %1693 = vmatpush1.msra.mxu0 0.0
        %1694 = vmatprep.subr.mxu0 0.0
        %1695 = vmatpush1.msra.mxu0 0.0
        %1696 = vmatprep.subr.mxu0 0.0
        %1697 = vmatpush1.msra.mxu0 0.0
        %1698 = vmatprep.subr.mxu0 0.0
        %1699 = vmatpush1.msra.mxu0 0.0
        %1700 = vmatprep.subr.mxu0 0.0
        %1701 = vmatpush1.msra.mxu0 0.0
        %1702 = vmatprep.subr.mxu0 0.0
        %1703 = vmatpush1.msra.mxu0 0.0
        %1704 = vmatprep.subr.mxu0 0.0
        %1705 = vmatpush1.msra.mxu0 0.0
        %1706 = vmatprep.subr.mxu0 0.0
        %1707 = vmatpush1.msra.mxu0 0.0
        %1708 = vmatprep.subr.mxu0 0.0
        %1709 = vmatpush1.msra.mxu0 0.0
        %1710 = vmatprep.subr.mxu0 0.0
        %1711 = vmatpush1.msra.mxu0 0.0
        %1712 = vmatprep.subr.mxu0 0.0
        %1713 = vmatpush1.msra.mxu0 0.0
        %1714 = vmatprep.subr.mxu0 0.0
        %1715 = vmatpush1.msra.mxu0 0.0
        %1716 = vmatprep.subr.mxu0 0.0
        %1717 = vmatpush1.msra.mxu0 0.0
        %1718 = vmatprep.subr.mxu0 0.0
        %1719 = vmatpush1.msra.mxu0 0.0
        %1720 = vmatprep.subr.mxu0 0.0
        %1721 = vmatpush1.msra.mxu0 0.0
        %1722 = vmatprep.subr.mxu0 0.0
        %1723 = vmatpush1.msra.mxu0 0.0
        %1724 = vmatprep.subr.mxu0 0.0
        %1725 = vmatpush1.msra.mxu0 0.0
        %1726 = vmatprep.subr.mxu0 0.0
        %1727 = vmatpush1.msra.mxu0 0.0
        %1728 = vmatprep.subr.mxu0 0.0
        %1729 = vmatpush1.msra.mxu0 0.0
        %1730 = vmatprep.subr.mxu0 0.0
        %1731 = vmatpush1.msra.mxu0 0.0
        %1732 = vmatprep.subr.mxu0 0.0
        %1733 = vmatpush1.msra.mxu0 0.0
        %1734 = vmatprep.subr.mxu0 0.0
        %1735 = vmatpush1.msra.mxu0 0.0
        %1736 = vmatprep.subr.mxu0 0.0
        %1737 = vmatpush1.msra.mxu0 0.0
        %1738 = vmatprep.subr.mxu0 0.0
        %1739 = vmatpush1.msra.mxu0 0.0
        %1740 = vmatprep.mubr.f32.mxu0 0.0
        %1741 = vmatmul.mubr.f32.gmra.mrb[0].mxu0 %v1661
        %v1742 = vpop.f32.mrb[0].mxu0
        %v1743 = vadd.f32 0.0, %v1742
        %v1744 = vpop.f32.mrb[0].mxu0
        %v1745 = vadd.f32 0.0, %v1744
        %1746 = vmatprep.mubr.f32.mxu0 0.0
        %1747 = vmatmul.mubr.f32.gmra.mrb[0].mxu0 %v1664
        %v1748 = vpop.f32.mrb[0].mxu0
        %v1749 = vadd.f32 0.0, %v1748
        %v1750 = vpop.f32.mrb[0].mxu0
        %v1751 = vadd.f32 0.0, %v1750
        %1752 = vdwg.mxu0
        %1753 = vmatprep.subr.mxu0 0.0
        %1754 = vmatpush1.msra.mxu0 %v1650
        %1755 = vmatprep.subr.mxu0 0.0
        %1756 = vmatpush1.msra.mxu0 %v1653
        %1757 = vmatprep.subr.mxu0 0.0
        %1758 = vmatpush1.msra.mxu0 %v1674
        %1759 = vmatprep.subr.mxu0 0.0
        %1760 = vmatpush1.msra.mxu0 0.0
        %1761 = vmatprep.subr.mxu0 0.0
        %1762 = vmatpush1.msra.mxu0 0.0
        %1763 = vmatprep.subr.mxu0 0.0
        %1764 = vmatpush1.msra.mxu0 0.0
        %1765 = vmatprep.subr.mxu0 0.0
        %1766 = vmatpush1.msra.mxu0 0.0
        %1767 = vmatprep.subr.mxu0 0.0
        %1768 = vmatpush1.msra.mxu0 0.0
        %1769 = vmatprep.subr.mxu0 0.0
        %1770 = vmatpush1.msra.mxu0 0.0
        %1771 = vmatprep.subr.mxu0 0.0
        %1772 = vmatpush1.msra.mxu0 0.0
        %1773 = vmatprep.subr.mxu0 0.0
        %1774 = vmatpush1.msra.mxu0 0.0
        %1775 = vmatprep.subr.mxu0 0.0
        %1776 = vmatpush1.msra.mxu0 0.0
        %1777 = vmatprep.subr.mxu0 0.0
        %1778 = vmatpush1.msra.mxu0 0.0
        %1779 = vmatprep.subr.mxu0 0.0
        %1780 = vmatpush1.msra.mxu0 0.0
        %1781 = vmatprep.subr.mxu0 0.0
        %1782 = vmatpush1.msra.mxu0 0.0
        %1783 = vmatprep.subr.mxu0 0.0
        %1784 = vmatpush1.msra.mxu0 0.0
        %1785 = vmatprep.subr.mxu0 0.0
        %1786 = vmatpush1.msra.mxu0 0.0
        %1787 = vmatprep.subr.mxu0 0.0
        %1788 = vmatpush1.msra.mxu0 0.0
        %1789 = vmatprep.subr.mxu0 0.0
        %1790 = vmatpush1.msra.mxu0 0.0
        %1791 = vmatprep.subr.mxu0 0.0
        %1792 = vmatpush1.msra.mxu0 0.0
        %1793 = vmatprep.subr.mxu0 0.0
        %1794 = vmatpush1.msra.mxu0 0.0
        %1795 = vmatprep.subr.mxu0 0.0
        %1796 = vmatpush1.msra.mxu0 0.0
        %1797 = vmatprep.subr.mxu0 0.0
        %1798 = vmatpush1.msra.mxu0 0.0
        %1799 = vmatprep.subr.mxu0 0.0
        %1800 = vmatpush1.msra.mxu0 0.0
        %1801 = vmatprep.subr.mxu0 0.0
        %1802 = vmatpush1.msra.mxu0 0.0
        %1803 = vmatprep.subr.mxu0 0.0
        %1804 = vmatpush1.msra.mxu0 0.0
        %1805 = vmatprep.subr.mxu0 0.0
        %1806 = vmatpush1.msra.mxu0 0.0
        %1807 = vmatprep.subr.mxu0 0.0
        %1808 = vmatpush1.msra.mxu0 0.0
        %1809 = vmatprep.subr.mxu0 0.0
        %1810 = vmatpush1.msra.mxu0 0.0
        %1811 = vmatprep.subr.mxu0 0.0
        %1812 = vmatpush1.msra.mxu0 0.0
        %1813 = vmatprep.subr.mxu0 0.0
        %1814 = vmatpush1.msra.mxu0 0.0
        %1815 = vmatprep.subr.mxu0 0.0
        %1816 = vmatpush1.msra.mxu0 0.0
        %1817 = vmatprep.mubr.f32.mxu0 0.0
        %1818 = vmatmul.mubr.f32.gmra.mrb[0].mxu0 %v1661
        %v1819 = vpop.f32.mrb[0].mxu0
        %v1820 = vadd.f32 0.0, %v1819
        %v1821 = vpop.f32.mrb[0].mxu0
        %1822 = vmatprep.mubr.f32.mxu0 0.0
        %1823 = vmatmul.mubr.f32.gmra.mrb[0].mxu0 %v1664
        %v1824 = vpop.f32.mrb[0].mxu0
        %v1825 = vadd.f32 0.0, %v1824
        %v1826 = vpop.f32.mrb[0].mxu0
        %1827 = vdwg.mxu0
        %v1828 = vld [vmem:[%s7] sm:$0xff]
        %v1829 = vld [vmem:[%s7 + $0x8] sm:$0xff]
        %v1830 = vld [vmem:[%s7 + $0x10] sm:$0xff]
        %v1831 = vld [vmem:[%s7 + $0x18] sm:$0xff]
        %v1832 = vld [vmem:[%s7 + $0x20] sm:$0xff]
        %v1833 = vld [vmem:[%s7 + $0x28] sm:$0xff]
        %v1834 = vld [vmem:[%s7 + $0x30] sm:$0xff]
        %v1835 = vld [vmem:[%s7 + $0x38] sm:$0xff]
        %v1836 = vld [vmem:[%s7 + $0x40] sm:$0xff]
        %v1837 = vld [vmem:[%s7 + $0x48] sm:$0xff]
        %v1838 = vld [vmem:[%s7 + $0x50] sm:$0xff]
        %v1839 = vld [vmem:[%s7 + $0x58] sm:$0xff]
        %v1840 = vld [vmem:[%s7 + $0x60] sm:$0xff]
        %v1841 = vld [vmem:[%s7 + $0x68] sm:$0xff]
        %v1842 = vld [vmem:[%s7 + $0x70] sm:$0xff]
        %v1843 = vld [vmem:[%s7 + $0x78] sm:$0xff]
        %v1844 = vld [vmem:[%s7 + $0x80] sm:$0xff]
        %v1845 = vld [vmem:[%s7 + $0x88] sm:$0xff]
        %v1846 = vld [vmem:[%s7 + $0x90] sm:$0xff]
        %v1847 = vld [vmem:[%s7 + $0x98] sm:$0xff]
        %v1848 = vld [vmem:[%s7 + $0xa0] sm:$0xff]
        %v1849 = vld [vmem:[%s7 + $0xa8] sm:$0xff]
        %v1850 = vld [vmem:[%s7 + $0xb0] sm:$0xff]
        %v1851 = vld [vmem:[%s7 + $0xb8] sm:$0xff]
        %v1852 = vld [vmem:[%s7 + $0xc0] sm:$0xff]
        %v1853 = vld [vmem:[%s7 + $0xc8] sm:$0xff]
        %v1854 = vld [vmem:[%s7 + $0xd0] sm:$0xff]
        %v1855 = vld [vmem:[%s7 + $0xd8] sm:$0xff]
        %v1856 = vld [vmem:[%s7 + $0xe0] sm:$0xff]
        %v1857 = vld [vmem:[%s7 + $0xe8] sm:$0xff]
        %v1858 = vld [vmem:[%s7 + $0xf0] sm:$0xff]
        %v1859 = vld [vmem:[%s7 + $0xf8] sm:$0xff]
        %v1860 = vld [vmem:[%s7 + $0x100] sm:$0xff]
        %v1861 = vld [vmem:[%s7 + $0x108] sm:$0xff]
        %v1862 = vld [vmem:[%s7 + $0x110] sm:$0xff]
        %v1863 = vld [vmem:[%s7 + $0x118] sm:$0xff]
        %v1864 = vld [vmem:[%s7 + $0x120] sm:$0xff]
        %v1865 = vld [vmem:[%s7 + $0x128] sm:$0xff]
        %v1866 = vld [vmem:[%s7 + $0x130] sm:$0xff]
        %v1867 = vld [vmem:[%s7 + $0x138] sm:$0xff]
        %v1868 = vld [vmem:[%s7 + $0x140] sm:$0xff]
        %v1869 = vld [vmem:[%s7 + $0x148] sm:$0xff]
        %v1870 = vld [vmem:[%s7 + $0x150] sm:$0xff]
        %v1871 = vld [vmem:[%s7 + $0x158] sm:$0xff]
        %v1872 = vld [vmem:[%s7 + $0x160] sm:$0xff]
        %v1873 = vld [vmem:[%s7 + $0x168] sm:$0xff]
        %v1874 = vld [vmem:[%s7 + $0x170] sm:$0xff]
        %v1875 = vld [vmem:[%s7 + $0x178] sm:$0xff]
        %v1876 = vld [vmem:[%s7 + $0x180] sm:$0xff]
        %v1877 = vld [vmem:[%s7 + $0x188] sm:$0xff]
        %v1878 = vld [vmem:[%s7 + $0x190] sm:$0xff]
        %v1879 = vld [vmem:[%s7 + $0x198] sm:$0xff]
        %v1880 = vld [vmem:[%s7 + $0x1a0] sm:$0xff]
        %v1881 = vld [vmem:[%s7 + $0x1a8] sm:$0xff]
        %v1882 = vld [vmem:[%s7 + $0x1b0] sm:$0xff]
        %v1883 = vld [vmem:[%s7 + $0x1b8] sm:$0xff]
        %v1884 = vld [vmem:[%s7 + $0x1c0] sm:$0xff]
        %v1885 = vld [vmem:[%s7 + $0x1c8] sm:$0xff]
        %v1886 = vld [vmem:[%s7 + $0x1d0] sm:$0xff]
        %v1887 = vld [vmem:[%s7 + $0x1d8] sm:$0xff]
        %v1888 = vld [vmem:[%s7 + $0x1e0] sm:$0xff]
        %v1889 = vld [vmem:[%s7 + $0x1e8] sm:$0xff]
        %v1890 = vld [vmem:[%s7 + $0x1f0] sm:$0xff]
        %v1891 = vld [vmem:[%s7 + $0x1f8] sm:$0xff]
        %v1892 = vld [vmem:[%s7 + $0x200] sm:$0xff]
        %v1893 = vld [vmem:[%s7 + $0x208] sm:$0xff]
        %v1894 = vld [vmem:[%s7 + $0x210] sm:$0xff]
        %v1895 = vld [vmem:[%s7 + $0x218] sm:$0xff]
        %v1896 = vld [vmem:[%s7 + $0x220] sm:$0xff]
        %v1897 = vld [vmem:[%s7 + $0x228] sm:$0xff]
        %v1898 = vld [vmem:[%s7 + $0x230] sm:$0xff]
        %v1899 = vld [vmem:[%s7 + $0x238] sm:$0xff]
        %v1900 = vld [vmem:[%s7 + $0x240] sm:$0xff]
        %v1901 = vld [vmem:[%s7 + $0x248] sm:$0xff]
        %v1902 = vld [vmem:[%s7 + $0x250] sm:$0xff]
        %v1903 = vld [vmem:[%s7 + $0x258] sm:$0xff]
        %v1904 = vld [vmem:[%s7 + $0x260] sm:$0xff]
        %v1905 = vld [vmem:[%s7 + $0x268] sm:$0xff]
        %v1906 = vld [vmem:[%s7 + $0x270] sm:$0xff]
        %v1907 = vld [vmem:[%s7 + $0x278] sm:$0xff]
        %v1908 = vld [vmem:[%s7 + $0x280] sm:$0xff]
        %v1909 = vld [vmem:[%s7 + $0x288] sm:$0xff]
        %v1910 = vld [vmem:[%s7 + $0x290] sm:$0xff]
        %v1911 = vld [vmem:[%s7 + $0x298] sm:$0xff]
        %v1912 = vld [vmem:[%s7 + $0x2a0] sm:$0xff]
        %v1913 = vld [vmem:[%s7 + $0x2a8] sm:$0xff]
        %v1914 = vld [vmem:[%s7 + $0x2b0] sm:$0xff]
        %v1915 = vld [vmem:[%s7 + $0x2b8] sm:$0xff]
        %v1916 = vld [vmem:[%s7 + $0x2c0] sm:$0xff]
        %v1917 = vld [vmem:[%s7 + $0x2c8] sm:$0xff]
        %v1918 = vld [vmem:[%s7 + $0x2d0] sm:$0xff]
        %v1919 = vld [vmem:[%s7 + $0x2d8] sm:$0xff]
        %v1920 = vld [vmem:[%s7 + $0x2e0] sm:$0xff]
        %v1921 = vld [vmem:[%s7 + $0x2e8] sm:$0xff]
        %v1922 = vld [vmem:[%s7 + $0x2f0] sm:$0xff]
        %v1923 = vld [vmem:[%s7 + $0x2f8] sm:$0xff]
        %v1924 = vld [vmem:[%s7 + $0x300] sm:$0xff]
        %v1925 = vld [vmem:[%s7 + $0x308] sm:$0xff]
        %v1926 = vld [vmem:[%s7 + $0x310] sm:$0xff]
        %v1927 = vld [vmem:[%s7 + $0x318] sm:$0xff]
        %v1928 = vld [vmem:[%s7 + $0x320] sm:$0xff]
        %v1929 = vld [vmem:[%s7 + $0x328] sm:$0xff]
        %s1930 = scalar_lea.vmem %s6, 16
        %v1931 = vld [vmem:[%s1930] sm:$0xff]
        %v1932 = vld [vmem:[%s1930 + $0x8] sm:$0x3]
        %v1934 = vsel %vm1659, %v1931, 0
        %v1937 = vsel %vm1659, %v1932, 0
        %1939 = vmatprep.subr.mxu0 %v1649
        %1940 = vmatpush1.msra.mxu0 %v1648
        %1941 = vmatprep.subr.mxu0 %v1652
        %1942 = vmatpush1.msra.mxu0 %v1651
        %1943 = vmatprep.subr.mxu0 %v1671
        %1944 = vmatpush1.msra.mxu0 %v1668
        %1945 = vmatprep.subr.mxu0 0.0
        %1946 = vmatpush1.msra.mxu0 0.0
        %1947 = vmatprep.subr.mxu0 0.0
        %1948 = vmatpush1.msra.mxu0 0.0
        %1949 = vmatprep.subr.mxu0 0.0
        %1950 = vmatpush1.msra.mxu0 0.0
        %1951 = vmatprep.subr.mxu0 0.0
        %1952 = vmatpush1.msra.mxu0 0.0
        %1953 = vmatprep.subr.mxu0 0.0
        %1954 = vmatpush1.msra.mxu0 0.0
        %1955 = vmatprep.subr.mxu0 0.0
        %1956 = vmatpush1.msra.mxu0 0.0
        %1957 = vmatprep.subr.mxu0 0.0
        %1958 = vmatpush1.msra.mxu0 0.0
        %1959 = vmatprep.subr.mxu0 0.0
        %1960 = vmatpush1.msra.mxu0 0.0
        %1961 = vmatprep.subr.mxu0 0.0
        %1962 = vmatpush1.msra.mxu0 0.0
        %1963 = vmatprep.subr.mxu0 0.0
        %1964 = vmatpush1.msra.mxu0 0.0
        %1965 = vmatprep.subr.mxu0 0.0
        %1966 = vmatpush1.msra.mxu0 0.0
        %1967 = vmatprep.subr.mxu0 0.0
        %1968 = vmatpush1.msra.mxu0 0.0
        %1969 = vmatprep.subr.mxu0 0.0
        %1970 = vmatpush1.msra.mxu0 0.0
        %1971 = vmatprep.subr.mxu0 0.0
        %1972 = vmatpush1.msra.mxu0 0.0
        %1973 = vmatprep.subr.mxu0 0.0
        %1974 = vmatpush1.msra.mxu0 0.0
        %1975 = vmatprep.subr.mxu0 0.0
        %1976 = vmatpush1.msra.mxu0 0.0
        %1977 = vmatprep.subr.mxu0 0.0
        %1978 = vmatpush1.msra.mxu0 0.0
        %1979 = vmatprep.subr.mxu0 0.0
        %1980 = vmatpush1.msra.mxu0 0.0
        %1981 = vmatprep.subr.mxu0 0.0
        %1982 = vmatpush1.msra.mxu0 0.0
        %1983 = vmatprep.subr.mxu0 0.0
        %1984 = vmatpush1.msra.mxu0 0.0
        %1985 = vmatprep.subr.mxu0 0.0
        %1986 = vmatpush1.msra.mxu0 0.0
        %1987 = vmatprep.subr.mxu0 0.0
        %1988 = vmatpush1.msra.mxu0 0.0
        %1989 = vmatprep.subr.mxu0 0.0
        %1990 = vmatpush1.msra.mxu0 0.0
        %1991 = vmatprep.subr.mxu0 0.0
        %1992 = vmatpush1.msra.mxu0 0.0
        %1993 = vmatprep.subr.mxu0 0.0
        %1994 = vmatpush1.msra.mxu0 0.0
        %1995 = vmatprep.subr.mxu0 0.0
        %1996 = vmatpush1.msra.mxu0 0.0
        %1997 = vmatprep.subr.mxu0 0.0
        %1998 = vmatpush1.msra.mxu0 0.0
        %1999 = vmatprep.subr.mxu0 0.0
        %2000 = vmatpush1.msra.mxu0 0.0
        %2001 = vmatprep.subr.mxu0 0.0
        %2002 = vmatpush1.msra.mxu0 0.0
        %2003 = vmatprep.mubr.f32.mxu0 0.0
        %2004 = vmatmul.mubr.f32.gmra.mrb[0].mxu0 %v1934
        %v2005 = vpop.f32.mrb[0].mxu0
        %v2006 = vadd.f32 0.0, %v2005
        %v2007 = vpop.f32.mrb[0].mxu0
        %v2008 = vadd.f32 0.0, %v2007
        %2009 = vmatprep.mubr.f32.mxu0 0.0
        %2010 = vmatmul.mubr.f32.gmra.mrb[0].mxu0 %v1937
        %v2011 = vpop.f32.mrb[0].mxu0
        %v2012 = vadd.f32 0.0, %v2011
        %v2013 = vpop.f32.mrb[0].mxu0
        %v2014 = vadd.f32 0.0, %v2013
        %2015 = vdwg.mxu0
        %2016 = vmatprep.subr.mxu0 0.0
        %2017 = vmatpush1.msra.mxu0 %v1650
        %2018 = vmatprep.subr.mxu0 0.0
        %2019 = vmatpush1.msra.mxu0 %v1653
        %2020 = vmatprep.subr.mxu0 0.0
        %2021 = vmatpush1.msra.mxu0 %v1674
        %2022 = vmatprep.subr.mxu0 0.0
        %2023 = vmatpush1.msra.mxu0 0.0
        %2024 = vmatprep.subr.mxu0 0.0
        %2025 = vmatpush1.msra.mxu0 0.0
        %2026 = vmatprep.subr.mxu0 0.0
        %2027 = vmatpush1.msra.mxu0 0.0
        %2028 = vmatprep.subr.mxu0 0.0
        %2029 = vmatpush1.msra.mxu0 0.0
        %2030 = vmatprep.subr.mxu0 0.0
        %2031 = vmatpush1.msra.mxu0 0.0
        %2032 = vmatprep.subr.mxu0 0.0
        %2033 = vmatpush1.msra.mxu0 0.0
        %2034 = vmatprep.subr.mxu0 0.0
        %2035 = vmatpush1.msra.mxu0 0.0
        %2036 = vmatprep.subr.mxu0 0.0
        %2037 = vmatpush1.msra.mxu0 0.0
        %2038 = vmatprep.subr.mxu0 0.0
        %2039 = vmatpush1.msra.mxu0 0.0
        %2040 = vmatprep.subr.mxu0 0.0
        %2041 = vmatpush1.msra.mxu0 0.0
        %2042 = vmatprep.subr.mxu0 0.0
        %2043 = vmatpush1.msra.mxu0 0.0
        %2044 = vmatprep.subr.mxu0 0.0
        %2045 = vmatpush1.msra.mxu0 0.0
        %2046 = vmatprep.subr.mxu0 0.0
        %2047 = vmatpush1.msra.mxu0 0.0
        %2048 = vmatprep.subr.mxu0 0.0
        %2049 = vmatpush1.msra.mxu0 0.0
        %2050 = vmatprep.subr.mxu0 0.0
        %2051 = vmatpush1.msra.mxu0 0.0
        %2052 = vmatprep.subr.mxu0 0.0
        %2053 = vmatpush1.msra.mxu0 0.0
        %2054 = vmatprep.subr.mxu0 0.0
        %2055 = vmatpush1.msra.mxu0 0.0
        %2056 = vmatprep.subr.mxu0 0.0
        %2057 = vmatpush1.msra.mxu0 0.0
        %2058 = vmatprep.subr.mxu0 0.0
        %2059 = vmatpush1.msra.mxu0 0.0
        %2060 = vmatprep.subr.mxu0 0.0
        %2061 = vmatpush1.msra.mxu0 0.0
        %2062 = vmatprep.subr.mxu0 0.0
        %2063 = vmatpush1.msra.mxu0 0.0
        %2064 = vmatprep.subr.mxu0 0.0
        %2065 = vmatpush1.msra.mxu0 0.0
        %2066 = vmatprep.subr.mxu0 0.0
        %2067 = vmatpush1.msra.mxu0 0.0
        %2068 = vmatprep.subr.mxu0 0.0
        %2069 = vmatpush1.msra.mxu0 0.0
        %2070 = vmatprep.subr.mxu0 0.0
        %2071 = vmatpush1.msra.mxu0 0.0
        %2072 = vmatprep.subr.mxu0 0.0
        %2073 = vmatpush1.msra.mxu0 0.0
        %2074 = vmatprep.subr.mxu0 0.0
        %2075 = vmatpush1.msra.mxu0 0.0
        %2076 = vmatprep.subr.mxu0 0.0
        %2077 = vmatpush1.msra.mxu0 0.0
        %2078 = vmatprep.subr.mxu0 0.0
        %2079 = vmatpush1.msra.mxu0 0.0
        %2080 = vmatprep.mubr.f32.mxu0 0.0
        %2081 = vmatmul.mubr.f32.gmra.mrb[0].mxu0 %v1934
        %v2082 = vpop.f32.mrb[0].mxu0
        %v2083 = vadd.f32 0.0, %v2082
        %v2084 = vpop.f32.mrb[0].mxu0
        %2085 = vmatprep.mubr.f32.mxu0 0.0
        %2086 = vmatmul.mubr.f32.gmra.mrb[0].mxu0 %v1937
        %v2087 = vpop.f32.mrb[0].mxu0
        %v2088 = vadd.f32 0.0, %v2087
        %v2089 = vpop.f32.mrb[0].mxu0
        %2090 = vdwg.mxu0
        %s2091 = scalar_lea.vmem %s7, 816
        %v2092 = vld [vmem:[%s2091] sm:$0xff]
        %v2093 = vld [vmem:[%s2091 + $0x8] sm:$0xff]
        %v2094 = vld [vmem:[%s2091 + $0x10] sm:$0xff]
        %v2095 = vld [vmem:[%s2091 + $0x18] sm:$0xff]
        %v2096 = vld [vmem:[%s2091 + $0x20] sm:$0xff]
        %v2097 = vld [vmem:[%s2091 + $0x28] sm:$0xff]
        %v2098 = vld [vmem:[%s2091 + $0x30] sm:$0xff]
        %v2099 = vld [vmem:[%s2091 + $0x38] sm:$0xff]
        %v2100 = vld [vmem:[%s2091 + $0x40] sm:$0xff]
        %v2101 = vld [vmem:[%s2091 + $0x48] sm:$0xff]
        %v2102 = vld [vmem:[%s2091 + $0x50] sm:$0xff]
        %v2103 = vld [vmem:[%s2091 + $0x58] sm:$0xff]
        %v2104 = vld [vmem:[%s2091 + $0x60] sm:$0xff]
        %v2105 = vld [vmem:[%s2091 + $0x68] sm:$0xff]
        %v2106 = vld [vmem:[%s2091 + $0x70] sm:$0xff]
        %v2107 = vld [vmem:[%s2091 + $0x78] sm:$0xff]
        %v2108 = vld [vmem:[%s2091 + $0x80] sm:$0xff]
        %v2109 = vld [vmem:[%s2091 + $0x88] sm:$0xff]
        %v2110 = vld [vmem:[%s2091 + $0x90] sm:$0xff]
        %v2111 = vld [vmem:[%s2091 + $0x98] sm:$0xff]
        %v2112 = vld [vmem:[%s2091 + $0xa0] sm:$0xff]
        %v2113 = vld [vmem:[%s2091 + $0xa8] sm:$0xff]
        %v2114 = vld [vmem:[%s2091 + $0xb0] sm:$0xff]
        %v2115 = vld [vmem:[%s2091 + $0xb8] sm:$0xff]
        %v2116 = vld [vmem:[%s2091 + $0xc0] sm:$0xff]
        %v2117 = vld [vmem:[%s2091 + $0xc8] sm:$0xff]
        %v2118 = vld [vmem:[%s2091 + $0xd0] sm:$0xff]
        %v2119 = vld [vmem:[%s2091 + $0xd8] sm:$0xff]
        %v2120 = vld [vmem:[%s2091 + $0xe0] sm:$0xff]
        %v2121 = vld [vmem:[%s2091 + $0xe8] sm:$0xff]
        %v2122 = vld [vmem:[%s2091 + $0xf0] sm:$0xff]
        %v2123 = vld [vmem:[%s2091 + $0xf8] sm:$0xff]
        %v2124 = vld [vmem:[%s2091 + $0x100] sm:$0xff]
        %v2125 = vld [vmem:[%s2091 + $0x108] sm:$0xff]
        %v2126 = vld [vmem:[%s2091 + $0x110] sm:$0xff]
        %v2127 = vld [vmem:[%s2091 + $0x118] sm:$0xff]
        %v2128 = vld [vmem:[%s2091 + $0x120] sm:$0xff]
        %v2129 = vld [vmem:[%s2091 + $0x128] sm:$0xff]
        %v2130 = vld [vmem:[%s2091 + $0x130] sm:$0xff]
        %v2131 = vld [vmem:[%s2091 + $0x138] sm:$0xff]
        %v2132 = vld [vmem:[%s2091 + $0x140] sm:$0xff]
        %v2133 = vld [vmem:[%s2091 + $0x148] sm:$0xff]
        %v2134 = vld [vmem:[%s2091 + $0x150] sm:$0xff]
        %v2135 = vld [vmem:[%s2091 + $0x158] sm:$0xff]
        %v2136 = vld [vmem:[%s2091 + $0x160] sm:$0xff]
        %v2137 = vld [vmem:[%s2091 + $0x168] sm:$0xff]
        %v2138 = vld [vmem:[%s2091 + $0x170] sm:$0xff]
        %v2139 = vld [vmem:[%s2091 + $0x178] sm:$0xff]
        %v2140 = vld [vmem:[%s2091 + $0x180] sm:$0xff]
        %v2141 = vld [vmem:[%s2091 + $0x188] sm:$0xff]
        %v2142 = vld [vmem:[%s2091 + $0x190] sm:$0xff]
        %v2143 = vld [vmem:[%s2091 + $0x198] sm:$0xff]
        %v2144 = vld [vmem:[%s2091 + $0x1a0] sm:$0xff]
        %v2145 = vld [vmem:[%s2091 + $0x1a8] sm:$0xff]
        %v2146 = vld [vmem:[%s2091 + $0x1b0] sm:$0xff]
        %v2147 = vld [vmem:[%s2091 + $0x1b8] sm:$0xff]
        %v2148 = vld [vmem:[%s2091 + $0x1c0] sm:$0xff]
        %v2149 = vld [vmem:[%s2091 + $0x1c8] sm:$0xff]
        %v2150 = vld [vmem:[%s2091 + $0x1d0] sm:$0xff]
        %v2151 = vld [vmem:[%s2091 + $0x1d8] sm:$0xff]
        %v2152 = vld [vmem:[%s2091 + $0x1e0] sm:$0xff]
        %v2153 = vld [vmem:[%s2091 + $0x1e8] sm:$0xff]
        %v2154 = vld [vmem:[%s2091 + $0x1f0] sm:$0xff]
        %v2155 = vld [vmem:[%s2091 + $0x1f8] sm:$0xff]
        %v2156 = vld [vmem:[%s2091 + $0x200] sm:$0xff]
        %v2157 = vld [vmem:[%s2091 + $0x208] sm:$0xff]
        %v2158 = vld [vmem:[%s2091 + $0x210] sm:$0xff]
        %v2159 = vld [vmem:[%s2091 + $0x218] sm:$0xff]
        %v2160 = vld [vmem:[%s2091 + $0x220] sm:$0xff]
        %v2161 = vld [vmem:[%s2091 + $0x228] sm:$0xff]
        %v2162 = vld [vmem:[%s2091 + $0x230] sm:$0xff]
        %v2163 = vld [vmem:[%s2091 + $0x238] sm:$0xff]
        %v2164 = vld [vmem:[%s2091 + $0x240] sm:$0xff]
        %v2165 = vld [vmem:[%s2091 + $0x248] sm:$0xff]
        %v2166 = vld [vmem:[%s2091 + $0x250] sm:$0xff]
        %v2167 = vld [vmem:[%s2091 + $0x258] sm:$0xff]
        %v2168 = vld [vmem:[%s2091 + $0x260] sm:$0xff]
        %v2169 = vld [vmem:[%s2091 + $0x268] sm:$0xff]
        %v2170 = vld [vmem:[%s2091 + $0x270] sm:$0xff]
        %v2171 = vld [vmem:[%s2091 + $0x278] sm:$0xff]
        %v2172 = vld [vmem:[%s2091 + $0x280] sm:$0xff]
        %v2173 = vld [vmem:[%s2091 + $0x288] sm:$0xff]
        %v2174 = vld [vmem:[%s2091 + $0x290] sm:$0xff]
        %v2175 = vld [vmem:[%s2091 + $0x298] sm:$0xff]
        %v2176 = vld [vmem:[%s2091 + $0x2a0] sm:$0xff]
        %v2177 = vld [vmem:[%s2091 + $0x2a8] sm:$0xff]
        %v2178 = vld [vmem:[%s2091 + $0x2b0] sm:$0xff]
        %v2179 = vld [vmem:[%s2091 + $0x2b8] sm:$0xff]
        %v2180 = vld [vmem:[%s2091 + $0x2c0] sm:$0xff]
        %v2181 = vld [vmem:[%s2091 + $0x2c8] sm:$0xff]
        %v2182 = vld [vmem:[%s2091 + $0x2d0] sm:$0xff]
        %v2183 = vld [vmem:[%s2091 + $0x2d8] sm:$0xff]
        %v2184 = vld [vmem:[%s2091 + $0x2e0] sm:$0xff]
        %v2185 = vld [vmem:[%s2091 + $0x2e8] sm:$0xff]
        %v2186 = vld [vmem:[%s2091 + $0x2f0] sm:$0xff]
        %v2187 = vld [vmem:[%s2091 + $0x2f8] sm:$0xff]
        %v2188 = vld [vmem:[%s2091 + $0x300] sm:$0xff]
        %v2189 = vld [vmem:[%s2091 + $0x308] sm:$0xff]
        %v2190 = vld [vmem:[%s2091 + $0x310] sm:$0xff]
        %v2191 = vld [vmem:[%s2091 + $0x318] sm:$0xff]
        %v2192 = vld [vmem:[%s2091 + $0x320] sm:$0xff]
        %v2193 = vld [vmem:[%s2091 + $0x328] sm:$0xff]
        %vm2194 = vcmask 130048
        %v2196 = vsel %vm2194, %v2083, 0
        %v2199 = vsel %vm2194, %v2088, 0
        %2201 = vmatprep.subr.mxu0 %v2093
        %2202 = vmatpush1.msra.mxu0 %v2092
        %2203 = vmatprep.subr.mxu0 %v2096
        %2204 = vmatpush1.msra.mxu0 %v2095
        %2205 = vmatprep.subr.mxu0 %v2099
        %2206 = vmatpush1.msra.mxu0 %v2098
        %2207 = vmatprep.subr.mxu0 %v2102
        %2208 = vmatpush1.msra.mxu0 %v2101
        %2209 = vmatprep.subr.mxu0 %v2105
        %2210 = vmatpush1.msra.mxu0 %v2104
        %2211 = vmatprep.subr.mxu0 %v2108
        %2212 = vmatpush1.msra.mxu0 %v2107
        %2213 = vmatprep.subr.mxu0 %v2111
        %2214 = vmatpush1.msra.mxu0 %v2110
        %2215 = vmatprep.subr.mxu0 %v2114
        %2216 = vmatpush1.msra.mxu0 %v2113
        %2217 = vmatprep.subr.mxu0 %v2117
        %2218 = vmatpush1.msra.mxu0 %v2116
        %2219 = vmatprep.subr.mxu0 %v2120
        %2220 = vmatpush1.msra.mxu0 %v2119
        %2221 = vmatprep.subr.mxu0 %v2123
        %2222 = vmatpush1.msra.mxu0 %v2122
        %2223 = vmatprep.subr.mxu0 %v2126
        %2224 = vmatpush1.msra.mxu0 %v2125
        %2225 = vmatprep.subr.mxu0 %v2129
        %2226 = vmatpush1.msra.mxu0 %v2128
        %2227 = vmatprep.subr.mxu0 %v2132
        %2228 = vmatpush1.msra.mxu0 %v2131
        %2229 = vmatprep.subr.mxu0 %v2135
        %2230 = vmatpush1.msra.mxu0 %v2134
        %2231 = vmatprep.subr.mxu0 %v2138
        %2232 = vmatpush1.msra.mxu0 %v2137
        %2233 = vmatprep.subr.mxu0 %v2141
        %2234 = vmatpush1.msra.mxu0 %v2140
        %2235 = vmatprep.subr.mxu0 %v2144
        %2236 = vmatpush1.msra.mxu0 %v2143
        %2237 = vmatprep.subr.mxu0 %v2147
        %2238 = vmatpush1.msra.mxu0 %v2146
        %2239 = vmatprep.subr.mxu0 %v2150
        %2240 = vmatpush1.msra.mxu0 %v2149
        %2241 = vmatprep.subr.mxu0 %v2153
        %2242 = vmatpush1.msra.mxu0 %v2152
        %2243 = vmatprep.subr.mxu0 %v2156
        %2244 = vmatpush1.msra.mxu0 %v2155
        %2245 = vmatprep.subr.mxu0 %v2159
        %2246 = vmatpush1.msra.mxu0 %v2158
        %2247 = vmatprep.subr.mxu0 %v2162
        %2248 = vmatpush1.msra.mxu0 %v2161
        %2249 = vmatprep.subr.mxu0 %v2165
        %2250 = vmatpush1.msra.mxu0 %v2164
        %2251 = vmatprep.subr.mxu0 %v2168
        %2252 = vmatpush1.msra.mxu0 %v2167
        %2253 = vmatprep.subr.mxu0 %v2171
        %2254 = vmatpush1.msra.mxu0 %v2170
        %2255 = vmatprep.subr.mxu0 %v2174
        %2256 = vmatpush1.msra.mxu0 %v2173
        %2257 = vmatprep.subr.mxu0 %v2177
        %2258 = vmatpush1.msra.mxu0 %v2176
        %2259 = vmatprep.subr.mxu0 %v2180
        %2260 = vmatpush1.msra.mxu0 %v2179
        %2261 = vmatprep.subr.mxu0 %v2183
        %2262 = vmatpush1.msra.mxu0 %v2182
        %2263 = vmatprep.subr.mxu0 %v2186
        %2264 = vmatpush1.msra.mxu0 %v2185
        %2265 = vmatprep.mubr.f32.mxu0 %v2008
        %2266 = vmatmul.mubr.f32.gmra.mrb[0].mxu0 %v2006
        %v2267 = vpop.f32.mrb[0].mxu0
        %v2268 = vadd.f32 0.0, %v2267
        %v2269 = vpop.f32.mrb[0].mxu0
        %v2270 = vadd.f32 0.0, %v2269
        %2271 = vmatprep.mubr.f32.mxu0 %v2014
        %2272 = vmatmul.mubr.f32.gmra.mrb[0].mxu0 %v2012
        %v2273 = vpop.f32.mrb[0].mxu0
        %v2274 = vadd.f32 0.0, %v2273
        %v2275 = vpop.f32.mrb[0].mxu0
        %v2276 = vadd.f32 0.0, %v2275
        %2277 = vdwg.mxu0
        %2278 = vmatprep.subr.mxu0 %v2189
        %2279 = vmatpush1.msra.mxu0 %v2188
        %2280 = vmatprep.subr.mxu0 %v2192
        %2281 = vmatpush1.msra.mxu0 %v2191
        %2282 = vmatprep.subr.mxu0 0.0
        %2283 = vmatpush1.msra.mxu0 0.0
        %2284 = vmatprep.subr.mxu0 0.0
        %2285 = vmatpush1.msra.mxu0 0.0
        %2286 = vmatprep.subr.mxu0 0.0
        %2287 = vmatpush1.msra.mxu0 0.0
        %2288 = vmatprep.subr.mxu0 0.0
        %2289 = vmatpush1.msra.mxu0 0.0
        %2290 = vmatprep.subr.mxu0 0.0
        %2291 = vmatpush1.msra.mxu0 0.0
        %2292 = vmatprep.subr.mxu0 0.0
        %2293 = vmatpush1.msra.mxu0 0.0
        %2294 = vmatprep.subr.mxu0 0.0
        %2295 = vmatpush1.msra.mxu0 0.0
        %2296 = vmatprep.subr.mxu0 0.0
        %2297 = vmatpush1.msra.mxu0 0.0
        %2298 = vmatprep.subr.mxu0 0.0
        %2299 = vmatpush1.msra.mxu0 0.0
        %2300 = vmatprep.subr.mxu0 0.0
        %2301 = vmatpush1.msra.mxu0 0.0
        %2302 = vmatprep.subr.mxu0 0.0
        %2303 = vmatpush1.msra.mxu0 0.0
        %2304 = vmatprep.subr.mxu0 0.0
        %2305 = vmatpush1.msra.mxu0 0.0
        %2306 = vmatprep.subr.mxu0 0.0
        %2307 = vmatpush1.msra.mxu0 0.0
        %2308 = vmatprep.subr.mxu0 0.0
        %2309 = vmatpush1.msra.mxu0 0.0
        %2310 = vmatprep.subr.mxu0 0.0
        %2311 = vmatpush1.msra.mxu0 0.0
        %2312 = vmatprep.subr.mxu0 0.0
        %2313 = vmatpush1.msra.mxu0 0.0
        %2314 = vmatprep.subr.mxu0 0.0
        %2315 = vmatpush1.msra.mxu0 0.0
        %2316 = vmatprep.subr.mxu0 0.0
        %2317 = vmatpush1.msra.mxu0 0.0
        %2318 = vmatprep.subr.mxu0 0.0
        %2319 = vmatpush1.msra.mxu0 0.0
        %2320 = vmatprep.subr.mxu0 0.0
        %2321 = vmatpush1.msra.mxu0 0.0
        %2322 = vmatprep.subr.mxu0 0.0
        %2323 = vmatpush1.msra.mxu0 0.0
        %2324 = vmatprep.subr.mxu0 0.0
        %2325 = vmatpush1.msra.mxu0 0.0
        %2326 = vmatprep.subr.mxu0 0.0
        %2327 = vmatpush1.msra.mxu0 0.0
        %2328 = vmatprep.subr.mxu0 0.0
        %2329 = vmatpush1.msra.mxu0 0.0
        %2330 = vmatprep.subr.mxu0 0.0
        %2331 = vmatpush1.msra.mxu0 0.0
        %2332 = vmatprep.subr.mxu0 0.0
        %2333 = vmatpush1.msra.mxu0 0.0
        %2334 = vmatprep.subr.mxu0 0.0
        %2335 = vmatpush1.msra.mxu0 0.0
        %2336 = vmatprep.subr.mxu0 0.0
        %2337 = vmatpush1.msra.mxu0 0.0
        %2338 = vmatprep.subr.mxu0 0.0
        %2339 = vmatpush1.msra.mxu0 0.0
        %2340 = vmatprep.subr.mxu0 0.0
        %2341 = vmatpush1.msra.mxu0 0.0
        %2342 = vmatprep.mubr.f32.mxu0 0.0
        %2343 = vmatmul.mubr.f32.gmra.mrb[0].mxu0 %v2196
        %v2344 = vpop.f32.mrb[0].mxu0
        %v2345 = vadd.f32 %v2268, %v2344
        %v2346 = vpop.f32.mrb[0].mxu0
        %v2347 = vadd.f32 %v2270, %v2346
        %2348 = vmatprep.mubr.f32.mxu0 0.0
        %2349 = vmatmul.mubr.f32.gmra.mrb[0].mxu0 %v2199
        %v2350 = vpop.f32.mrb[0].mxu0
        %v2351 = vadd.f32 %v2274, %v2350
        %v2352 = vpop.f32.mrb[0].mxu0
        %v2353 = vadd.f32 %v2276, %v2352
        %2354 = vdwg.mxu0
        %2355 = vmatprep.subr.mxu0 0.0
        %2356 = vmatpush1.msra.mxu0 %v2094
        %2357 = vmatprep.subr.mxu0 0.0
        %2358 = vmatpush1.msra.mxu0 %v2097
        %2359 = vmatprep.subr.mxu0 0.0
        %2360 = vmatpush1.msra.mxu0 %v2100
        %2361 = vmatprep.subr.mxu0 0.0
        %2362 = vmatpush1.msra.mxu0 %v2103
        %2363 = vmatprep.subr.mxu0 0.0
        %2364 = vmatpush1.msra.mxu0 %v2106
        %2365 = vmatprep.subr.mxu0 0.0
        %2366 = vmatpush1.msra.mxu0 %v2109
        %2367 = vmatprep.subr.mxu0 0.0
        %2368 = vmatpush1.msra.mxu0 %v2112
        %2369 = vmatprep.subr.mxu0 0.0
        %2370 = vmatpush1.msra.mxu0 %v2115
        %2371 = vmatprep.subr.mxu0 0.0
        %2372 = vmatpush1.msra.mxu0 %v2118
        %2373 = vmatprep.subr.mxu0 0.0
        %2374 = vmatpush1.msra.mxu0 %v2121
        %2375 = vmatprep.subr.mxu0 0.0
        %2376 = vmatpush1.msra.mxu0 %v2124
        %2377 = vmatprep.subr.mxu0 0.0
        %2378 = vmatpush1.msra.mxu0 %v2127
        %2379 = vmatprep.subr.mxu0 0.0
        %2380 = vmatpush1.msra.mxu0 %v2130
        %2381 = vmatprep.subr.mxu0 0.0
        %2382 = vmatpush1.msra.mxu0 %v2133
        %2383 = vmatprep.subr.mxu0 0.0
        %2384 = vmatpush1.msra.mxu0 %v2136
        %2385 = vmatprep.subr.mxu0 0.0
        %2386 = vmatpush1.msra.mxu0 %v2139
        %2387 = vmatprep.subr.mxu0 0.0
        %2388 = vmatpush1.msra.mxu0 %v2142
        %2389 = vmatprep.subr.mxu0 0.0
        %2390 = vmatpush1.msra.mxu0 %v2145
        %2391 = vmatprep.subr.mxu0 0.0
        %2392 = vmatpush1.msra.mxu0 %v2148
        %2393 = vmatprep.subr.mxu0 0.0
        %2394 = vmatpush1.msra.mxu0 %v2151
        %2395 = vmatprep.subr.mxu0 0.0
        %2396 = vmatpush1.msra.mxu0 %v2154
        %2397 = vmatprep.subr.mxu0 0.0
        %2398 = vmatpush1.msra.mxu0 %v2157
        %2399 = vmatprep.subr.mxu0 0.0
        %2400 = vmatpush1.msra.mxu0 %v2160
        %2401 = vmatprep.subr.mxu0 0.0
        %2402 = vmatpush1.msra.mxu0 %v2163
        %2403 = vmatprep.subr.mxu0 0.0
        %2404 = vmatpush1.msra.mxu0 %v2166
        %2405 = vmatprep.subr.mxu0 0.0
        %2406 = vmatpush1.msra.mxu0 %v2169
        %2407 = vmatprep.subr.mxu0 0.0
        %2408 = vmatpush1.msra.mxu0 %v2172
        %2409 = vmatprep.subr.mxu0 0.0
        %2410 = vmatpush1.msra.mxu0 %v2175
        %2411 = vmatprep.subr.mxu0 0.0
        %2412 = vmatpush1.msra.mxu0 %v2178
        %2413 = vmatprep.subr.mxu0 0.0
        %2414 = vmatpush1.msra.mxu0 %v2181
        %2415 = vmatprep.subr.mxu0 0.0
        %2416 = vmatpush1.msra.mxu0 %v2184
        %2417 = vmatprep.subr.mxu0 0.0
        %2418 = vmatpush1.msra.mxu0 %v2187
        %2419 = vmatprep.mubr.f32.mxu0 %v2008
        %2420 = vmatmul.mubr.f32.gmra.mrb[0].mxu0 %v2006
        %v2421 = vpop.f32.mrb[0].mxu0
        %v2422 = vadd.f32 0.0, %v2421
        %v2423 = vpop.f32.mrb[0].mxu0
        %2424 = vmatprep.mubr.f32.mxu0 %v2014
        %2425 = vmatmul.mubr.f32.gmra.mrb[0].mxu0 %v2012
        %v2426 = vpop.f32.mrb[0].mxu0
        %v2427 = vadd.f32 0.0, %v2426
        %v2428 = vpop.f32.mrb[0].mxu0
        %2429 = vdwg.mxu0
        %2430 = vmatprep.subr.mxu0 0.0
        %2431 = vmatpush1.msra.mxu0 %v2190
        %2432 = vmatprep.subr.mxu0 0.0
        %2433 = vmatpush1.msra.mxu0 %v2193
        %2434 = vmatprep.subr.mxu0 0.0
        %2435 = vmatpush1.msra.mxu0 0.0
        %2436 = vmatprep.subr.mxu0 0.0
        %2437 = vmatpush1.msra.mxu0 0.0
        %2438 = vmatprep.subr.mxu0 0.0
        %2439 = vmatpush1.msra.mxu0 0.0
        %2440 = vmatprep.subr.mxu0 0.0
        %2441 = vmatpush1.msra.mxu0 0.0
        %2442 = vmatprep.subr.mxu0 0.0
        %2443 = vmatpush1.msra.mxu0 0.0
        %2444 = vmatprep.subr.mxu0 0.0
        %2445 = vmatpush1.msra.mxu0 0.0
        %2446 = vmatprep.subr.mxu0 0.0
        %2447 = vmatpush1.msra.mxu0 0.0
        %2448 = vmatprep.subr.mxu0 0.0
        %2449 = vmatpush1.msra.mxu0 0.0
        %2450 = vmatprep.subr.mxu0 0.0
        %2451 = vmatpush1.msra.mxu0 0.0
        %2452 = vmatprep.subr.mxu0 0.0
        %2453 = vmatpush1.msra.mxu0 0.0
        %2454 = vmatprep.subr.mxu0 0.0
        %2455 = vmatpush1.msra.mxu0 0.0
        %2456 = vmatprep.subr.mxu0 0.0
        %2457 = vmatpush1.msra.mxu0 0.0
        %2458 = vmatprep.subr.mxu0 0.0
        %2459 = vmatpush1.msra.mxu0 0.0
        %2460 = vmatprep.subr.mxu0 0.0
        %2461 = vmatpush1.msra.mxu0 0.0
        %2462 = vmatprep.subr.mxu0 0.0
        %2463 = vmatpush1.msra.mxu0 0.0
        %2464 = vmatprep.subr.mxu0 0.0
        %2465 = vmatpush1.msra.mxu0 0.0
        %2466 = vmatprep.subr.mxu0 0.0
        %2467 = vmatpush1.msra.mxu0 0.0
        %2468 = vmatprep.subr.mxu0 0.0
        %2469 = vmatpush1.msra.mxu0 0.0
        %2470 = vmatprep.subr.mxu0 0.0
        %2471 = vmatpush1.msra.mxu0 0.0
        %2472 = vmatprep.subr.mxu0 0.0
        %2473 = vmatpush1.msra.mxu0 0.0
        %2474 = vmatprep.subr.mxu0 0.0
        %2475 = vmatpush1.msra.mxu0 0.0
        %2476 = vmatprep.subr.mxu0 0.0
        %2477 = vmatpush1.msra.mxu0 0.0
        %2478 = vmatprep.subr.mxu0 0.0
        %2479 = vmatpush1.msra.mxu0 0.0
        %2480 = vmatprep.subr.mxu0 0.0
        %2481 = vmatpush1.msra.mxu0 0.0
        %2482 = vmatprep.subr.mxu0 0.0
        %2483 = vmatpush1.msra.mxu0 0.0
        %2484 = vmatprep.subr.mxu0 0.0
        %2485 = vmatpush1.msra.mxu0 0.0
        %2486 = vmatprep.subr.mxu0 0.0
        %2487 = vmatpush1.msra.mxu0 0.0
        %2488 = vmatprep.subr.mxu0 0.0
        %2489 = vmatpush1.msra.mxu0 0.0
        %2490 = vmatprep.subr.mxu0 0.0
        %2491 = vmatpush1.msra.mxu0 0.0
        %2492 = vmatprep.subr.mxu0 0.0
        %2493 = vmatpush1.msra.mxu0 0.0
        %2494 = vmatprep.mubr.f32.mxu0 0.0
        %2495 = vmatmul.mubr.f32.gmra.mrb[0].mxu0 %v2196
        %v2496 = vpop.f32.mrb[0].mxu0
        %v2497 = vadd.f32 %v2422, %v2496
        %v2498 = vpop.f32.mrb[0].mxu0
        %2499 = vmatprep.mubr.f32.mxu0 0.0
        %2500 = vmatmul.mubr.f32.gmra.mrb[0].mxu0 %v2199
        %v2501 = vpop.f32.mrb[0].mxu0
        %v2502 = vadd.f32 %v2427, %v2501
        %v2503 = vpop.f32.mrb[0].mxu0
        %2504 = vdwg.mxu0
        %v2506 = vsel %vm2194, %v1820, 0
        %v2509 = vsel %vm2194, %v1825, 0
        %2511 = vmatprep.subr.mxu0 %v1829
        %2512 = vmatpush1.msra.mxu0 %v1828
        %2513 = vmatprep.subr.mxu0 %v1832
        %2514 = vmatpush1.msra.mxu0 %v1831
        %2515 = vmatprep.subr.mxu0 %v1835
        %2516 = vmatpush1.msra.mxu0 %v1834
        %2517 = vmatprep.subr.mxu0 %v1838
        %2518 = vmatpush1.msra.mxu0 %v1837
        %2519 = vmatprep.subr.mxu0 %v1841
        %2520 = vmatpush1.msra.mxu0 %v1840
        %2521 = vmatprep.subr.mxu0 %v1844
        %2522 = vmatpush1.msra.mxu0 %v1843
        %2523 = vmatprep.subr.mxu0 %v1847
        %2524 = vmatpush1.msra.mxu0 %v1846
        %2525 = vmatprep.subr.mxu0 %v1850
        %2526 = vmatpush1.msra.mxu0 %v1849
        %2527 = vmatprep.subr.mxu0 %v1853
        %2528 = vmatpush1.msra.mxu0 %v1852
        %2529 = vmatprep.subr.mxu0 %v1856
        %2530 = vmatpush1.msra.mxu0 %v1855
        %2531 = vmatprep.subr.mxu0 %v1859
        %2532 = vmatpush1.msra.mxu0 %v1858
        %2533 = vmatprep.subr.mxu0 %v1862
        %2534 = vmatpush1.msra.mxu0 %v1861
        %2535 = vmatprep.subr.mxu0 %v1865
        %2536 = vmatpush1.msra.mxu0 %v1864
        %2537 = vmatprep.subr.mxu0 %v1868
        %2538 = vmatpush1.msra.mxu0 %v1867
        %2539 = vmatprep.subr.mxu0 %v1871
        %2540 = vmatpush1.msra.mxu0 %v1870
        %2541 = vmatprep.subr.mxu0 %v1874
        %2542 = vmatpush1.msra.mxu0 %v1873
        %2543 = vmatprep.subr.mxu0 %v1877
        %2544 = vmatpush1.msra.mxu0 %v1876
        %2545 = vmatprep.subr.mxu0 %v1880
        %2546 = vmatpush1.msra.mxu0 %v1879
        %2547 = vmatprep.subr.mxu0 %v1883
        %2548 = vmatpush1.msra.mxu0 %v1882
        %2549 = vmatprep.subr.mxu0 %v1886
        %2550 = vmatpush1.msra.mxu0 %v1885
        %2551 = vmatprep.subr.mxu0 %v1889
        %2552 = vmatpush1.msra.mxu0 %v1888
        %2553 = vmatprep.subr.mxu0 %v1892
        %2554 = vmatpush1.msra.mxu0 %v1891
        %2555 = vmatprep.subr.mxu0 %v1895
        %2556 = vmatpush1.msra.mxu0 %v1894
        %2557 = vmatprep.subr.mxu0 %v1898
        %2558 = vmatpush1.msra.mxu0 %v1897
        %2559 = vmatprep.subr.mxu0 %v1901
        %2560 = vmatpush1.msra.mxu0 %v1900
        %2561 = vmatprep.subr.mxu0 %v1904
        %2562 = vmatpush1.msra.mxu0 %v1903
        %2563 = vmatprep.subr.mxu0 %v1907
        %2564 = vmatpush1.msra.mxu0 %v1906
        %2565 = vmatprep.subr.mxu0 %v1910
        %2566 = vmatpush1.msra.mxu0 %v1909
        %2567 = vmatprep.subr.mxu0 %v1913
        %2568 = vmatpush1.msra.mxu0 %v1912
        %2569 = vmatprep.subr.mxu0 %v1916
        %2570 = vmatpush1.msra.mxu0 %v1915
        %2571 = vmatprep.subr.mxu0 %v1919
        %2572 = vmatpush1.msra.mxu0 %v1918
        %2573 = vmatprep.subr.mxu0 %v1922
        %2574 = vmatpush1.msra.mxu0 %v1921
        %2575 = vmatprep.mubr.f32.mxu0 %v1745
        %2576 = vmatmul.mubr.f32.gmra.mrb[0].mxu0 %v1743
        %v2577 = vpop.f32.mrb[0].mxu0
        %v2578 = vadd.f32 %v2345, %v2577
        %v2579 = vpop.f32.mrb[0].mxu0
        %v2580 = vadd.f32 %v2347, %v2579
        %2581 = vmatprep.mubr.f32.mxu0 %v1751
        %2582 = vmatmul.mubr.f32.gmra.mrb[0].mxu0 %v1749
        %v2583 = vpop.f32.mrb[0].mxu0
        %v2584 = vadd.f32 %v2351, %v2583
        %v2585 = vpop.f32.mrb[0].mxu0
        %v2586 = vadd.f32 %v2353, %v2585
        %2587 = vdwg.mxu0
        %2588 = vmatprep.subr.mxu0 %v1925
        %2589 = vmatpush1.msra.mxu0 %v1924
        %2590 = vmatprep.subr.mxu0 %v1928
        %2591 = vmatpush1.msra.mxu0 %v1927
        %2592 = vmatprep.subr.mxu0 0.0
        %2593 = vmatpush1.msra.mxu0 0.0
        %2594 = vmatprep.subr.mxu0 0.0
        %2595 = vmatpush1.msra.mxu0 0.0
        %2596 = vmatprep.subr.mxu0 0.0
        %2597 = vmatpush1.msra.mxu0 0.0
        %2598 = vmatprep.subr.mxu0 0.0
        %2599 = vmatpush1.msra.mxu0 0.0
        %2600 = vmatprep.subr.mxu0 0.0
        %2601 = vmatpush1.msra.mxu0 0.0
        %2602 = vmatprep.subr.mxu0 0.0
        %2603 = vmatpush1.msra.mxu0 0.0
        %2604 = vmatprep.subr.mxu0 0.0
        %2605 = vmatpush1.msra.mxu0 0.0
        %2606 = vmatprep.subr.mxu0 0.0
        %2607 = vmatpush1.msra.mxu0 0.0
        %2608 = vmatprep.subr.mxu0 0.0
        %2609 = vmatpush1.msra.mxu0 0.0
        %2610 = vmatprep.subr.mxu0 0.0
        %2611 = vmatpush1.msra.mxu0 0.0
        %2612 = vmatprep.subr.mxu0 0.0
        %2613 = vmatpush1.msra.mxu0 0.0
        %2614 = vmatprep.subr.mxu0 0.0
        %2615 = vmatpush1.msra.mxu0 0.0
        %2616 = vmatprep.subr.mxu0 0.0
        %2617 = vmatpush1.msra.mxu0 0.0
        %2618 = vmatprep.subr.mxu0 0.0
        %2619 = vmatpush1.msra.mxu0 0.0
        %2620 = vmatprep.subr.mxu0 0.0
        %2621 = vmatpush1.msra.mxu0 0.0
        %2622 = vmatprep.subr.mxu0 0.0
        %2623 = vmatpush1.msra.mxu0 0.0
        %2624 = vmatprep.subr.mxu0 0.0
        %2625 = vmatpush1.msra.mxu0 0.0
        %2626 = vmatprep.subr.mxu0 0.0
        %2627 = vmatpush1.msra.mxu0 0.0
        %2628 = vmatprep.subr.mxu0 0.0
        %2629 = vmatpush1.msra.mxu0 0.0
        %2630 = vmatprep.subr.mxu0 0.0
        %2631 = vmatpush1.msra.mxu0 0.0
        %2632 = vmatprep.subr.mxu0 0.0
        %2633 = vmatpush1.msra.mxu0 0.0
        %2634 = vmatprep.subr.mxu0 0.0
        %2635 = vmatpush1.msra.mxu0 0.0
        %2636 = vmatprep.subr.mxu0 0.0
        %2637 = vmatpush1.msra.mxu0 0.0
        %2638 = vmatprep.subr.mxu0 0.0
        %2639 = vmatpush1.msra.mxu0 0.0
        %2640 = vmatprep.subr.mxu0 0.0
        %2641 = vmatpush1.msra.mxu0 0.0
        %2642 = vmatprep.subr.mxu0 0.0
        %2643 = vmatpush1.msra.mxu0 0.0
        %2644 = vmatprep.subr.mxu0 0.0
        %2645 = vmatpush1.msra.mxu0 0.0
        %2646 = vmatprep.subr.mxu0 0.0
        %2647 = vmatpush1.msra.mxu0 0.0
        %2648 = vmatprep.subr.mxu0 0.0
        %2649 = vmatpush1.msra.mxu0 0.0
        %2650 = vmatprep.subr.mxu0 0.0
        %2651 = vmatpush1.msra.mxu0 0.0
        %2652 = vmatprep.mubr.f32.mxu0 0.0
        %2653 = vmatmul.mubr.f32.gmra.mrb[0].mxu0 %v2506
        %v2654 = vpop.f32.mrb[0].mxu0
        %v2655 = vadd.f32 %v2578, %v2654
        %v2656 = vpop.f32.mrb[0].mxu0
        %v2657 = vadd.f32 %v2580, %v2656
        %2658 = vmatprep.mubr.f32.mxu0 0.0
        %2659 = vmatmul.mubr.f32.gmra.mrb[0].mxu0 %v2509
        %v2660 = vpop.f32.mrb[0].mxu0
        %v2661 = vadd.f32 %v2584, %v2660
        %v2662 = vpop.f32.mrb[0].mxu0
        %v2663 = vadd.f32 %v2586, %v2662
        %2664 = vdwg.mxu0
        %2665 = vmatprep.subr.mxu0 0.0
        %2666 = vmatpush1.msra.mxu0 %v1830
        %2667 = vmatprep.subr.mxu0 0.0
        %2668 = vmatpush1.msra.mxu0 %v1833
        %2669 = vmatprep.subr.mxu0 0.0
        %2670 = vmatpush1.msra.mxu0 %v1836
        %2671 = vmatprep.subr.mxu0 0.0
        %2672 = vmatpush1.msra.mxu0 %v1839
        %2673 = vmatprep.subr.mxu0 0.0
        %2674 = vmatpush1.msra.mxu0 %v1842
        %2675 = vmatprep.subr.mxu0 0.0
        %2676 = vmatpush1.msra.mxu0 %v1845
        %2677 = vmatprep.subr.mxu0 0.0
        %2678 = vmatpush1.msra.mxu0 %v1848
        %2679 = vmatprep.subr.mxu0 0.0
        %2680 = vmatpush1.msra.mxu0 %v1851
        %2681 = vmatprep.subr.mxu0 0.0
        %2682 = vmatpush1.msra.mxu0 %v1854
        %2683 = vmatprep.subr.mxu0 0.0
        %2684 = vmatpush1.msra.mxu0 %v1857
        %2685 = vmatprep.subr.mxu0 0.0
        %2686 = vmatpush1.msra.mxu0 %v1860
        %2687 = vmatprep.subr.mxu0 0.0
        %2688 = vmatpush1.msra.mxu0 %v1863
        %2689 = vmatprep.subr.mxu0 0.0
        %2690 = vmatpush1.msra.mxu0 %v1866
        %2691 = vmatprep.subr.mxu0 0.0
        %2692 = vmatpush1.msra.mxu0 %v1869
        %2693 = vmatprep.subr.mxu0 0.0
        %2694 = vmatpush1.msra.mxu0 %v1872
        %2695 = vmatprep.subr.mxu0 0.0
        %2696 = vmatpush1.msra.mxu0 %v1875
        %2697 = vmatprep.subr.mxu0 0.0
        %2698 = vmatpush1.msra.mxu0 %v1878
        %2699 = vmatprep.subr.mxu0 0.0
        %2700 = vmatpush1.msra.mxu0 %v1881
        %2701 = vmatprep.subr.mxu0 0.0
        %2702 = vmatpush1.msra.mxu0 %v1884
        %2703 = vmatprep.subr.mxu0 0.0
        %2704 = vmatpush1.msra.mxu0 %v1887
        %2705 = vmatprep.subr.mxu0 0.0
        %2706 = vmatpush1.msra.mxu0 %v1890
        %2707 = vmatprep.subr.mxu0 0.0
        %2708 = vmatpush1.msra.mxu0 %v1893
        %2709 = vmatprep.subr.mxu0 0.0
        %2710 = vmatpush1.msra.mxu0 %v1896
        %2711 = vmatprep.subr.mxu0 0.0
        %2712 = vmatpush1.msra.mxu0 %v1899
        %2713 = vmatprep.subr.mxu0 0.0
        %2714 = vmatpush1.msra.mxu0 %v1902
        %2715 = vmatprep.subr.mxu0 0.0
        %2716 = vmatpush1.msra.mxu0 %v1905
        %2717 = vmatprep.subr.mxu0 0.0
        %2718 = vmatpush1.msra.mxu0 %v1908
        %2719 = vmatprep.subr.mxu0 0.0
        %2720 = vmatpush1.msra.mxu0 %v1911
        %2721 = vmatprep.subr.mxu0 0.0
        %2722 = vmatpush1.msra.mxu0 %v1914
        %2723 = vmatprep.subr.mxu0 0.0
        %2724 = vmatpush1.msra.mxu0 %v1917
        %2725 = vmatprep.subr.mxu0 0.0
        %2726 = vmatpush1.msra.mxu0 %v1920
        %2727 = vmatprep.subr.mxu0 0.0
        %2728 = vmatpush1.msra.mxu0 %v1923
        %2729 = vmatprep.mubr.f32.mxu0 %v1745
        %2730 = vmatmul.mubr.f32.gmra.mrb[0].mxu0 %v1743
        %v2731 = vpop.f32.mrb[0].mxu0
        %v2732 = vadd.f32 %v2497, %v2731
        %v2733 = vpop.f32.mrb[0].mxu0
        %2734 = vmatprep.mubr.f32.mxu0 %v1751
        %2735 = vmatmul.mubr.f32.gmra.mrb[0].mxu0 %v1749
        %v2736 = vpop.f32.mrb[0].mxu0
        %v2737 = vadd.f32 %v2502, %v2736
        %v2738 = vpop.f32.mrb[0].mxu0
        %2739 = vdwg.mxu0
        %2740 = vmatprep.subr.mxu0 0.0
        %2741 = vmatpush1.msra.mxu0 %v1926
        %2742 = vmatprep.subr.mxu0 0.0
        %2743 = vmatpush1.msra.mxu0 %v1929
        %2744 = vmatprep.subr.mxu0 0.0
        %2745 = vmatpush1.msra.mxu0 0.0
        %2746 = vmatprep.subr.mxu0 0.0
        %2747 = vmatpush1.msra.mxu0 0.0
        %2748 = vmatprep.subr.mxu0 0.0
        %2749 = vmatpush1.msra.mxu0 0.0
        %2750 = vmatprep.subr.mxu0 0.0
        %2751 = vmatpush1.msra.mxu0 0.0
        %2752 = vmatprep.subr.mxu0 0.0
        %2753 = vmatpush1.msra.mxu0 0.0
        %2754 = vmatprep.subr.mxu0 0.0
        %2755 = vmatpush1.msra.mxu0 0.0
        %2756 = vmatprep.subr.mxu0 0.0
        %2757 = vmatpush1.msra.mxu0 0.0
        %2758 = vmatprep.subr.mxu0 0.0
        %2759 = vmatpush1.msra.mxu0 0.0
        %2760 = vmatprep.subr.mxu0 0.0
        %2761 = vmatpush1.msra.mxu0 0.0
        %2762 = vmatprep.subr.mxu0 0.0
        %2763 = vmatpush1.msra.mxu0 0.0
        %2764 = vmatprep.subr.mxu0 0.0
        %2765 = vmatpush1.msra.mxu0 0.0
        %2766 = vmatprep.subr.mxu0 0.0
        %2767 = vmatpush1.msra.mxu0 0.0
        %2768 = vmatprep.subr.mxu0 0.0
        %2769 = vmatpush1.msra.mxu0 0.0
        %2770 = vmatprep.subr.mxu0 0.0
        %2771 = vmatpush1.msra.mxu0 0.0
        %2772 = vmatprep.subr.mxu0 0.0
        %2773 = vmatpush1.msra.mxu0 0.0
        %2774 = vmatprep.subr.mxu0 0.0
        %2775 = vmatpush1.msra.mxu0 0.0
        %2776 = vmatprep.subr.mxu0 0.0
        %2777 = vmatpush1.msra.mxu0 0.0
        %2778 = vmatprep.subr.mxu0 0.0
        %2779 = vmatpush1.msra.mxu0 0.0
        %2780 = vmatprep.subr.mxu0 0.0
        %2781 = vmatpush1.msra.mxu0 0.0
        %2782 = vmatprep.subr.mxu0 0.0
        %2783 = vmatpush1.msra.mxu0 0.0
        %2784 = vmatprep.subr.mxu0 0.0
        %2785 = vmatpush1.msra.mxu0 0.0
        %2786 = vmatprep.subr.mxu0 0.0
        %2787 = vmatpush1.msra.mxu0 0.0
        %2788 = vmatprep.subr.mxu0 0.0
        %2789 = vmatpush1.msra.mxu0 0.0
        %2790 = vmatprep.subr.mxu0 0.0
        %2791 = vmatpush1.msra.mxu0 0.0
        %2792 = vmatprep.subr.mxu0 0.0
        %2793 = vmatpush1.msra.mxu0 0.0
        %2794 = vmatprep.subr.mxu0 0.0
        %2795 = vmatpush1.msra.mxu0 0.0
        %2796 = vmatprep.subr.mxu0 0.0
        %2797 = vmatpush1.msra.mxu0 0.0
        %2798 = vmatprep.subr.mxu0 0.0
        %2799 = vmatpush1.msra.mxu0 0.0
        %2800 = vmatprep.subr.mxu0 0.0
        %2801 = vmatpush1.msra.mxu0 0.0
        %2802 = vmatprep.subr.mxu0 0.0
        %2803 = vmatpush1.msra.mxu0 0.0
        %2804 = vmatprep.mubr.f32.mxu0 0.0
        %2805 = vmatmul.mubr.f32.gmra.mrb[0].mxu0 %v2506
        %v2806 = vpop.f32.mrb[0].mxu0
        %v2807 = vadd.f32 %v2732, %v2806
        %v2808 = vpop.f32.mrb[0].mxu0
        %2809 = vmatprep.mubr.f32.mxu0 0.0
        %2810 = vmatmul.mubr.f32.gmra.mrb[0].mxu0 %v2509
        %v2811 = vpop.f32.mrb[0].mxu0
        %v2812 = vadd.f32 %v2737, %v2811
        %v2813 = vpop.f32.mrb[0].mxu0
        %2814 = vdwg.mxu0
        %s2815 = scalar_lea.vmem %s6, 32
        %v2816 = vld [vmem:[%s2815] sm:$0xff]
        %v2817 = vld [vmem:[%s2815 + $0x8] sm:$0x3]
        %v2819 = vsel %vm1659, %v2816, 0
        %v2822 = vsel %vm1659, %v2817, 0
        %2824 = vmatprep.subr.mxu0 %v1649
        %2825 = vmatpush1.msra.mxu0 %v1648
        %2826 = vmatprep.subr.mxu0 %v1652
        %2827 = vmatpush1.msra.mxu0 %v1651
        %2828 = vmatprep.subr.mxu0 %v1671
        %2829 = vmatpush1.msra.mxu0 %v1668
        %2830 = vmatprep.subr.mxu0 0.0
        %2831 = vmatpush1.msra.mxu0 0.0
        %2832 = vmatprep.subr.mxu0 0.0
        %2833 = vmatpush1.msra.mxu0 0.0
        %2834 = vmatprep.subr.mxu0 0.0
        %2835 = vmatpush1.msra.mxu0 0.0
        %2836 = vmatprep.subr.mxu0 0.0
        %2837 = vmatpush1.msra.mxu0 0.0
        %2838 = vmatprep.subr.mxu0 0.0
        %2839 = vmatpush1.msra.mxu0 0.0
        %2840 = vmatprep.subr.mxu0 0.0
        %2841 = vmatpush1.msra.mxu0 0.0
        %2842 = vmatprep.subr.mxu0 0.0
        %2843 = vmatpush1.msra.mxu0 0.0
        %2844 = vmatprep.subr.mxu0 0.0
        %2845 = vmatpush1.msra.mxu0 0.0
        %2846 = vmatprep.subr.mxu0 0.0
        %2847 = vmatpush1.msra.mxu0 0.0
        %2848 = vmatprep.subr.mxu0 0.0
        %2849 = vmatpush1.msra.mxu0 0.0
        %2850 = vmatprep.subr.mxu0 0.0
        %2851 = vmatpush1.msra.mxu0 0.0
        %2852 = vmatprep.subr.mxu0 0.0
        %2853 = vmatpush1.msra.mxu0 0.0
        %2854 = vmatprep.subr.mxu0 0.0
        %2855 = vmatpush1.msra.mxu0 0.0
        %2856 = vmatprep.subr.mxu0 0.0
        %2857 = vmatpush1.msra.mxu0 0.0
        %2858 = vmatprep.subr.mxu0 0.0
        %2859 = vmatpush1.msra.mxu0 0.0
        %2860 = vmatprep.subr.mxu0 0.0
        %2861 = vmatpush1.msra.mxu0 0.0
        %2862 = vmatprep.subr.mxu0 0.0
        %2863 = vmatpush1.msra.mxu0 0.0
        %2864 = vmatprep.subr.mxu0 0.0
        %2865 = vmatpush1.msra.mxu0 0.0
        %2866 = vmatprep.subr.mxu0 0.0
        %2867 = vmatpush1.msra.mxu0 0.0
        %2868 = vmatprep.subr.mxu0 0.0
        %2869 = vmatpush1.msra.mxu0 0.0
        %2870 = vmatprep.subr.mxu0 0.0
        %2871 = vmatpush1.msra.mxu0 0.0
        %2872 = vmatprep.subr.mxu0 0.0
        %2873 = vmatpush1.msra.mxu0 0.0
        %2874 = vmatprep.subr.mxu0 0.0
        %2875 = vmatpush1.msra.mxu0 0.0
        %2876 = vmatprep.subr.mxu0 0.0
        %2877 = vmatpush1.msra.mxu0 0.0
        %2878 = vmatprep.subr.mxu0 0.0
        %2879 = vmatpush1.msra.mxu0 0.0
        %2880 = vmatprep.subr.mxu0 0.0
        %2881 = vmatpush1.msra.mxu0 0.0
        %2882 = vmatprep.subr.mxu0 0.0
        %2883 = vmatpush1.msra.mxu0 0.0
        %2884 = vmatprep.subr.mxu0 0.0
        %2885 = vmatpush1.msra.mxu0 0.0
        %2886 = vmatprep.subr.mxu0 0.0
        %2887 = vmatpush1.msra.mxu0 0.0
        %2888 = vmatprep.mubr.f32.mxu0 0.0
        %2889 = vmatmul.mubr.f32.gmra.mrb[0].mxu0 %v2819
        %v2890 = vpop.f32.mrb[0].mxu0
        %v2891 = vadd.f32 0.0, %v2890
        %v2892 = vpop.f32.mrb[0].mxu0
        %v2893 = vadd.f32 0.0, %v2892
        %2894 = vmatprep.mubr.f32.mxu0 0.0
        %2895 = vmatmul.mubr.f32.gmra.mrb[0].mxu0 %v2822
        %v2896 = vpop.f32.mrb[0].mxu0
        %v2897 = vadd.f32 0.0, %v2896
        %v2898 = vpop.f32.mrb[0].mxu0
        %v2899 = vadd.f32 0.0, %v2898
        %2900 = vdwg.mxu0
        %2901 = vmatprep.subr.mxu0 0.0
        %2902 = vmatpush1.msra.mxu0 %v1650
        %2903 = vmatprep.subr.mxu0 0.0
        %2904 = vmatpush1.msra.mxu0 %v1653
        %2905 = vmatprep.subr.mxu0 0.0
        %2906 = vmatpush1.msra.mxu0 %v1674
        %2907 = vmatprep.subr.mxu0 0.0
        %2908 = vmatpush1.msra.mxu0 0.0
        %2909 = vmatprep.subr.mxu0 0.0
        %2910 = vmatpush1.msra.mxu0 0.0
        %2911 = vmatprep.subr.mxu0 0.0
        %2912 = vmatpush1.msra.mxu0 0.0
        %2913 = vmatprep.subr.mxu0 0.0
        %2914 = vmatpush1.msra.mxu0 0.0
        %2915 = vmatprep.subr.mxu0 0.0
        %2916 = vmatpush1.msra.mxu0 0.0
        %2917 = vmatprep.subr.mxu0 0.0
        %2918 = vmatpush1.msra.mxu0 0.0
        %2919 = vmatprep.subr.mxu0 0.0
        %2920 = vmatpush1.msra.mxu0 0.0
        %2921 = vmatprep.subr.mxu0 0.0
        %2922 = vmatpush1.msra.mxu0 0.0
        %2923 = vmatprep.subr.mxu0 0.0
        %2924 = vmatpush1.msra.mxu0 0.0
        %2925 = vmatprep.subr.mxu0 0.0
        %2926 = vmatpush1.msra.mxu0 0.0
        %2927 = vmatprep.subr.mxu0 0.0
        %2928 = vmatpush1.msra.mxu0 0.0
        %2929 = vmatprep.subr.mxu0 0.0
        %2930 = vmatpush1.msra.mxu0 0.0
        %2931 = vmatprep.subr.mxu0 0.0
        %2932 = vmatpush1.msra.mxu0 0.0
        %2933 = vmatprep.subr.mxu0 0.0
        %2934 = vmatpush1.msra.mxu0 0.0
        %2935 = vmatprep.subr.mxu0 0.0
        %2936 = vmatpush1.msra.mxu0 0.0
        %2937 = vmatprep.subr.mxu0 0.0
        %2938 = vmatpush1.msra.mxu0 0.0
        %2939 = vmatprep.subr.mxu0 0.0
        %2940 = vmatpush1.msra.mxu0 0.0
        %2941 = vmatprep.subr.mxu0 0.0
        %2942 = vmatpush1.msra.mxu0 0.0
        %2943 = vmatprep.subr.mxu0 0.0
        %2944 = vmatpush1.msra.mxu0 0.0
        %2945 = vmatprep.subr.mxu0 0.0
        %2946 = vmatpush1.msra.mxu0 0.0
        %2947 = vmatprep.subr.mxu0 0.0
        %2948 = vmatpush1.msra.mxu0 0.0
        %2949 = vmatprep.subr.mxu0 0.0
        %2950 = vmatpush1.msra.mxu0 0.0
        %2951 = vmatprep.subr.mxu0 0.0
        %2952 = vmatpush1.msra.mxu0 0.0
        %2953 = vmatprep.subr.mxu0 0.0
        %2954 = vmatpush1.msra.mxu0 0.0
        %2955 = vmatprep.subr.mxu0 0.0
        %2956 = vmatpush1.msra.mxu0 0.0
        %2957 = vmatprep.subr.mxu0 0.0
        %2958 = vmatpush1.msra.mxu0 0.0
        %2959 = vmatprep.subr.mxu0 0.0
        %2960 = vmatpush1.msra.mxu0 0.0
        %2961 = vmatprep.subr.mxu0 0.0
        %2962 = vmatpush1.msra.mxu0 0.0
        %2963 = vmatprep.subr.mxu0 0.0
        %2964 = vmatpush1.msra.mxu0 0.0
        %2965 = vmatprep.mubr.f32.mxu0 0.0
        %2966 = vmatmul.mubr.f32.gmra.mrb[0].mxu0 %v2819
        %v2967 = vpop.f32.mrb[0].mxu0
        %v2968 = vadd.f32 0.0, %v2967
        %v2969 = vpop.f32.mrb[0].mxu0
        %2970 = vmatprep.mubr.f32.mxu0 0.0
        %2971 = vmatmul.mubr.f32.gmra.mrb[0].mxu0 %v2822
        %v2972 = vpop.f32.mrb[0].mxu0
        %v2973 = vadd.f32 0.0, %v2972
        %v2974 = vpop.f32.mrb[0].mxu0
        %2975 = vdwg.mxu0
        %s2976 = scalar_lea.vmem %s7, 1632
        %v2977 = vld [vmem:[%s2976] sm:$0xff]
        %v2978 = vld [vmem:[%s2976 + $0x8] sm:$0xff]
        %v2979 = vld [vmem:[%s2976 + $0x10] sm:$0xff]
        %v2980 = vld [vmem:[%s2976 + $0x18] sm:$0xff]
        %v2981 = vld [vmem:[%s2976 + $0x20] sm:$0xff]
        %v2982 = vld [vmem:[%s2976 + $0x28] sm:$0xff]
        %v2983 = vld [vmem:[%s2976 + $0x30] sm:$0xff]
        %v2984 = vld [vmem:[%s2976 + $0x38] sm:$0xff]
        %v2985 = vld [vmem:[%s2976 + $0x40] sm:$0xff]
        %v2986 = vld [vmem:[%s2976 + $0x48] sm:$0xff]
        %v2987 = vld [vmem:[%s2976 + $0x50] sm:$0xff]
        %v2988 = vld [vmem:[%s2976 + $0x58] sm:$0xff]
        %v2989 = vld [vmem:[%s2976 + $0x60] sm:$0xff]
        %v2990 = vld [vmem:[%s2976 + $0x68] sm:$0xff]
        %v2991 = vld [vmem:[%s2976 + $0x70] sm:$0xff]
        %v2992 = vld [vmem:[%s2976 + $0x78] sm:$0xff]
        %v2993 = vld [vmem:[%s2976 + $0x80] sm:$0xff]
        %v2994 = vld [vmem:[%s2976 + $0x88] sm:$0xff]
        %v2995 = vld [vmem:[%s2976 + $0x90] sm:$0xff]
        %v2996 = vld [vmem:[%s2976 + $0x98] sm:$0xff]
        %v2997 = vld [vmem:[%s2976 + $0xa0] sm:$0xff]
        %v2998 = vld [vmem:[%s2976 + $0xa8] sm:$0xff]
        %v2999 = vld [vmem:[%s2976 + $0xb0] sm:$0xff]
        %v3000 = vld [vmem:[%s2976 + $0xb8] sm:$0xff]
        %v3001 = vld [vmem:[%s2976 + $0xc0] sm:$0xff]
        %v3002 = vld [vmem:[%s2976 + $0xc8] sm:$0xff]
        %v3003 = vld [vmem:[%s2976 + $0xd0] sm:$0xff]
        %v3004 = vld [vmem:[%s2976 + $0xd8] sm:$0xff]
        %v3005 = vld [vmem:[%s2976 + $0xe0] sm:$0xff]
        %v3006 = vld [vmem:[%s2976 + $0xe8] sm:$0xff]
        %v3007 = vld [vmem:[%s2976 + $0xf0] sm:$0xff]
        %v3008 = vld [vmem:[%s2976 + $0xf8] sm:$0xff]
        %v3009 = vld [vmem:[%s2976 + $0x100] sm:$0xff]
        %v3010 = vld [vmem:[%s2976 + $0x108] sm:$0xff]
        %v3011 = vld [vmem:[%s2976 + $0x110] sm:$0xff]
        %v3012 = vld [vmem:[%s2976 + $0x118] sm:$0xff]
        %v3013 = vld [vmem:[%s2976 + $0x120] sm:$0xff]
        %v3014 = vld [vmem:[%s2976 + $0x128] sm:$0xff]
        %v3015 = vld [vmem:[%s2976 + $0x130] sm:$0xff]
        %v3016 = vld [vmem:[%s2976 + $0x138] sm:$0xff]
        %v3017 = vld [vmem:[%s2976 + $0x140] sm:$0xff]
        %v3018 = vld [vmem:[%s2976 + $0x148] sm:$0xff]
        %v3019 = vld [vmem:[%s2976 + $0x150] sm:$0xff]
        %v3020 = vld [vmem:[%s2976 + $0x158] sm:$0xff]
        %v3021 = vld [vmem:[%s2976 + $0x160] sm:$0xff]
        %v3022 = vld [vmem:[%s2976 + $0x168] sm:$0xff]
        %v3023 = vld [vmem:[%s2976 + $0x170] sm:$0xff]
        %v3024 = vld [vmem:[%s2976 + $0x178] sm:$0xff]
        %v3025 = vld [vmem:[%s2976 + $0x180] sm:$0xff]
        %v3026 = vld [vmem:[%s2976 + $0x188] sm:$0xff]
        %v3027 = vld [vmem:[%s2976 + $0x190] sm:$0xff]
        %v3028 = vld [vmem:[%s2976 + $0x198] sm:$0xff]
        %v3029 = vld [vmem:[%s2976 + $0x1a0] sm:$0xff]
        %v3030 = vld [vmem:[%s2976 + $0x1a8] sm:$0xff]
        %v3031 = vld [vmem:[%s2976 + $0x1b0] sm:$0xff]
        %v3032 = vld [vmem:[%s2976 + $0x1b8] sm:$0xff]
        %v3033 = vld [vmem:[%s2976 + $0x1c0] sm:$0xff]
        %v3034 = vld [vmem:[%s2976 + $0x1c8] sm:$0xff]
        %v3035 = vld [vmem:[%s2976 + $0x1d0] sm:$0xff]
        %v3036 = vld [vmem:[%s2976 + $0x1d8] sm:$0xff]
        %v3037 = vld [vmem:[%s2976 + $0x1e0] sm:$0xff]
        %v3038 = vld [vmem:[%s2976 + $0x1e8] sm:$0xff]
        %v3039 = vld [vmem:[%s2976 + $0x1f0] sm:$0xff]
        %v3040 = vld [vmem:[%s2976 + $0x1f8] sm:$0xff]
        %v3041 = vld [vmem:[%s2976 + $0x200] sm:$0xff]
        %v3042 = vld [vmem:[%s2976 + $0x208] sm:$0xff]
        %v3043 = vld [vmem:[%s2976 + $0x210] sm:$0xff]
        %v3044 = vld [vmem:[%s2976 + $0x218] sm:$0xff]
        %v3045 = vld [vmem:[%s2976 + $0x220] sm:$0xff]
        %v3046 = vld [vmem:[%s2976 + $0x228] sm:$0xff]
        %v3047 = vld [vmem:[%s2976 + $0x230] sm:$0xff]
        %v3048 = vld [vmem:[%s2976 + $0x238] sm:$0xff]
        %v3049 = vld [vmem:[%s2976 + $0x240] sm:$0xff]
        %v3050 = vld [vmem:[%s2976 + $0x248] sm:$0xff]
        %v3051 = vld [vmem:[%s2976 + $0x250] sm:$0xff]
        %v3052 = vld [vmem:[%s2976 + $0x258] sm:$0xff]
        %v3053 = vld [vmem:[%s2976 + $0x260] sm:$0xff]
        %v3054 = vld [vmem:[%s2976 + $0x268] sm:$0xff]
        %v3055 = vld [vmem:[%s2976 + $0x270] sm:$0xff]
        %v3056 = vld [vmem:[%s2976 + $0x278] sm:$0xff]
        %v3057 = vld [vmem:[%s2976 + $0x280] sm:$0xff]
        %v3058 = vld [vmem:[%s2976 + $0x288] sm:$0xff]
        %v3059 = vld [vmem:[%s2976 + $0x290] sm:$0xff]
        %v3060 = vld [vmem:[%s2976 + $0x298] sm:$0xff]
        %v3061 = vld [vmem:[%s2976 + $0x2a0] sm:$0xff]
        %v3062 = vld [vmem:[%s2976 + $0x2a8] sm:$0xff]
        %v3063 = vld [vmem:[%s2976 + $0x2b0] sm:$0xff]
        %v3064 = vld [vmem:[%s2976 + $0x2b8] sm:$0xff]
        %v3065 = vld [vmem:[%s2976 + $0x2c0] sm:$0xff]
        %v3066 = vld [vmem:[%s2976 + $0x2c8] sm:$0xff]
        %v3067 = vld [vmem:[%s2976 + $0x2d0] sm:$0xff]
        %v3068 = vld [vmem:[%s2976 + $0x2d8] sm:$0xff]
        %v3069 = vld [vmem:[%s2976 + $0x2e0] sm:$0xff]
        %v3070 = vld [vmem:[%s2976 + $0x2e8] sm:$0xff]
        %v3071 = vld [vmem:[%s2976 + $0x2f0] sm:$0xff]
        %v3072 = vld [vmem:[%s2976 + $0x2f8] sm:$0xff]
        %v3073 = vld [vmem:[%s2976 + $0x300] sm:$0xff]
        %v3074 = vld [vmem:[%s2976 + $0x308] sm:$0xff]
        %v3075 = vld [vmem:[%s2976 + $0x310] sm:$0xff]
        %v3076 = vld [vmem:[%s2976 + $0x318] sm:$0xff]
        %v3077 = vld [vmem:[%s2976 + $0x320] sm:$0xff]
        %v3078 = vld [vmem:[%s2976 + $0x328] sm:$0xff]
        %v3080 = vsel %vm2194, %v2968, 0
        %v3083 = vsel %vm2194, %v2973, 0
        %3085 = vmatprep.subr.mxu0 %v2978
        %3086 = vmatpush1.msra.mxu0 %v2977
        %3087 = vmatprep.subr.mxu0 %v2981
        %3088 = vmatpush1.msra.mxu0 %v2980
        %3089 = vmatprep.subr.mxu0 %v2984
        %3090 = vmatpush1.msra.mxu0 %v2983
        %3091 = vmatprep.subr.mxu0 %v2987
        %3092 = vmatpush1.msra.mxu0 %v2986
        %3093 = vmatprep.subr.mxu0 %v2990
        %3094 = vmatpush1.msra.mxu0 %v2989
        %3095 = vmatprep.subr.mxu0 %v2993
        %3096 = vmatpush1.msra.mxu0 %v2992
        %3097 = vmatprep.subr.mxu0 %v2996
        %3098 = vmatpush1.msra.mxu0 %v2995
        %3099 = vmatprep.subr.mxu0 %v2999
        %3100 = vmatpush1.msra.mxu0 %v2998
        %3101 = vmatprep.subr.mxu0 %v3002
        %3102 = vmatpush1.msra.mxu0 %v3001
        %3103 = vmatprep.subr.mxu0 %v3005
        %3104 = vmatpush1.msra.mxu0 %v3004
        %3105 = vmatprep.subr.mxu0 %v3008
        %3106 = vmatpush1.msra.mxu0 %v3007
        %3107 = vmatprep.subr.mxu0 %v3011
        %3108 = vmatpush1.msra.mxu0 %v3010
        %3109 = vmatprep.subr.mxu0 %v3014
        %3110 = vmatpush1.msra.mxu0 %v3013
        %3111 = vmatprep.subr.mxu0 %v3017
        %3112 = vmatpush1.msra.mxu0 %v3016
        %3113 = vmatprep.subr.mxu0 %v3020
        %3114 = vmatpush1.msra.mxu0 %v3019
        %3115 = vmatprep.subr.mxu0 %v3023
        %3116 = vmatpush1.msra.mxu0 %v3022
        %3117 = vmatprep.subr.mxu0 %v3026
        %3118 = vmatpush1.msra.mxu0 %v3025
        %3119 = vmatprep.subr.mxu0 %v3029
        %3120 = vmatpush1.msra.mxu0 %v3028
        %3121 = vmatprep.subr.mxu0 %v3032
        %3122 = vmatpush1.msra.mxu0 %v3031
        %3123 = vmatprep.subr.mxu0 %v3035
        %3124 = vmatpush1.msra.mxu0 %v3034
        %3125 = vmatprep.subr.mxu0 %v3038
        %3126 = vmatpush1.msra.mxu0 %v3037
        %3127 = vmatprep.subr.mxu0 %v3041
        %3128 = vmatpush1.msra.mxu0 %v3040
        %3129 = vmatprep.subr.mxu0 %v3044
        %3130 = vmatpush1.msra.mxu0 %v3043
        %3131 = vmatprep.subr.mxu0 %v3047
        %3132 = vmatpush1.msra.mxu0 %v3046
        %3133 = vmatprep.subr.mxu0 %v3050
        %3134 = vmatpush1.msra.mxu0 %v3049
        %3135 = vmatprep.subr.mxu0 %v3053
        %3136 = vmatpush1.msra.mxu0 %v3052
        %3137 = vmatprep.subr.mxu0 %v3056
        %3138 = vmatpush1.msra.mxu0 %v3055
        %3139 = vmatprep.subr.mxu0 %v3059
        %3140 = vmatpush1.msra.mxu0 %v3058
        %3141 = vmatprep.subr.mxu0 %v3062
        %3142 = vmatpush1.msra.mxu0 %v3061
        %3143 = vmatprep.subr.mxu0 %v3065
        %3144 = vmatpush1.msra.mxu0 %v3064
        %3145 = vmatprep.subr.mxu0 %v3068
        %3146 = vmatpush1.msra.mxu0 %v3067
        %3147 = vmatprep.subr.mxu0 %v3071
        %3148 = vmatpush1.msra.mxu0 %v3070
        %3149 = vmatprep.mubr.f32.mxu0 %v2893
        %3150 = vmatmul.mubr.f32.gmra.mrb[0].mxu0 %v2891
        %v3151 = vpop.f32.mrb[0].mxu0
        %v3152 = vadd.f32 0.0, %v3151
        %v3153 = vpop.f32.mrb[0].mxu0
        %v3154 = vadd.f32 0.0, %v3153
        %3155 = vmatprep.mubr.f32.mxu0 %v2899
        %3156 = vmatmul.mubr.f32.gmra.mrb[0].mxu0 %v2897
        %v3157 = vpop.f32.mrb[0].mxu0
        %v3158 = vadd.f32 0.0, %v3157
        %v3159 = vpop.f32.mrb[0].mxu0
        %v3160 = vadd.f32 0.0, %v3159
        %3161 = vdwg.mxu0
        %3162 = vmatprep.subr.mxu0 %v3074
        %3163 = vmatpush1.msra.mxu0 %v3073
        %3164 = vmatprep.subr.mxu0 %v3077
        %3165 = vmatpush1.msra.mxu0 %v3076
        %3166 = vmatprep.subr.mxu0 0.0
        %3167 = vmatpush1.msra.mxu0 0.0
        %3168 = vmatprep.subr.mxu0 0.0
        %3169 = vmatpush1.msra.mxu0 0.0
        %3170 = vmatprep.subr.mxu0 0.0
        %3171 = vmatpush1.msra.mxu0 0.0
        %3172 = vmatprep.subr.mxu0 0.0
        %3173 = vmatpush1.msra.mxu0 0.0
        %3174 = vmatprep.subr.mxu0 0.0
        %3175 = vmatpush1.msra.mxu0 0.0
        %3176 = vmatprep.subr.mxu0 0.0
        %3177 = vmatpush1.msra.mxu0 0.0
        %3178 = vmatprep.subr.mxu0 0.0
        %3179 = vmatpush1.msra.mxu0 0.0
        %3180 = vmatprep.subr.mxu0 0.0
        %3181 = vmatpush1.msra.mxu0 0.0
        %3182 = vmatprep.subr.mxu0 0.0
        %3183 = vmatpush1.msra.mxu0 0.0
        %3184 = vmatprep.subr.mxu0 0.0
        %3185 = vmatpush1.msra.mxu0 0.0
        %3186 = vmatprep.subr.mxu0 0.0
        %3187 = vmatpush1.msra.mxu0 0.0
        %3188 = vmatprep.subr.mxu0 0.0
        %3189 = vmatpush1.msra.mxu0 0.0
        %3190 = vmatprep.subr.mxu0 0.0
        %3191 = vmatpush1.msra.mxu0 0.0
        %3192 = vmatprep.subr.mxu0 0.0
        %3193 = vmatpush1.msra.mxu0 0.0
        %3194 = vmatprep.subr.mxu0 0.0
        %3195 = vmatpush1.msra.mxu0 0.0
        %3196 = vmatprep.subr.mxu0 0.0
        %3197 = vmatpush1.msra.mxu0 0.0
        %3198 = vmatprep.subr.mxu0 0.0
        %3199 = vmatpush1.msra.mxu0 0.0
        %3200 = vmatprep.subr.mxu0 0.0
        %3201 = vmatpush1.msra.mxu0 0.0
        %3202 = vmatprep.subr.mxu0 0.0
        %3203 = vmatpush1.msra.mxu0 0.0
        %3204 = vmatprep.subr.mxu0 0.0
        %3205 = vmatpush1.msra.mxu0 0.0
        %3206 = vmatprep.subr.mxu0 0.0
        %3207 = vmatpush1.msra.mxu0 0.0
        %3208 = vmatprep.subr.mxu0 0.0
        %3209 = vmatpush1.msra.mxu0 0.0
        %3210 = vmatprep.subr.mxu0 0.0
        %3211 = vmatpush1.msra.mxu0 0.0
        %3212 = vmatprep.subr.mxu0 0.0
        %3213 = vmatpush1.msra.mxu0 0.0
        %3214 = vmatprep.subr.mxu0 0.0
        %3215 = vmatpush1.msra.mxu0 0.0
        %3216 = vmatprep.subr.mxu0 0.0
        %3217 = vmatpush1.msra.mxu0 0.0
        %3218 = vmatprep.subr.mxu0 0.0
        %3219 = vmatpush1.msra.mxu0 0.0
        %3220 = vmatprep.subr.mxu0 0.0
        %3221 = vmatpush1.msra.mxu0 0.0
        %3222 = vmatprep.subr.mxu0 0.0
        %3223 = vmatpush1.msra.mxu0 0.0
        %3224 = vmatprep.subr.mxu0 0.0
        %3225 = vmatpush1.msra.mxu0 0.0
        %3226 = vmatprep.mubr.f32.mxu0 0.0
        %3227 = vmatmul.mubr.f32.gmra.mrb[0].mxu0 %v3080
        %v3228 = vpop.f32.mrb[0].mxu0
        %v3229 = vadd.f32 %v3152, %v3228
        %v3230 = vpop.f32.mrb[0].mxu0
        %v3231 = vadd.f32 %v3154, %v3230
        %3232 = vmatprep.mubr.f32.mxu0 0.0
        %3233 = vmatmul.mubr.f32.gmra.mrb[0].mxu0 %v3083
        %v3234 = vpop.f32.mrb[0].mxu0
        %v3235 = vadd.f32 %v3158, %v3234
        %v3236 = vpop.f32.mrb[0].mxu0
        %v3237 = vadd.f32 %v3160, %v3236
        %3238 = vdwg.mxu0
        %3239 = vmatprep.subr.mxu0 0.0
        %3240 = vmatpush1.msra.mxu0 %v2979
        %3241 = vmatprep.subr.mxu0 0.0
        %3242 = vmatpush1.msra.mxu0 %v2982
        %3243 = vmatprep.subr.mxu0 0.0
        %3244 = vmatpush1.msra.mxu0 %v2985
        %3245 = vmatprep.subr.mxu0 0.0
        %3246 = vmatpush1.msra.mxu0 %v2988
        %3247 = vmatprep.subr.mxu0 0.0
        %3248 = vmatpush1.msra.mxu0 %v2991
        %3249 = vmatprep.subr.mxu0 0.0
        %3250 = vmatpush1.msra.mxu0 %v2994
        %3251 = vmatprep.subr.mxu0 0.0
        %3252 = vmatpush1.msra.mxu0 %v2997
        %3253 = vmatprep.subr.mxu0 0.0
        %3254 = vmatpush1.msra.mxu0 %v3000
        %3255 = vmatprep.subr.mxu0 0.0
        %3256 = vmatpush1.msra.mxu0 %v3003
        %3257 = vmatprep.subr.mxu0 0.0
        %3258 = vmatpush1.msra.mxu0 %v3006
        %3259 = vmatprep.subr.mxu0 0.0
        %3260 = vmatpush1.msra.mxu0 %v3009
        %3261 = vmatprep.subr.mxu0 0.0
        %3262 = vmatpush1.msra.mxu0 %v3012
        %3263 = vmatprep.subr.mxu0 0.0
        %3264 = vmatpush1.msra.mxu0 %v3015
        %3265 = vmatprep.subr.mxu0 0.0
        %3266 = vmatpush1.msra.mxu0 %v3018
        %3267 = vmatprep.subr.mxu0 0.0
        %3268 = vmatpush1.msra.mxu0 %v3021
        %3269 = vmatprep.subr.mxu0 0.0
        %3270 = vmatpush1.msra.mxu0 %v3024
        %3271 = vmatprep.subr.mxu0 0.0
        %3272 = vmatpush1.msra.mxu0 %v3027
        %3273 = vmatprep.subr.mxu0 0.0
        %3274 = vmatpush1.msra.mxu0 %v3030
        %3275 = vmatprep.subr.mxu0 0.0
        %3276 = vmatpush1.msra.mxu0 %v3033
        %3277 = vmatprep.subr.mxu0 0.0
        %3278 = vmatpush1.msra.mxu0 %v3036
        %3279 = vmatprep.subr.mxu0 0.0
        %3280 = vmatpush1.msra.mxu0 %v3039
        %3281 = vmatprep.subr.mxu0 0.0
        %3282 = vmatpush1.msra.mxu0 %v3042
        %3283 = vmatprep.subr.mxu0 0.0
        %3284 = vmatpush1.msra.mxu0 %v3045
        %3285 = vmatprep.subr.mxu0 0.0
        %3286 = vmatpush1.msra.mxu0 %v3048
        %3287 = vmatprep.subr.mxu0 0.0
        %3288 = vmatpush1.msra.mxu0 %v3051
        %3289 = vmatprep.subr.mxu0 0.0
        %3290 = vmatpush1.msra.mxu0 %v3054
        %3291 = vmatprep.subr.mxu0 0.0
        %3292 = vmatpush1.msra.mxu0 %v3057
        %3293 = vmatprep.subr.mxu0 0.0
        %3294 = vmatpush1.msra.mxu0 %v3060
        %3295 = vmatprep.subr.mxu0 0.0
        %3296 = vmatpush1.msra.mxu0 %v3063
        %3297 = vmatprep.subr.mxu0 0.0
        %3298 = vmatpush1.msra.mxu0 %v3066
        %3299 = vmatprep.subr.mxu0 0.0
        %3300 = vmatpush1.msra.mxu0 %v3069
        %3301 = vmatprep.subr.mxu0 0.0
        %3302 = vmatpush1.msra.mxu0 %v3072
        %3303 = vmatprep.mubr.f32.mxu0 %v2893
        %3304 = vmatmul.mubr.f32.gmra.mrb[0].mxu0 %v2891
        %v3305 = vpop.f32.mrb[0].mxu0
        %v3306 = vadd.f32 0.0, %v3305
        %v3307 = vpop.f32.mrb[0].mxu0
        %3308 = vmatprep.mubr.f32.mxu0 %v2899
        %3309 = vmatmul.mubr.f32.gmra.mrb[0].mxu0 %v2897
        %v3310 = vpop.f32.mrb[0].mxu0
        %v3311 = vadd.f32 0.0, %v3310
        %v3312 = vpop.f32.mrb[0].mxu0
        %3313 = vdwg.mxu0
        %3314 = vmatprep.subr.mxu0 0.0
        %3315 = vmatpush1.msra.mxu0 %v3075
        %3316 = vmatprep.subr.mxu0 0.0
        %3317 = vmatpush1.msra.mxu0 %v3078
        %3318 = vmatprep.subr.mxu0 0.0
        %3319 = vmatpush1.msra.mxu0 0.0
        %3320 = vmatprep.subr.mxu0 0.0
        %3321 = vmatpush1.msra.mxu0 0.0
        %3322 = vmatprep.subr.mxu0 0.0
        %3323 = vmatpush1.msra.mxu0 0.0
        %3324 = vmatprep.subr.mxu0 0.0
        %3325 = vmatpush1.msra.mxu0 0.0
        %3326 = vmatprep.subr.mxu0 0.0
        %3327 = vmatpush1.msra.mxu0 0.0
        %3328 = vmatprep.subr.mxu0 0.0
        %3329 = vmatpush1.msra.mxu0 0.0
        %3330 = vmatprep.subr.mxu0 0.0
        %3331 = vmatpush1.msra.mxu0 0.0
        %3332 = vmatprep.subr.mxu0 0.0
        %3333 = vmatpush1.msra.mxu0 0.0
        %3334 = vmatprep.subr.mxu0 0.0
        %3335 = vmatpush1.msra.mxu0 0.0
        %3336 = vmatprep.subr.mxu0 0.0
        %3337 = vmatpush1.msra.mxu0 0.0
        %3338 = vmatprep.subr.mxu0 0.0
        %3339 = vmatpush1.msra.mxu0 0.0
        %3340 = vmatprep.subr.mxu0 0.0
        %3341 = vmatpush1.msra.mxu0 0.0
        %3342 = vmatprep.subr.mxu0 0.0
        %3343 = vmatpush1.msra.mxu0 0.0
        %3344 = vmatprep.subr.mxu0 0.0
        %3345 = vmatpush1.msra.mxu0 0.0
        %3346 = vmatprep.subr.mxu0 0.0
        %3347 = vmatpush1.msra.mxu0 0.0
        %3348 = vmatprep.subr.mxu0 0.0
        %3349 = vmatpush1.msra.mxu0 0.0
        %3350 = vmatprep.subr.mxu0 0.0
        %3351 = vmatpush1.msra.mxu0 0.0
        %3352 = vmatprep.subr.mxu0 0.0
        %3353 = vmatpush1.msra.mxu0 0.0
        %3354 = vmatprep.subr.mxu0 0.0
        %3355 = vmatpush1.msra.mxu0 0.0
        %3356 = vmatprep.subr.mxu0 0.0
        %3357 = vmatpush1.msra.mxu0 0.0
        %3358 = vmatprep.subr.mxu0 0.0
        %3359 = vmatpush1.msra.mxu0 0.0
        %3360 = vmatprep.subr.mxu0 0.0
        %3361 = vmatpush1.msra.mxu0 0.0
        %3362 = vmatprep.subr.mxu0 0.0
        %3363 = vmatpush1.msra.mxu0 0.0
        %3364 = vmatprep.subr.mxu0 0.0
        %3365 = vmatpush1.msra.mxu0 0.0
        %3366 = vmatprep.subr.mxu0 0.0
        %3367 = vmatpush1.msra.mxu0 0.0
        %3368 = vmatprep.subr.mxu0 0.0
        %3369 = vmatpush1.msra.mxu0 0.0
        %3370 = vmatprep.subr.mxu0 0.0
        %3371 = vmatpush1.msra.mxu0 0.0
        %3372 = vmatprep.subr.mxu0 0.0
        %3373 = vmatpush1.msra.mxu0 0.0
        %3374 = vmatprep.subr.mxu0 0.0
        %3375 = vmatpush1.msra.mxu0 0.0
        %3376 = vmatprep.subr.mxu0 0.0
        %3377 = vmatpush1.msra.mxu0 0.0
        %3378 = vmatprep.mubr.f32.mxu0 0.0
        %3379 = vmatmul.mubr.f32.gmra.mrb[0].mxu0 %v3080
        %v3380 = vpop.f32.mrb[0].mxu0
        %v3381 = vadd.f32 %v3306, %v3380
        %v3382 = vpop.f32.mrb[0].mxu0
        %3383 = vmatprep.mubr.f32.mxu0 0.0
        %3384 = vmatmul.mubr.f32.gmra.mrb[0].mxu0 %v3083
        %v3385 = vpop.f32.mrb[0].mxu0
        %v3386 = vadd.f32 %v3311, %v3385
        %v3387 = vpop.f32.mrb[0].mxu0
        %3388 = vdwg.mxu0
        %v3389 = vadd.f32 %v2655, %v3229
        %v3390 = vadd.f32 %v2657, %v3231
        %v3391 = vadd.f32 %v2807, %v3381
        %v3392 = vadd.f32 %v2661, %v3235
        %v3393 = vadd.f32 %v2663, %v3237
        %v3394 = vadd.f32 %v2812, %v3386
        %v3395 = vld [vmem:[%s8] sm:$0x7]
        %v3397 = vlaneseq
        %v3398 = vshrl.u32 %v3397, 7
        %v3399 = vsub.s32 0, %v3398
        %v3400 = vrot.slane %v3395, %v3399
        %v3401 = vlaneseq
        %v3402 = vshrl.u32 %v3401, 7
        %v3403 = vsub.s32 1, %v3402
        %v3404 = vrot.slane %v3395, %v3403
        %v3405 = vlaneseq
        %v3406 = vshrl.u32 %v3405, 7
        %v3407 = vsub.s32 2, %v3406
        %v3408 = vrot.slane %v3395, %v3407
        %v3412 = vadd.f32 %v3389, %v3400
        %v3413 = vadd.f32 %v3390, %v3404
        %v3414 = vadd.f32 %v3391, %v3408
        %v3415 = vadd.f32 %v3392, %v3400
        %v3416 = vadd.f32 %v3393, %v3404
        %v3417 = vadd.f32 %v3394, %v3408
        %v3418 = vmax.f32 %v3412, 0.0
        %v3419 = vmax.f32 %v3413, 0.0
        %v3420 = vmax.f32 %v3414, 0.0
        %v3421 = vmax.f32 %v3415, 0.0
        %v3422 = vmax.f32 %v3416, 0.0
        %v3423 = vmax.f32 %v3417, 0.0
        %v3424 = vld [vmem:[%s9] sm:$0xff]
        %v3425 = vld [vmem:[%s9 + $0x8] sm:$0xff]
        %v3426 = vld [vmem:[%s9 + $0x10] sm:$0xff]
        %v3427 = vld [vmem:[%s9 + $0x18] sm:$0xff]
        %v3428 = vld [vmem:[%s9 + $0x20] sm:$0xff]
        %v3429 = vld [vmem:[%s9 + $0x28] sm:$0xff]
        %v3430 = vld [vmem:[%s9 + $0x30] sm:$0xff]
        %v3431 = vld [vmem:[%s9 + $0x38] sm:$0xff]
        %v3432 = vld [vmem:[%s9 + $0x40] sm:$0xff]
        %v3433 = vld [vmem:[%s9 + $0x48] sm:$0xff]
        %v3434 = vld [vmem:[%s9 + $0x50] sm:$0xff]
        %v3435 = vld [vmem:[%s9 + $0x58] sm:$0xff]
        %v3436 = vld [vmem:[%s9 + $0x60] sm:$0xff]
        %v3437 = vld [vmem:[%s9 + $0x68] sm:$0xff]
        %v3438 = vld [vmem:[%s9 + $0x70] sm:$0xff]
        %v3439 = vld [vmem:[%s9 + $0x78] sm:$0xff]
        %v3440 = vld [vmem:[%s9 + $0x80] sm:$0xff]
        %v3441 = vld [vmem:[%s9 + $0x88] sm:$0xff]
        %v3442 = vld [vmem:[%s9 + $0x90] sm:$0xff]
        %v3443 = vld [vmem:[%s9 + $0x98] sm:$0xff]
        %v3444 = vld [vmem:[%s9 + $0xa0] sm:$0xff]
        %v3445 = vld [vmem:[%s9 + $0xa8] sm:$0xff]
        %v3446 = vld [vmem:[%s9 + $0xb0] sm:$0xff]
        %v3447 = vld [vmem:[%s9 + $0xb8] sm:$0xff]
        %v3448 = vld [vmem:[%s9 + $0xc0] sm:$0xff]
        %v3449 = vld [vmem:[%s9 + $0xc8] sm:$0xff]
        %v3450 = vld [vmem:[%s9 + $0xd0] sm:$0xff]
        %v3451 = vld [vmem:[%s9 + $0xd8] sm:$0xff]
        %v3452 = vld [vmem:[%s9 + $0xe0] sm:$0xff]
        %v3453 = vld [vmem:[%s9 + $0xe8] sm:$0xff]
        %v3454 = vld [vmem:[%s9 + $0xf0] sm:$0xff]
        %v3455 = vld [vmem:[%s9 + $0xf8] sm:$0xff]
        %v3456 = vld [vmem:[%s9 + $0x100] sm:$0xff]
        %v3457 = vld [vmem:[%s9 + $0x108] sm:$0xff]
        %v3458 = vld [vmem:[%s9 + $0x110] sm:$0xff]
        %v3459 = vld [vmem:[%s9 + $0x118] sm:$0xff]
        %v3460 = vld [vmem:[%s9 + $0x120] sm:$0xff]
        %v3461 = vld [vmem:[%s9 + $0x128] sm:$0xff]
        %v3462 = vld [vmem:[%s9 + $0x130] sm:$0xff]
        %v3463 = vld [vmem:[%s9 + $0x138] sm:$0xff]
        %vm3464 = vcmask 523264
        %v3466 = vsel %vm3464, %v3420, 0
        %v3469 = vsel %vm3464, %v3423, 0
        %3471 = vmatprep.subr.mxu0 0.0
        %3472 = vmatpush1.msra.mxu0 %v3424
        %3473 = vmatprep.subr.mxu0 0.0
        %3474 = vmatpush1.msra.mxu0 %v3425
        %3475 = vmatprep.subr.mxu0 0.0
        %3476 = vmatpush1.msra.mxu0 %v3426
        %3477 = vmatprep.subr.mxu0 0.0
        %3478 = vmatpush1.msra.mxu0 %v3427
        %3479 = vmatprep.subr.mxu0 0.0
        %3480 = vmatpush1.msra.mxu0 %v3428
        %3481 = vmatprep.subr.mxu0 0.0
        %3482 = vmatpush1.msra.mxu0 %v3429
        %3483 = vmatprep.subr.mxu0 0.0
        %3484 = vmatpush1.msra.mxu0 %v3430
        %3485 = vmatprep.subr.mxu0 0.0
        %3486 = vmatpush1.msra.mxu0 %v3431
        %3487 = vmatprep.subr.mxu0 0.0
        %3488 = vmatpush1.msra.mxu0 %v3432
        %3489 = vmatprep.subr.mxu0 0.0
        %3490 = vmatpush1.msra.mxu0 %v3433
        %3491 = vmatprep.subr.mxu0 0.0
        %3492 = vmatpush1.msra.mxu0 %v3434
        %3493 = vmatprep.subr.mxu0 0.0
        %3494 = vmatpush1.msra.mxu0 %v3435
        %3495 = vmatprep.subr.mxu0 0.0
        %3496 = vmatpush1.msra.mxu0 %v3436
        %3497 = vmatprep.subr.mxu0 0.0
        %3498 = vmatpush1.msra.mxu0 %v3437
        %3499 = vmatprep.subr.mxu0 0.0
        %3500 = vmatpush1.msra.mxu0 %v3438
        %3501 = vmatprep.subr.mxu0 0.0
        %3502 = vmatpush1.msra.mxu0 %v3439
        %3503 = vmatprep.subr.mxu0 0.0
        %3504 = vmatpush1.msra.mxu0 %v3440
        %3505 = vmatprep.subr.mxu0 0.0
        %3506 = vmatpush1.msra.mxu0 %v3441
        %3507 = vmatprep.subr.mxu0 0.0
        %3508 = vmatpush1.msra.mxu0 %v3442
        %3509 = vmatprep.subr.mxu0 0.0
        %3510 = vmatpush1.msra.mxu0 %v3443
        %3511 = vmatprep.subr.mxu0 0.0
        %3512 = vmatpush1.msra.mxu0 %v3444
        %3513 = vmatprep.subr.mxu0 0.0
        %3514 = vmatpush1.msra.mxu0 %v3445
        %3515 = vmatprep.subr.mxu0 0.0
        %3516 = vmatpush1.msra.mxu0 %v3446
        %3517 = vmatprep.subr.mxu0 0.0
        %3518 = vmatpush1.msra.mxu0 %v3447
        %3519 = vmatprep.subr.mxu0 0.0
        %3520 = vmatpush1.msra.mxu0 %v3448
        %3521 = vmatprep.subr.mxu0 0.0
        %3522 = vmatpush1.msra.mxu0 %v3449
        %3523 = vmatprep.subr.mxu0 0.0
        %3524 = vmatpush1.msra.mxu0 %v3450
        %3525 = vmatprep.subr.mxu0 0.0
        %3526 = vmatpush1.msra.mxu0 %v3451
        %3527 = vmatprep.subr.mxu0 0.0
        %3528 = vmatpush1.msra.mxu0 %v3452
        %3529 = vmatprep.subr.mxu0 0.0
        %3530 = vmatpush1.msra.mxu0 %v3453
        %3531 = vmatprep.subr.mxu0 0.0
        %3532 = vmatpush1.msra.mxu0 %v3454
        %3533 = vmatprep.subr.mxu0 0.0
        %3534 = vmatpush1.msra.mxu0 %v3455
        %3535 = vmatprep.mubr.f32.mxu0 %v3419
        %3536 = vmatmul.mubr.f32.gmra.mrb[0].mxu0 %v3418
        %v3537 = vpop.f32.mrb[0].mxu0
        %v3538 = vadd.f32 0.0, %v3537
        %v3539 = vpop.f32.mrb[0].mxu0
        %3540 = vmatprep.mubr.f32.mxu0 %v3422
        %3541 = vmatmul.mubr.f32.gmra.mrb[0].mxu0 %v3421
        %v3542 = vpop.f32.mrb[0].mxu0
        %v3543 = vadd.f32 0.0, %v3542
        %v3544 = vpop.f32.mrb[0].mxu0
        %3545 = vdwg.mxu0
        %3546 = vmatprep.subr.mxu0 0.0
        %3547 = vmatpush1.msra.mxu0 %v3456
        %3548 = vmatprep.subr.mxu0 0.0
        %3549 = vmatpush1.msra.mxu0 %v3457
        %3550 = vmatprep.subr.mxu0 0.0
        %3551 = vmatpush1.msra.mxu0 %v3458
        %3552 = vmatprep.subr.mxu0 0.0
        %3553 = vmatpush1.msra.mxu0 %v3459
        %3554 = vmatprep.subr.mxu0 0.0
        %3555 = vmatpush1.msra.mxu0 %v3460
        %3556 = vmatprep.subr.mxu0 0.0
        %3557 = vmatpush1.msra.mxu0 %v3461
        %3558 = vmatprep.subr.mxu0 0.0
        %3559 = vmatpush1.msra.mxu0 %v3462
        %3560 = vmatprep.subr.mxu0 0.0
        %3561 = vmatpush1.msra.mxu0 %v3463
        %3562 = vmatprep.subr.mxu0 0.0
        %3563 = vmatpush1.msra.mxu0 0.0
        %3564 = vmatprep.subr.mxu0 0.0
        %3565 = vmatpush1.msra.mxu0 0.0
        %3566 = vmatprep.subr.mxu0 0.0
        %3567 = vmatpush1.msra.mxu0 0.0
        %3568 = vmatprep.subr.mxu0 0.0
        %3569 = vmatpush1.msra.mxu0 0.0
        %3570 = vmatprep.subr.mxu0 0.0
        %3571 = vmatpush1.msra.mxu0 0.0
        %3572 = vmatprep.subr.mxu0 0.0
        %3573 = vmatpush1.msra.mxu0 0.0
        %3574 = vmatprep.subr.mxu0 0.0
        %3575 = vmatpush1.msra.mxu0 0.0
        %3576 = vmatprep.subr.mxu0 0.0
        %3577 = vmatpush1.msra.mxu0 0.0
        %3578 = vmatprep.subr.mxu0 0.0
        %3579 = vmatpush1.msra.mxu0 0.0
        %3580 = vmatprep.subr.mxu0 0.0
        %3581 = vmatpush1.msra.mxu0 0.0
        %3582 = vmatprep.subr.mxu0 0.0
        %3583 = vmatpush1.msra.mxu0 0.0
        %3584 = vmatprep.subr.mxu0 0.0
        %3585 = vmatpush1.msra.mxu0 0.0
        %3586 = vmatprep.subr.mxu0 0.0
        %3587 = vmatpush1.msra.mxu0 0.0
        %3588 = vmatprep.subr.mxu0 0.0
        %3589 = vmatpush1.msra.mxu0 0.0
        %3590 = vmatprep.subr.mxu0 0.0
        %3591 = vmatpush1.msra.mxu0 0.0
        %3592 = vmatprep.subr.mxu0 0.0
        %3593 = vmatpush1.msra.mxu0 0.0
        %3594 = vmatprep.subr.mxu0 0.0
        %3595 = vmatpush1.msra.mxu0 0.0
        %3596 = vmatprep.subr.mxu0 0.0
        %3597 = vmatpush1.msra.mxu0 0.0
        %3598 = vmatprep.subr.mxu0 0.0
        %3599 = vmatpush1.msra.mxu0 0.0
        %3600 = vmatprep.subr.mxu0 0.0
        %3601 = vmatpush1.msra.mxu0 0.0
        %3602 = vmatprep.subr.mxu0 0.0
        %3603 = vmatpush1.msra.mxu0 0.0
        %3604 = vmatprep.subr.mxu0 0.0
        %3605 = vmatpush1.msra.mxu0 0.0
        %3606 = vmatprep.subr.mxu0 0.0
        %3607 = vmatpush1.msra.mxu0 0.0
        %3608 = vmatprep.subr.mxu0 0.0
        %3609 = vmatpush1.msra.mxu0 0.0
        %3610 = vmatprep.mubr.f32.mxu0 0.0
        %3611 = vmatmul.mubr.f32.gmra.mrb[0].mxu0 %v3466
        %v3612 = vpop.f32.mrb[0].mxu0
        %v3613 = vadd.f32 %v3538, %v3612
        %v3614 = vpop.f32.mrb[0].mxu0
        %3615 = vmatprep.mubr.f32.mxu0 0.0
        %3616 = vmatmul.mubr.f32.gmra.mrb[0].mxu0 %v3469
        %v3617 = vpop.f32.mrb[0].mxu0
        %v3618 = vadd.f32 %v3543, %v3617
        %v3619 = vpop.f32.mrb[0].mxu0
        %3620 = vdwg.mxu0
        %v3621 = vsel %vm783, %v3613, 0.0
        %vm3622 = vcmask 254976
        %v3623 = vsel %vm3622, %v3618, 0.0
        %v3624 = vadd.f32 %v3621, %v3623
        %v3625 = vrot.slane %v3624, 4
        %v3626 = vadd.f32 %v3624, %v3625
        %v3627 = vrot.slane %v3626, 2
        %v3628 = vadd.f32 %v3626, %v3627
        %v3629 = vrot.slane %v3628, 1
        %v3630 = vadd.f32 %v3628, %v3629
        %v3631 = vmul.f32 %v3630, 0.01
        %vm3632 = vcmask 253952
        %3633 = vst.msk [vmem:[%s351] sm:$0x1] %vm3632, %v3631
        %s3634 = sand.u32 %s247, 1
        %s3635 = scalar_lea.sflag [#allocation3], %s3634
        %s3636 = sand.u32 %s247, 1
        %s3637 = scalar_lea.vmem [#allocation2], %s3636
        // Predicated region
        $region61: #{gram_block_forward.1} parent=59 // pred_check
          %p3638 = pneg %p257
        $region62: #{gram_block_forward.1} parent=59 // pred_check_branch
          %3640 = sbr.rel (%p3638) target = $region64
        $region63: #{gram_block_forward.1} parent=59 // pred_region
          %s3642 = ssub.s32 16, 16
          %3643 = vsyncadd %s3635, %s3642
          %s3644 = smul.addr %s24, 16
          %s3645 = scalar_lea.hbm %s10, %s3644
          %s3647 = sshll.u32 %s3637, 4
          %s3648 = int_to_ptr.vmem [resolvable:$true] %s3647
          %3650 = dma.vmem_to_hbm [thread:$0]  %s3648, 16, %s3645, %s3635
        $region64: #{gram_block_forward.1} parent=59 // pred_fallthru
          _
      $region60: #{gram_block_forward.1} parent=5 // pred_fallthru
        _
      %p3651 = scmp.le.s32.totalorder 2, %s19
      // Predicated region
      $region65: #{gram_block_forward.1} parent=5 // pred_check
        %p3652 = pneg %p3651
      $region66: #{gram_block_forward.1} parent=5 // pred_check_branch
        %3654 = sbr.rel (%p3652) target = $region68
      $region67: #{gram_block_forward.1} parent=5 // pred_region
        %s3655 = ssub.s32 %s19, 2
        // Predicated region
        $region69: #{gram_block_forward.1} parent=67 // pred_check
          %p3656 = pneg %p263
        $region70: #{gram_block_forward.1} parent=67 // pred_check_branch
          %3658 = sbr.rel (%p3656) target = $region72
        $region71: #{gram_block_forward.1} parent=67 // pred_region
          %s3659 = sand.u32 %s248, 1
          %s3660 = scalar_lea.sflag [#allocation3], %s3659
          %s3661 = sand.u32 %s248, 1
          %s3662 = scalar_lea.vmem [#allocation2], %s3661
          %3663 = dma.done %s3660, 16
        $region72: #{gram_block_forward.1} parent=67 // pred_fallthru
          _
      $region68: #{gram_block_forward.1} parent=5 // pred_fallthru
        _
    $region6: #{gram_block_forward.1} parent=1 // loop_footer
      %s23 = sadd.s32 1, %s19
    $region7: #{gram_block_forward.1} parent=1 // loop_footer_branch
      %18 = sbr.rel target = $region3
    $region8: #{gram_block_forward.1} parent=1 // loop_exit
      _
    %3664 = vsyncpa [#allocation3], 1
    %s3665 = scalar_lea.sflag [#allocation3], 1
    %3666 = vsyncpa %s3665, 1

</llo_original>
